<compile_context>
chip_gen: v7x
topology: tpu7x:2x2x1
jax: 0.10.0
libtpu: 0.0.40
codegen_flags: <defaults>
</compile_context>

<pallas_src>
import jax
import jax.numpy as jnp
from jax import lax
from jax.experimental import pallas as pl
from jax.experimental.pallas import tpu as pltpu

# ---- problem constants (from the module) ----
CIN = 256            # in_channels
COUT = 82            # out_channels
KH = KW = 3          # kernel size
PAD = 3              # padding
GROUPS = 2           # see note above (original groups=128 is invalid)
CPG = CIN // GROUPS      # in-channels per group  = 128
OPG = COUT // GROUPS     # out-channels per group = 41
CPAD = 128               # lane-dense padded output channel count (keep at 128, see review)
NEG_SLOPE = 0.01


def conv_leaky_relu(x_nchw, w_pt, bias):
    """x_nchw: (N, CIN, H, W) float32
       w_pt  : (COUT, CPG, KH, KW)  (PyTorch conv weight layout, groups=2)
       bias  : (COUT,)
       returns (N, COUT, OH, OW) float32
    """
    n, cin, h, w = x_nchw.shape
    assert cin == CIN
    hp, wp = h + 2 * PAD, w + 2 * PAD
    oh, ow = hp - KH + 1, wp - KW + 1

    # Flat padded-input layout (bf16 scratch): padded pixel (r, c) lives at scratch
    # row  r * stride + c + shift.  stride % 16 == 0 and (shift + PAD) % 16 == 0 so
    # every copy-in store and every halo-zero block is (16,128)-tile aligned.
    stride = ((wp + 15) // 16) * 16
    shift = (-PAD) % 16
    m = oh * stride                                           # accumulator rows
    srows = ((m + (KH - 1) * stride + (KW - 1) + shift + 1 + 15) // 16) * 16

    # ---- wrapper-side layout prep (plain XLA glue) ----
    # bf16 cast fused into the transpose: halves the input HBM->VMEM DMA.
    x_nhwc = jnp.transpose(x_nchw, (0, 2, 3, 1)).astype(jnp.bfloat16)  # (N,H,W,CIN)

    # Block-diagonal fused weight: (KH*KW, CIN, CPAD) so one matmul per tap covers
    # both groups; output channels zero-padded 82 -> 128 (lane-dense).
    w_g = w_pt.reshape(GROUPS, OPG, CPG, KH, KW)
    w_g = jnp.transpose(w_g, (3, 4, 0, 2, 1))                 # (KH, KW, G, CPG, OPG)
    wf = jnp.zeros((KH, KW, CIN, CPAD), jnp.float32)
    for g in range(GROUPS):
        wf = wf.at[:, :, g * CPG:(g + 1) * CPG,
                   g * OPG:(g + 1) * OPG].set(w_g[:, :, g])
    wf = wf.reshape(KH * KW, CIN, CPAD).astype(jnp.bfloat16)

    b_pad = jnp.zeros((1, CPAD), jnp.float32).at[0, :COUT].set(bias)

    def kernel(x_ref, w_ref, b_ref, o_ref, xpad_ref):
        # --- halo-only zeroing + bf16 copy-in into the flat VMEM scratch ---
        # top block: PAD top pad-rows + left pad of the first interior row.
        # per-row gap: that row's right pad + stride padding + next row's left pad.
        # bottom block: remaining bottom pad-rows. Interior data is fully
        # overwritten every step, so nothing else needs zeroing (and every
        # scratch row a tap can read is written each step).
        top = PAD * stride + shift + PAD                      # 16-aligned
        bot = (PAD + h) * stride + shift + PAD                # 16-aligned
        gap = stride - w
        zero_top = jnp.zeros((top, CIN), jnp.bfloat16)
        zero_gap = jnp.zeros((gap, CIN), jnp.bfloat16)
        zero_bot = jnp.zeros((srows - bot, CIN), jnp.bfloat16)

        xpad_ref[pl.ds(0, top), :] = zero_top
        for hh in range(h):
            dst = (hh + PAD) * stride + shift + PAD           # 16-aligned by design
            xpad_ref[pl.ds(dst, w), :] = x_ref[0, hh]         # bf16 already
            xpad_ref[pl.ds(dst + w, gap), :] = zero_gap
        xpad_ref[pl.ds(bot, srows - bot), :] = zero_bot

        # --- 9 tap matmuls accumulated in f32 vregs, bias folded into init ---
        # acc row r = i*stride + j holds output pixel (i, j); tap (kh, kw) reads
        # scratch rows r + kh*stride + kw + shift.
        acc = jnp.broadcast_to(b_ref[...], (m, CPAD))
        for kh in range(KH):
            for kw in range(KW):
                off = kh * stride + kw + shift
                # NOTE: tap reads start at off % 16 != 0 (copy-in alignment was
                # preferred); if the bundle dump shows per-tap relayout copies,
                # flip the alignment choice (misalign the h copy-in stores instead).
                patch = xpad_ref[pl.ds(off, m), :]            # (m, CIN) bf16
                acc = acc + jnp.dot(patch, w_ref[kh * KW + kw],
                                    preferred_element_type=jnp.float32)

        acc = jnp.maximum(acc, acc * NEG_SLOPE)               # LeakyReLU(0.01)

        # --- compact store: drop the (stride - ow) garbage rows per output row ---
        for i in range(oh):
            o_ref[0, i] = acc[i * stride:i * stride + ow, :]

    out_nhwc = pl.pallas_call(
        kernel,
        out_shape=jax.ShapeDtypeStruct((n, oh, ow, CPAD), jnp.float32),
        grid_spec=pltpu.PrefetchScalarGridSpec(
            num_scalar_prefetch=0,
            grid=(n,),
            in_specs=[
                pl.BlockSpec((1, h, w, CIN), lambda i: (i, 0, 0, 0)),
                pl.BlockSpec((KH * KW, CIN, CPAD), lambda i: (0, 0, 0)),
                pl.BlockSpec((1, CPAD), lambda i: (0, 0)),
            ],
            out_specs=pl.BlockSpec((1, oh, ow, CPAD), lambda i: (i, 0, 0, 0)),
            scratch_shapes=[pltpu.VMEM((srows, CIN), jnp.bfloat16)],
        ),
        compiler_params=pltpu.CompilerParams(
            dimension_semantics=("parallel",)),
    )(x_nhwc, wf, b_pad)

    # lane-dense (N, OH, OW, 128) -> slice to 82 channels -> NCHW
    return jnp.transpose(out_nhwc[..., :COUT], (0, 3, 1, 2))


conv_leaky_relu_jit = jax.jit(conv_leaky_relu)


def _reference(x_nchw, w_pt, bias):
    y = lax.conv_general_dilated(
        x_nchw, w_pt,
        window_strides=(1, 1),
        padding=((PAD, PAD), (PAD, PAD)),
        dimension_numbers=("NCHW", "OIHW", "NCHW"),
        feature_group_count=GROUPS,
        precision=lax.Precision.HIGHEST,
    )
    y = y + bias[None, :, None, None]
    return jnp.where(y > 0, y, y * NEG_SLOPE)


if __name__ == "__main__":
    key = jax.random.PRNGKey(0)
    kx, kw_key, kb = jax.random.split(key, 3)

    N, H, W = 2, 8, 8
    x = jax.random.normal(kx, (N, CIN, H, W), dtype=jnp.float32)

    # deterministic parameter init (Kaiming-uniform-ish bound, like PyTorch)
    fan_in = CPG * KH * KW
    bound = 1.0 / (fan_in ** 0.5)
    w_pt = jax.random.uniform(kw_key, (COUT, CPG, KH, KW),
                              minval=-bound, maxval=bound, dtype=jnp.float32)
    bias = jax.random.uniform(kb, (COUT,),
                              minval=-bound, maxval=bound, dtype=jnp.float32)

    out = jax.block_until_ready(conv_leaky_relu_jit(x, w_pt, bias))
    ref = jax.block_until_ready(_reference(x, w_pt, bias))

    OH = H + 2 * PAD - KH + 1
    OW = W + 2 * PAD - KW + 1
    assert out.shape == ref.shape == (N, COUT, OH, OW)
    assert jnp.allclose(out, ref, atol=2e-2, rtol=2e-2)

    print("KERNEL_OK")
</pallas_src>

<mosaic_0001>
module attributes {stable_mosaic.version = 11 : i64} {
  func.func @kernel(%arg0: i32, %arg1: memref<1x8x8x256xbf16, #tpu.memory_space<vmem>>, %arg2: memref<9x256x128xbf16, #tpu.memory_space<vmem>>, %arg3: memref<1x128xf32, #tpu.memory_space<vmem>>, %arg4: memref<1x12x12x128xf32, #tpu.memory_space<vmem>>, %arg5: memref<240x256xbf16, #tpu.memory_space<vmem>>) attributes {dimension_semantics = [#tpu.dimension_semantics<parallel>], iteration_bounds = array<i64: 2>, scalar_prefetch = 0 : i64, scratch_operands = 1 : i64, tpu.core_type = #tpu.core_type<tc>, window_params = [{transform_indices = @transform_0, window_bounds = array<i64: 1, 8, 8, 256>}, {pipeline_mode = #tpu.pipeline_mode<synchronous>, transform_indices = @transform_1, window_bounds = array<i64: 9, 256, 128>}, {pipeline_mode = #tpu.pipeline_mode<synchronous>, transform_indices = @transform_2, window_bounds = array<i64: 1, 128>}, {transform_indices = @transform_3, window_bounds = array<i64: 1, 12, 12, 128>}]} {
    %cst = arith.constant 0.000000e+00 : bf16
    %0 = vector.broadcast %cst : bf16 to vector<64x256xbf16>
    %cst_0 = arith.constant 0.000000e+00 : bf16
    %1 = vector.broadcast %cst_0 : bf16 to vector<8x256xbf16>
    %cst_1 = arith.constant 0.000000e+00 : bf16
    %2 = vector.broadcast %cst_1 : bf16 to vector<48x256xbf16>
    %c0 = arith.constant 0 : index
    %c0_2 = arith.constant 0 : index
    %3 = vector.load %arg5[%c0, %c0_2] : memref<240x256xbf16, #tpu.memory_space<vmem>>, vector<64x256xbf16>
    tpu.vector_store %arg5[%c0, %c0_2], %0 {strides = array<i32>} : memref<240x256xbf16, #tpu.memory_space<vmem>>, vector<64x256xbf16>,
    %c0_3 = arith.constant 0 : index
    %c0_4 = arith.constant 0 : index
    %c0_5 = arith.constant 0 : index
    %c0_6 = arith.constant 0 : index
    %4 = vector.load %arg1[%c0_3, %c0_4, %c0_5, %c0_6] : memref<1x8x8x256xbf16, #tpu.memory_space<vmem>>, vector<1x1x8x256xbf16>
    %5 = vector.shape_cast %4 : vector<1x1x8x256xbf16> to vector<8x256xbf16>
    %c64 = arith.constant 64 : index
    %c0_7 = arith.constant 0 : index
    %6 = vector.load %arg5[%c64, %c0_7] : memref<240x256xbf16, #tpu.memory_space<vmem>>, vector<8x256xbf16>
    tpu.vector_store %arg5[%c64, %c0_7], %5 {strides = array<i32>} : memref<240x256xbf16, #tpu.memory_space<vmem>>, vector<8x256xbf16>,
    %c72 = arith.constant 72 : index
    %c0_8 = arith.constant 0 : index
    %7 = vector.load %arg5[%c72, %c0_8] : memref<240x256xbf16, #tpu.memory_space<vmem>>, vector<8x256xbf16>
    tpu.vector_store %arg5[%c72, %c0_8], %1 {strides = array<i32>} : memref<240x256xbf16, #tpu.memory_space<vmem>>, vector<8x256xbf16>,
    %c0_9 = arith.constant 0 : index
    %c1 = arith.constant 1 : index
    %c0_10 = arith.constant 0 : index
    %c0_11 = arith.constant 0 : index
    %8 = vector.load %arg1[%c0_9, %c1, %c0_10, %c0_11] : memref<1x8x8x256xbf16, #tpu.memory_space<vmem>>, vector<1x1x8x256xbf16>
    %9 = vector.shape_cast %8 : vector<1x1x8x256xbf16> to vector<8x256xbf16>
    %c80 = arith.constant 80 : index
    %c0_12 = arith.constant 0 : index
    %10 = vector.load %arg5[%c80, %c0_12] : memref<240x256xbf16, #tpu.memory_space<vmem>>, vector<8x256xbf16>
    tpu.vector_store %arg5[%c80, %c0_12], %9 {strides = array<i32>} : memref<240x256xbf16, #tpu.memory_space<vmem>>, vector<8x256xbf16>,
    %c88 = arith.constant 88 : index
    %c0_13 = arith.constant 0 : index
    %11 = vector.load %arg5[%c88, %c0_13] : memref<240x256xbf16, #tpu.memory_space<vmem>>, vector<8x256xbf16>
    tpu.vector_store %arg5[%c88, %c0_13], %1 {strides = array<i32>} : memref<240x256xbf16, #tpu.memory_space<vmem>>, vector<8x256xbf16>,
    %c0_14 = arith.constant 0 : index
    %c2 = arith.constant 2 : index
    %c0_15 = arith.constant 0 : index
    %c0_16 = arith.constant 0 : index
    %12 = vector.load %arg1[%c0_14, %c2, %c0_15, %c0_16] : memref<1x8x8x256xbf16, #tpu.memory_space<vmem>>, vector<1x1x8x256xbf16>
    %13 = vector.shape_cast %12 : vector<1x1x8x256xbf16> to vector<8x256xbf16>
    %c96 = arith.constant 96 : index
    %c0_17 = arith.constant 0 : index
    %14 = vector.load %arg5[%c96, %c0_17] : memref<240x256xbf16, #tpu.memory_space<vmem>>, vector<8x256xbf16>
    tpu.vector_store %arg5[%c96, %c0_17], %13 {strides = array<i32>} : memref<240x256xbf16, #tpu.memory_space<vmem>>, vector<8x256xbf16>,
    %c104 = arith.constant 104 : index
    %c0_18 = arith.constant 0 : index
    %15 = vector.load %arg5[%c104, %c0_18] : memref<240x256xbf16, #tpu.memory_space<vmem>>, vector<8x256xbf16>
    tpu.vector_store %arg5[%c104, %c0_18], %1 {strides = array<i32>} : memref<240x256xbf16, #tpu.memory_space<vmem>>, vector<8x256xbf16>,
    %c0_19 = arith.constant 0 : index
    %c3 = arith.constant 3 : index
    %c0_20 = arith.constant 0 : index
    %c0_21 = arith.constant 0 : index
    %16 = vector.load %arg1[%c0_19, %c3, %c0_20, %c0_21] : memref<1x8x8x256xbf16, #tpu.memory_space<vmem>>, vector<1x1x8x256xbf16>
    %17 = vector.shape_cast %16 : vector<1x1x8x256xbf16> to vector<8x256xbf16>
    %c112 = arith.constant 112 : index
    %c0_22 = arith.constant 0 : index
    %18 = vector.load %arg5[%c112, %c0_22] : memref<240x256xbf16, #tpu.memory_space<vmem>>, vector<8x256xbf16>
    tpu.vector_store %arg5[%c112, %c0_22], %17 {strides = array<i32>} : memref<240x256xbf16, #tpu.memory_space<vmem>>, vector<8x256xbf16>,
    %c120 = arith.constant 120 : index
    %c0_23 = arith.constant 0 : index
    %19 = vector.load %arg5[%c120, %c0_23] : memref<240x256xbf16, #tpu.memory_space<vmem>>, vector<8x256xbf16>
    tpu.vector_store %arg5[%c120, %c0_23], %1 {strides = array<i32>} : memref<240x256xbf16, #tpu.memory_space<vmem>>, vector<8x256xbf16>,
    %c0_24 = arith.constant 0 : index
    %c4 = arith.constant 4 : index
    %c0_25 = arith.constant 0 : index
    %c0_26 = arith.constant 0 : index
    %20 = vector.load %arg1[%c0_24, %c4, %c0_25, %c0_26] : memref<1x8x8x256xbf16, #tpu.memory_space<vmem>>, vector<1x1x8x256xbf16>
    %21 = vector.shape_cast %20 : vector<1x1x8x256xbf16> to vector<8x256xbf16>
    %c128 = arith.constant 128 : index
    %c0_27 = arith.constant 0 : index
    %22 = vector.load %arg5[%c128, %c0_27] : memref<240x256xbf16, #tpu.memory_space<vmem>>, vector<8x256xbf16>
    tpu.vector_store %arg5[%c128, %c0_27], %21 {strides = array<i32>} : memref<240x256xbf16, #tpu.memory_space<vmem>>, vector<8x256xbf16>,
    %c136 = arith.constant 136 : index
    %c0_28 = arith.constant 0 : index
    %23 = vector.load %arg5[%c136, %c0_28] : memref<240x256xbf16, #tpu.memory_space<vmem>>, vector<8x256xbf16>
    tpu.vector_store %arg5[%c136, %c0_28], %1 {strides = array<i32>} : memref<240x256xbf16, #tpu.memory_space<vmem>>, vector<8x256xbf16>,
    %c0_29 = arith.constant 0 : index
    %c5 = arith.constant 5 : index
    %c0_30 = arith.constant 0 : index
    %c0_31 = arith.constant 0 : index
    %24 = vector.load %arg1[%c0_29, %c5, %c0_30, %c0_31] : memref<1x8x8x256xbf16, #tpu.memory_space<vmem>>, vector<1x1x8x256xbf16>
    %25 = vector.shape_cast %24 : vector<1x1x8x256xbf16> to vector<8x256xbf16>
    %c144 = arith.constant 144 : index
    %c0_32 = arith.constant 0 : index
    %26 = vector.load %arg5[%c144, %c0_32] : memref<240x256xbf16, #tpu.memory_space<vmem>>, vector<8x256xbf16>
    tpu.vector_store %arg5[%c144, %c0_32], %25 {strides = array<i32>} : memref<240x256xbf16, #tpu.memory_space<vmem>>, vector<8x256xbf16>,
    %c152 = arith.constant 152 : index
    %c0_33 = arith.constant 0 : index
    %27 = vector.load %arg5[%c152, %c0_33] : memref<240x256xbf16, #tpu.memory_space<vmem>>, vector<8x256xbf16>
    tpu.vector_store %arg5[%c152, %c0_33], %1 {strides = array<i32>} : memref<240x256xbf16, #tpu.memory_space<vmem>>, vector<8x256xbf16>,
    %c0_34 = arith.constant 0 : index
    %c6 = arith.constant 6 : index
    %c0_35 = arith.constant 0 : index
    %c0_36 = arith.constant 0 : index
    %28 = vector.load %arg1[%c0_34, %c6, %c0_35, %c0_36] : memref<1x8x8x256xbf16, #tpu.memory_space<vmem>>, vector<1x1x8x256xbf16>
    %29 = vector.shape_cast %28 : vector<1x1x8x256xbf16> to vector<8x256xbf16>
    %c160 = arith.constant 160 : index
    %c0_37 = arith.constant 0 : index
    %30 = vector.load %arg5[%c160, %c0_37] : memref<240x256xbf16, #tpu.memory_space<vmem>>, vector<8x256xbf16>
    tpu.vector_store %arg5[%c160, %c0_37], %29 {strides = array<i32>} : memref<240x256xbf16, #tpu.memory_space<vmem>>, vector<8x256xbf16>,
    %c168 = arith.constant 168 : index
    %c0_38 = arith.constant 0 : index
    %31 = vector.load %arg5[%c168, %c0_38] : memref<240x256xbf16, #tpu.memory_space<vmem>>, vector<8x256xbf16>
    tpu.vector_store %arg5[%c168, %c0_38], %1 {strides = array<i32>} : memref<240x256xbf16, #tpu.memory_space<vmem>>, vector<8x256xbf16>,
    %c0_39 = arith.constant 0 : index
    %c7 = arith.constant 7 : index
    %c0_40 = arith.constant 0 : index
    %c0_41 = arith.constant 0 : index
    %32 = vector.load %arg1[%c0_39, %c7, %c0_40, %c0_41] : memref<1x8x8x256xbf16, #tpu.memory_space<vmem>>, vector<1x1x8x256xbf16>
    %33 = vector.shape_cast %32 : vector<1x1x8x256xbf16> to vector<8x256xbf16>
    %c176 = arith.constant 176 : index
    %c0_42 = arith.constant 0 : index
    %34 = vector.load %arg5[%c176, %c0_42] : memref<240x256xbf16, #tpu.memory_space<vmem>>, vector<8x256xbf16>
    tpu.vector_store %arg5[%c176, %c0_42], %33 {strides = array<i32>} : memref<240x256xbf16, #tpu.memory_space<vmem>>, vector<8x256xbf16>,
    %c184 = arith.constant 184 : index
    %c0_43 = arith.constant 0 : index
    %35 = vector.load %arg5[%c184, %c0_43] : memref<240x256xbf16, #tpu.memory_space<vmem>>, vector<8x256xbf16>
    tpu.vector_store %arg5[%c184, %c0_43], %1 {strides = array<i32>} : memref<240x256xbf16, #tpu.memory_space<vmem>>, vector<8x256xbf16>,
    %c192 = arith.constant 192 : index
    %c0_44 = arith.constant 0 : index
    %36 = vector.load %arg5[%c192, %c0_44] : memref<240x256xbf16, #tpu.memory_space<vmem>>, vector<48x256xbf16>
    tpu.vector_store %arg5[%c192, %c0_44], %2 {strides = array<i32>} : memref<240x256xbf16, #tpu.memory_space<vmem>>, vector<48x256xbf16>,
    %c0_45 = arith.constant 0 : index
    %c0_46 = arith.constant 0 : index
    %37 = vector.load %arg3[%c0_45, %c0_46] : memref<1x128xf32, #tpu.memory_space<vmem>>, vector<1x128xf32>
    %38 = vector.shape_cast %37 : vector<1x128xf32> to vector<1x128xf32>
    %39 = vector.broadcast %38 : vector<1x128xf32> to vector<192x128xf32>
    %c13 = arith.constant 13 : index
    %c0_47 = arith.constant 0 : index
    %40 = vector.load %arg5[%c13, %c0_47] : memref<240x256xbf16, #tpu.memory_space<vmem>>, vector<192x256xbf16>
    %c0_48 = arith.constant 0 : index
    %c0_49 = arith.constant 0 : index
    %c0_50 = arith.constant 0 : index
    %41 = vector.load %arg2[%c0_48, %c0_49, %c0_50] : memref<9x256x128xbf16, #tpu.memory_space<vmem>>, vector<1x256x128xbf16>
    %42 = vector.shape_cast %41 : vector<1x256x128xbf16> to vector<256x128xbf16>
    %cst_51 = arith.constant dense<0.000000e+00> : vector<192x128xf32>
    %43 = tpu.matmul %40, %42, %cst_51 {dimension_numbers = #tpu.dot_dimension_numbers<[1], [0], [0], [1], [0, 0, 1, 1], [], []>} : vector<192x256xbf16>, vector<256x128xbf16>, vector<192x128xf32> -> vector<192x128xf32>
    %44 = arith.addf %39, %43 : vector<192x128xf32>
    %c14 = arith.constant 14 : index
    %c0_52 = arith.constant 0 : index
    %45 = vector.load %arg5[%c14, %c0_52] : memref<240x256xbf16, #tpu.memory_space<vmem>>, vector<192x256xbf16>
    %c1_53 = arith.constant 1 : index
    %c0_54 = arith.constant 0 : index
    %c0_55 = arith.constant 0 : index
    %46 = vector.load %arg2[%c1_53, %c0_54, %c0_55] : memref<9x256x128xbf16, #tpu.memory_space<vmem>>, vector<1x256x128xbf16>
    %47 = vector.shape_cast %46 : vector<1x256x128xbf16> to vector<256x128xbf16>
    %cst_56 = arith.constant dense<0.000000e+00> : vector<192x128xf32>
    %48 = tpu.matmul %45, %47, %cst_56 {dimension_numbers = #tpu.dot_dimension_numbers<[1], [0], [0], [1], [0, 0, 1, 1], [], []>} : vector<192x256xbf16>, vector<256x128xbf16>, vector<192x128xf32> -> vector<192x128xf32>
    %49 = arith.addf %44, %48 : vector<192x128xf32>
    %c15 = arith.constant 15 : index
    %c0_57 = arith.constant 0 : index
    %50 = vector.load %arg5[%c15, %c0_57] : memref<240x256xbf16, #tpu.memory_space<vmem>>, vector<192x256xbf16>
    %c2_58 = arith.constant 2 : index
    %c0_59 = arith.constant 0 : index
    %c0_60 = arith.constant 0 : index
    %51 = vector.load %arg2[%c2_58, %c0_59, %c0_60] : memref<9x256x128xbf16, #tpu.memory_space<vmem>>, vector<1x256x128xbf16>
    %52 = vector.shape_cast %51 : vector<1x256x128xbf16> to vector<256x128xbf16>
    %cst_61 = arith.constant dense<0.000000e+00> : vector<192x128xf32>
    %53 = tpu.matmul %50, %52, %cst_61 {dimension_numbers = #tpu.dot_dimension_numbers<[1], [0], [0], [1], [0, 0, 1, 1], [], []>} : vector<192x256xbf16>, vector<256x128xbf16>, vector<192x128xf32> -> vector<192x128xf32>
    %54 = arith.addf %49, %53 : vector<192x128xf32>
    %c29 = arith.constant 29 : index
    %c0_62 = arith.constant 0 : index
    %55 = vector.load %arg5[%c29, %c0_62] : memref<240x256xbf16, #tpu.memory_space<vmem>>, vector<192x256xbf16>
    %c3_63 = arith.constant 3 : index
    %c0_64 = arith.constant 0 : index
    %c0_65 = arith.constant 0 : index
    %56 = vector.load %arg2[%c3_63, %c0_64, %c0_65] : memref<9x256x128xbf16, #tpu.memory_space<vmem>>, vector<1x256x128xbf16>
    %57 = vector.shape_cast %56 : vector<1x256x128xbf16> to vector<256x128xbf16>
    %cst_66 = arith.constant dense<0.000000e+00> : vector<192x128xf32>
    %58 = tpu.matmul %55, %57, %cst_66 {dimension_numbers = #tpu.dot_dimension_numbers<[1], [0], [0], [1], [0, 0, 1, 1], [], []>} : vector<192x256xbf16>, vector<256x128xbf16>, vector<192x128xf32> -> vector<192x128xf32>
    %59 = arith.addf %54, %58 : vector<192x128xf32>
    %c30 = arith.constant 30 : index
    %c0_67 = arith.constant 0 : index
    %60 = vector.load %arg5[%c30, %c0_67] : memref<240x256xbf16, #tpu.memory_space<vmem>>, vector<192x256xbf16>
    %c4_68 = arith.constant 4 : index
    %c0_69 = arith.constant 0 : index
    %c0_70 = arith.constant 0 : index
    %61 = vector.load %arg2[%c4_68, %c0_69, %c0_70] : memref<9x256x128xbf16, #tpu.memory_space<vmem>>, vector<1x256x128xbf16>
    %62 = vector.shape_cast %61 : vector<1x256x128xbf16> to vector<256x128xbf16>
    %cst_71 = arith.constant dense<0.000000e+00> : vector<192x128xf32>
    %63 = tpu.matmul %60, %62, %cst_71 {dimension_numbers = #tpu.dot_dimension_numbers<[1], [0], [0], [1], [0, 0, 1, 1], [], []>} : vector<192x256xbf16>, vector<256x128xbf16>, vector<192x128xf32> -> vector<192x128xf32>
    %64 = arith.addf %59, %63 : vector<192x128xf32>
    %c31 = arith.constant 31 : index
    %c0_72 = arith.constant 0 : index
    %65 = vector.load %arg5[%c31, %c0_72] : memref<240x256xbf16, #tpu.memory_space<vmem>>, vector<192x256xbf16>
    %c5_73 = arith.constant 5 : index
    %c0_74 = arith.constant 0 : index
    %c0_75 = arith.constant 0 : index
    %66 = vector.load %arg2[%c5_73, %c0_74, %c0_75] : memref<9x256x128xbf16, #tpu.memory_space<vmem>>, vector<1x256x128xbf16>
    %67 = vector.shape_cast %66 : vector<1x256x128xbf16> to vector<256x128xbf16>
    %cst_76 = arith.constant dense<0.000000e+00> : vector<192x128xf32>
    %68 = tpu.matmul %65, %67, %cst_76 {dimension_numbers = #tpu.dot_dimension_numbers<[1], [0], [0], [1], [0, 0, 1, 1], [], []>} : vector<192x256xbf16>, vector<256x128xbf16>, vector<192x128xf32> -> vector<192x128xf32>
    %69 = arith.addf %64, %68 : vector<192x128xf32>
    %c45 = arith.constant 45 : index
    %c0_77 = arith.constant 0 : index
    %70 = vector.load %arg5[%c45, %c0_77] : memref<240x256xbf16, #tpu.memory_space<vmem>>, vector<192x256xbf16>
    %c6_78 = arith.constant 6 : index
    %c0_79 = arith.constant 0 : index
    %c0_80 = arith.constant 0 : index
    %71 = vector.load %arg2[%c6_78, %c0_79, %c0_80] : memref<9x256x128xbf16, #tpu.memory_space<vmem>>, vector<1x256x128xbf16>
    %72 = vector.shape_cast %71 : vector<1x256x128xbf16> to vector<256x128xbf16>
    %cst_81 = arith.constant dense<0.000000e+00> : vector<192x128xf32>
    %73 = tpu.matmul %70, %72, %cst_81 {dimension_numbers = #tpu.dot_dimension_numbers<[1], [0], [0], [1], [0, 0, 1, 1], [], []>} : vector<192x256xbf16>, vector<256x128xbf16>, vector<192x128xf32> -> vector<192x128xf32>
    %74 = arith.addf %69, %73 : vector<192x128xf32>
    %c46 = arith.constant 46 : index
    %c0_82 = arith.constant 0 : index
    %75 = vector.load %arg5[%c46, %c0_82] : memref<240x256xbf16, #tpu.memory_space<vmem>>, vector<192x256xbf16>
    %c7_83 = arith.constant 7 : index
    %c0_84 = arith.constant 0 : index
    %c0_85 = arith.constant 0 : index
    %76 = vector.load %arg2[%c7_83, %c0_84, %c0_85] : memref<9x256x128xbf16, #tpu.memory_space<vmem>>, vector<1x256x128xbf16>
    %77 = vector.shape_cast %76 : vector<1x256x128xbf16> to vector<256x128xbf16>
    %cst_86 = arith.constant dense<0.000000e+00> : vector<192x128xf32>
    %78 = tpu.matmul %75, %77, %cst_86 {dimension_numbers = #tpu.dot_dimension_numbers<[1], [0], [0], [1], [0, 0, 1, 1], [], []>} : vector<192x256xbf16>, vector<256x128xbf16>, vector<192x128xf32> -> vector<192x128xf32>
    %79 = arith.addf %74, %78 : vector<192x128xf32>
    %c47 = arith.constant 47 : index
    %c0_87 = arith.constant 0 : index
    %80 = vector.load %arg5[%c47, %c0_87] : memref<240x256xbf16, #tpu.memory_space<vmem>>, vector<192x256xbf16>
    %c8 = arith.constant 8 : index
    %c0_88 = arith.constant 0 : index
    %c0_89 = arith.constant 0 : index
    %81 = vector.load %arg2[%c8, %c0_88, %c0_89] : memref<9x256x128xbf16, #tpu.memory_space<vmem>>, vector<1x256x128xbf16>
    %82 = vector.shape_cast %81 : vector<1x256x128xbf16> to vector<256x128xbf16>
    %cst_90 = arith.constant dense<0.000000e+00> : vector<192x128xf32>
    %83 = tpu.matmul %80, %82, %cst_90 {dimension_numbers = #tpu.dot_dimension_numbers<[1], [0], [0], [1], [0, 0, 1, 1], [], []>} : vector<192x256xbf16>, vector<256x128xbf16>, vector<192x128xf32> -> vector<192x128xf32>
    %84 = arith.addf %79, %83 : vector<192x128xf32>
    %cst_91 = arith.constant 0.00999999977 : f32
    %85 = vector.broadcast %cst_91 : f32 to vector<192x128xf32>
    %86 = arith.mulf %84, %85 : vector<192x128xf32>
    %87 = arith.maximumf %84, %86 : vector<192x128xf32>
    %88 = vector.extract_strided_slice %87 {offsets = [0, 0], sizes = [12, 128], strides = [1, 1]} : vector<192x128xf32> to vector<12x128xf32>
    %c0_92 = arith.constant 0 : index
    %c0_93 = arith.constant 0 : index
    %c0_94 = arith.constant 0 : index
    %c0_95 = arith.constant 0 : index
    %89 = vector.load %arg4[%c0_92, %c0_93, %c0_94, %c0_95] : memref<1x12x12x128xf32, #tpu.memory_space<vmem>>, vector<1x1x12x128xf32>
    %90 = vector.shape_cast %89 : vector<1x1x12x128xf32> to vector<12x128xf32>
    %91 = vector.shape_cast %88 : vector<12x128xf32> to vector<1x1x12x128xf32>
    tpu.vector_store %arg4[%c0_92, %c0_93, %c0_94, %c0_95], %91 {strides = array<i32>} : memref<1x12x12x128xf32, #tpu.memory_space<vmem>>, vector<1x1x12x128xf32>,
    %92 = vector.extract_strided_slice %87 {offsets = [16, 0], sizes = [12, 128], strides = [1, 1]} : vector<192x128xf32> to vector<12x128xf32>
    %c0_96 = arith.constant 0 : index
    %c1_97 = arith.constant 1 : index
    %c0_98 = arith.constant 0 : index
    %c0_99 = arith.constant 0 : index
    %93 = vector.load %arg4[%c0_96, %c1_97, %c0_98, %c0_99] : memref<1x12x12x128xf32, #tpu.memory_space<vmem>>, vector<1x1x12x128xf32>
    %94 = vector.shape_cast %93 : vector<1x1x12x128xf32> to vector<12x128xf32>
    %95 = vector.shape_cast %92 : vector<12x128xf32> to vector<1x1x12x128xf32>
    tpu.vector_store %arg4[%c0_96, %c1_97, %c0_98, %c0_99], %95 {strides = array<i32>} : memref<1x12x12x128xf32, #tpu.memory_space<vmem>>, vector<1x1x12x128xf32>,
    %96 = vector.extract_strided_slice %87 {offsets = [32, 0], sizes = [12, 128], strides = [1, 1]} : vector<192x128xf32> to vector<12x128xf32>
    %c0_100 = arith.constant 0 : index
    %c2_101 = arith.constant 2 : index
    %c0_102 = arith.constant 0 : index
    %c0_103 = arith.constant 0 : index
    %97 = vector.load %arg4[%c0_100, %c2_101, %c0_102, %c0_103] : memref<1x12x12x128xf32, #tpu.memory_space<vmem>>, vector<1x1x12x128xf32>
    %98 = vector.shape_cast %97 : vector<1x1x12x128xf32> to vector<12x128xf32>
    %99 = vector.shape_cast %96 : vector<12x128xf32> to vector<1x1x12x128xf32>
    tpu.vector_store %arg4[%c0_100, %c2_101, %c0_102, %c0_103], %99 {strides = array<i32>} : memref<1x12x12x128xf32, #tpu.memory_space<vmem>>, vector<1x1x12x128xf32>,
    %100 = vector.extract_strided_slice %87 {offsets = [48, 0], sizes = [12, 128], strides = [1, 1]} : vector<192x128xf32> to vector<12x128xf32>
    %c0_104 = arith.constant 0 : index
    %c3_105 = arith.constant 3 : index
    %c0_106 = arith.constant 0 : index
    %c0_107 = arith.constant 0 : index
    %101 = vector.load %arg4[%c0_104, %c3_105, %c0_106, %c0_107] : memref<1x12x12x128xf32, #tpu.memory_space<vmem>>, vector<1x1x12x128xf32>
    %102 = vector.shape_cast %101 : vector<1x1x12x128xf32> to vector<12x128xf32>
    %103 = vector.shape_cast %100 : vector<12x128xf32> to vector<1x1x12x128xf32>
    tpu.vector_store %arg4[%c0_104, %c3_105, %c0_106, %c0_107], %103 {strides = array<i32>} : memref<1x12x12x128xf32, #tpu.memory_space<vmem>>, vector<1x1x12x128xf32>,
    %104 = vector.extract_strided_slice %87 {offsets = [64, 0], sizes = [12, 128], strides = [1, 1]} : vector<192x128xf32> to vector<12x128xf32>
    %c0_108 = arith.constant 0 : index
    %c4_109 = arith.constant 4 : index
    %c0_110 = arith.constant 0 : index
    %c0_111 = arith.constant 0 : index
    %105 = vector.load %arg4[%c0_108, %c4_109, %c0_110, %c0_111] : memref<1x12x12x128xf32, #tpu.memory_space<vmem>>, vector<1x1x12x128xf32>
    %106 = vector.shape_cast %105 : vector<1x1x12x128xf32> to vector<12x128xf32>
    %107 = vector.shape_cast %104 : vector<12x128xf32> to vector<1x1x12x128xf32>
    tpu.vector_store %arg4[%c0_108, %c4_109, %c0_110, %c0_111], %107 {strides = array<i32>} : memref<1x12x12x128xf32, #tpu.memory_space<vmem>>, vector<1x1x12x128xf32>,
    %108 = vector.extract_strided_slice %87 {offsets = [80, 0], sizes = [12, 128], strides = [1, 1]} : vector<192x128xf32> to vector<12x128xf32>
    %c0_112 = arith.constant 0 : index
    %c5_113 = arith.constant 5 : index
    %c0_114 = arith.constant 0 : index
    %c0_115 = arith.constant 0 : index
    %109 = vector.load %arg4[%c0_112, %c5_113, %c0_114, %c0_115] : memref<1x12x12x128xf32, #tpu.memory_space<vmem>>, vector<1x1x12x128xf32>
    %110 = vector.shape_cast %109 : vector<1x1x12x128xf32> to vector<12x128xf32>
    %111 = vector.shape_cast %108 : vector<12x128xf32> to vector<1x1x12x128xf32>
    tpu.vector_store %arg4[%c0_112, %c5_113, %c0_114, %c0_115], %111 {strides = array<i32>} : memref<1x12x12x128xf32, #tpu.memory_space<vmem>>, vector<1x1x12x128xf32>,
    %112 = vector.extract_strided_slice %87 {offsets = [96, 0], sizes = [12, 128], strides = [1, 1]} : vector<192x128xf32> to vector<12x128xf32>
    %c0_116 = arith.constant 0 : index
    %c6_117 = arith.constant 6 : index
    %c0_118 = arith.constant 0 : index
    %c0_119 = arith.constant 0 : index
    %113 = vector.load %arg4[%c0_116, %c6_117, %c0_118, %c0_119] : memref<1x12x12x128xf32, #tpu.memory_space<vmem>>, vector<1x1x12x128xf32>
    %114 = vector.shape_cast %113 : vector<1x1x12x128xf32> to vector<12x128xf32>
    %115 = vector.shape_cast %112 : vector<12x128xf32> to vector<1x1x12x128xf32>
    tpu.vector_store %arg4[%c0_116, %c6_117, %c0_118, %c0_119], %115 {strides = array<i32>} : memref<1x12x12x128xf32, #tpu.memory_space<vmem>>, vector<1x1x12x128xf32>,
    %116 = vector.extract_strided_slice %87 {offsets = [112, 0], sizes = [12, 128], strides = [1, 1]} : vector<192x128xf32> to vector<12x128xf32>
    %c0_120 = arith.constant 0 : index
    %c7_121 = arith.constant 7 : index
    %c0_122 = arith.constant 0 : index
    %c0_123 = arith.constant 0 : index
    %117 = vector.load %arg4[%c0_120, %c7_121, %c0_122, %c0_123] : memref<1x12x12x128xf32, #tpu.memory_space<vmem>>, vector<1x1x12x128xf32>
    %118 = vector.shape_cast %117 : vector<1x1x12x128xf32> to vector<12x128xf32>
    %119 = vector.shape_cast %116 : vector<12x128xf32> to vector<1x1x12x128xf32>
    tpu.vector_store %arg4[%c0_120, %c7_121, %c0_122, %c0_123], %119 {strides = array<i32>} : memref<1x12x12x128xf32, #tpu.memory_space<vmem>>, vector<1x1x12x128xf32>,
    %120 = vector.extract_strided_slice %87 {offsets = [128, 0], sizes = [12, 128], strides = [1, 1]} : vector<192x128xf32> to vector<12x128xf32>
    %c0_124 = arith.constant 0 : index
    %c8_125 = arith.constant 8 : index
    %c0_126 = arith.constant 0 : index
    %c0_127 = arith.constant 0 : index
    %121 = vector.load %arg4[%c0_124, %c8_125, %c0_126, %c0_127] : memref<1x12x12x128xf32, #tpu.memory_space<vmem>>, vector<1x1x12x128xf32>
    %122 = vector.shape_cast %121 : vector<1x1x12x128xf32> to vector<12x128xf32>
    %123 = vector.shape_cast %120 : vector<12x128xf32> to vector<1x1x12x128xf32>
    tpu.vector_store %arg4[%c0_124, %c8_125, %c0_126, %c0_127], %123 {strides = array<i32>} : memref<1x12x12x128xf32, #tpu.memory_space<vmem>>, vector<1x1x12x128xf32>,
    %124 = vector.extract_strided_slice %87 {offsets = [144, 0], sizes = [12, 128], strides = [1, 1]} : vector<192x128xf32> to vector<12x128xf32>
    %c0_128 = arith.constant 0 : index
    %c9 = arith.constant 9 : index
    %c0_129 = arith.constant 0 : index
    %c0_130 = arith.constant 0 : index
    %125 = vector.load %arg4[%c0_128, %c9, %c0_129, %c0_130] : memref<1x12x12x128xf32, #tpu.memory_space<vmem>>, vector<1x1x12x128xf32>
    %126 = vector.shape_cast %125 : vector<1x1x12x128xf32> to vector<12x128xf32>
    %127 = vector.shape_cast %124 : vector<12x128xf32> to vector<1x1x12x128xf32>
    tpu.vector_store %arg4[%c0_128, %c9, %c0_129, %c0_130], %127 {strides = array<i32>} : memref<1x12x12x128xf32, #tpu.memory_space<vmem>>, vector<1x1x12x128xf32>,
    %128 = vector.extract_strided_slice %87 {offsets = [160, 0], sizes = [12, 128], strides = [1, 1]} : vector<192x128xf32> to vector<12x128xf32>
    %c0_131 = arith.constant 0 : index
    %c10 = arith.constant 10 : index
    %c0_132 = arith.constant 0 : index
    %c0_133 = arith.constant 0 : index
    %129 = vector.load %arg4[%c0_131, %c10, %c0_132, %c0_133] : memref<1x12x12x128xf32, #tpu.memory_space<vmem>>, vector<1x1x12x128xf32>
    %130 = vector.shape_cast %129 : vector<1x1x12x128xf32> to vector<12x128xf32>
    %131 = vector.shape_cast %128 : vector<12x128xf32> to vector<1x1x12x128xf32>
    tpu.vector_store %arg4[%c0_131, %c10, %c0_132, %c0_133], %131 {strides = array<i32>} : memref<1x12x12x128xf32, #tpu.memory_space<vmem>>, vector<1x1x12x128xf32>,
    %132 = vector.extract_strided_slice %87 {offsets = [176, 0], sizes = [12, 128], strides = [1, 1]} : vector<192x128xf32> to vector<12x128xf32>
    %c0_134 = arith.constant 0 : index
    %c11 = arith.constant 11 : index
    %c0_135 = arith.constant 0 : index
    %c0_136 = arith.constant 0 : index
    %133 = vector.load %arg4[%c0_134, %c11, %c0_135, %c0_136] : memref<1x12x12x128xf32, #tpu.memory_space<vmem>>, vector<1x1x12x128xf32>
    %134 = vector.shape_cast %133 : vector<1x1x12x128xf32> to vector<12x128xf32>
    %135 = vector.shape_cast %132 : vector<12x128xf32> to vector<1x1x12x128xf32>
    tpu.vector_store %arg4[%c0_134, %c11, %c0_135, %c0_136], %135 {strides = array<i32>} : memref<1x12x12x128xf32, #tpu.memory_space<vmem>>, vector<1x1x12x128xf32>,
    return
  }
  func.func @transform_0(%arg0: i32) -> (i32, i32, i32, i32) {
    %c0_i32 = arith.constant 0 : i32
    %c0_i32_0 = arith.constant 0 : i32
    %c0_i32_1 = arith.constant 0 : i32
    %c0_i32_2 = arith.constant 0 : i32
    return %arg0, %c0_i32, %c0_i32_0, %c0_i32_1 : i32, i32, i32, i32
  }
  func.func @transform_1(%arg0: i32) -> (i32, i32, i32) {
    %c0_i32 = arith.constant 0 : i32
    %c0_i32_0 = arith.constant 0 : i32
    %c0_i32_1 = arith.constant 0 : i32
    %c0_i32_2 = arith.constant 0 : i32
    return %c0_i32, %c0_i32_0, %c0_i32_1 : i32, i32, i32
  }
  func.func @transform_2(%arg0: i32) -> (i32, i32) {
    %c0_i32 = arith.constant 0 : i32
    %c0_i32_0 = arith.constant 0 : i32
    %c0_i32_1 = arith.constant 0 : i32
    return %c0_i32, %c0_i32_0 : i32, i32
  }
  func.func @transform_3(%arg0: i32) -> (i32, i32, i32, i32) {
    %c0_i32 = arith.constant 0 : i32
    %c0_i32_0 = arith.constant 0 : i32
    %c0_i32_1 = arith.constant 0 : i32
    %c0_i32_2 = arith.constant 0 : i32
    return %arg0, %c0_i32, %c0_i32_0, %c0_i32_1 : i32, i32, i32, i32
  }
}

</mosaic_0001>

<llo_original>
// kernel: conv_leaky_relu.1
$region0: #{conv_leaky_relu.1}
  #allocation0 [shape = 'u32[]', space=smem, size = 0x4, offset = 0x4, fixed_abs, tag = 'smem constant byte address 0x4 - core index']
  #allocation1 [shape = 'u32[144,128]{1,0:T(1,128)}', space=vmem, size = 0x12000, scoped, tag = 'internal scratch']
  #allocation2 [shape = 'bf16[240,256]{1,0:T(16,128)(2,1)}', space=vmem, size = 0x1e000, scoped, tag = 'scratch operand']
  %s0 = inlined_call_operand.vmem [shape: bf16[2,8,8,256], index: 0, kind: input, shape index: {}]
  %s1 = inlined_call_operand.vmem [shape: bf16[9,256,128], index: 1, kind: input, shape index: {}]
  %s2 = inlined_call_operand.vmem [shape: f32[1,128], index: 2, kind: input, shape index: {}]
  %s3 = inlined_call_operand.vmem [shape: f32[2,12,12,128], index: 3, kind: output, shape index: {}]
  %s4 = sld [smem:[#allocation0]]
  $region45: #{conv_leaky_relu.1} parent=0
    _
  %s6 = ssub.s32 1, %s4
  %s7 = scalar_select 0, %s6, %s4
  loop: start=0, step=1, limit=4
  $region2: #{conv_leaky_relu.1} parent=0 // loop_pre_header
    _
  $region3: #{conv_leaky_relu.1} parent=0 // loop_header
    %s9 = sphi 0, %s13
    %p10 = scmp.ge.s32.totalorder %s9, 4
    %s19 = sphi 0, %s21
    %s22 = sphi 0, %s19
    %s23 = sphi 0, %s22
    %s39 = sphi 0, %s23
    %s43 = sphi 0, %s43
    %s45 = sphi 0, %s43
    %s46 = sphi 0, %s45
    %s60 = sphi 0, %s46
    %s64 = sphi 0, %s64
    %s66 = sphi 0, %s64
    %s67 = sphi 0, %s66
    %s81 = sphi 0, %s67
    %s87 = sphi 0, %s89
    %s90 = sphi 0, %s87
    %s91 = sphi 0, %s90
    %s107 = sphi 0, %s91
  $region4: #{conv_leaky_relu.1} parent=0 // loop_header_branch
    %12 = sbr.rel (%p10) target = $region8
  $region5: #{conv_leaky_relu.1} parent=0 // loop_body
    %s14 = ssub.s32 %s9, 1
    %s15 = ssub.s32 %s9, 2
    %s16 = sadd.s32 %s9, 1
    %s17 = ssub.s32 %s9, %s16
    %p18 = scmp.eq.s32.totalorder %s17, 0
    %s20 = sadd.s32 %s19, 1
    %s21 = scalar_select %p18, %s19, %s20
    %p24 = pneg %p18
    %p25 = scmp.eq.s32.totalorder %s9, 1
    %p26 = por %p24, %p25
    %p27 = scmp.ne.s32.totalorder %s19, %s22
    %p28 = scmp.eq.s32.totalorder %s9, 0
    %p29 = por %p27, %p28
    %p30 = scmp.ne.s32.totalorder %s19, %s22
    %p31 = scmp.eq.s32.totalorder %s14, 1
    %p32 = por %p30, %p31
    %p33 = scmp.ne.s32.totalorder %s22, %s23
    %p34 = scmp.eq.s32.totalorder %s14, 0
    %p35 = por %p33, %p34
    %p36 = scmp.ne.s32.totalorder %s22, %s23
    %p37 = scmp.eq.s32.totalorder %s15, 1
    %p38 = por %p36, %p37
    %p40 = scmp.ne.s32.totalorder %s23, %s39
    %p41 = scmp.eq.s32.totalorder %s15, 0
    %p42 = por %p40, %p41
    %s44 = sadd.s32 %s43, 1
    %p47 = scmp.eq.s32.totalorder %s9, 1
    %p48 = scmp.ne.s32.totalorder %s43, %s45
    %p49 = scmp.eq.s32.totalorder %s9, 0
    %p50 = por %p48, %p49
    %p51 = scmp.ne.s32.totalorder %s43, %s45
    %p52 = scmp.eq.s32.totalorder %s14, 1
    %p53 = por %p51, %p52
    %p54 = scmp.ne.s32.totalorder %s45, %s46
    %p55 = scmp.eq.s32.totalorder %s14, 0
    %p56 = por %p54, %p55
    %p57 = scmp.ne.s32.totalorder %s45, %s46
    %p58 = scmp.eq.s32.totalorder %s15, 1
    %p59 = por %p57, %p58
    %p61 = scmp.ne.s32.totalorder %s46, %s60
    %p62 = scmp.eq.s32.totalorder %s15, 0
    %p63 = por %p61, %p62
    %s65 = sadd.s32 %s64, 1
    %p68 = scmp.eq.s32.totalorder %s9, 1
    %p69 = scmp.ne.s32.totalorder %s64, %s66
    %p70 = scmp.eq.s32.totalorder %s9, 0
    %p71 = por %p69, %p70
    %p72 = scmp.ne.s32.totalorder %s64, %s66
    %p73 = scmp.eq.s32.totalorder %s14, 1
    %p74 = por %p72, %p73
    %p75 = scmp.ne.s32.totalorder %s66, %s67
    %p76 = scmp.eq.s32.totalorder %s14, 0
    %p77 = por %p75, %p76
    %p78 = scmp.ne.s32.totalorder %s66, %s67
    %p79 = scmp.eq.s32.totalorder %s15, 1
    %p80 = por %p78, %p79
    %p82 = scmp.ne.s32.totalorder %s67, %s81
    %p83 = scmp.eq.s32.totalorder %s15, 0
    %p84 = por %p82, %p83
    %s85 = ssub.s32 %s9, %s16
    %p86 = scmp.eq.s32.totalorder %s85, 0
    %s88 = sadd.s32 %s87, 1
    %s89 = scalar_select %p86, %s87, %s88
    %p92 = pneg %p86
    %p93 = scmp.eq.s32.totalorder %s9, 1
    %p94 = por %p92, %p93
    %p95 = scmp.ne.s32.totalorder %s87, %s90
    %p96 = scmp.eq.s32.totalorder %s9, 0
    %p97 = por %p95, %p96
    %p98 = scmp.ne.s32.totalorder %s87, %s90
    %p99 = scmp.eq.s32.totalorder %s14, 1
    %p100 = por %p98, %p99
    %p101 = scmp.ne.s32.totalorder %s90, %s91
    %p102 = scmp.eq.s32.totalorder %s14, 0
    %p103 = por %p101, %p102
    %p104 = scmp.ne.s32.totalorder %s90, %s91
    %p105 = scmp.eq.s32.totalorder %s15, 1
    %p106 = por %p104, %p105
    %p108 = scmp.ne.s32.totalorder %s91, %s107
    %p109 = scmp.eq.s32.totalorder %s15, 0
    %p110 = por %p108, %p109
    %p111 = scmp.le.s32.totalorder 1, %s9
    %p112 = scmp.lt.s32.totalorder %s9, 3
    %p113 = pnand %p111, %p112
    %p114 = pneg %p113
    // Predicated region
    $region9: #{conv_leaky_relu.1} parent=5 // pred_check
      _
    $region10: #{conv_leaky_relu.1} parent=5 // pred_check_branch
      %116 = sbr.rel (%p113) target = $region12
    $region11: #{conv_leaky_relu.1} parent=5 // pred_region
      %s117 = ssub.s32 %s9, 1
      // Predicated region
      $region13: #{conv_leaky_relu.1} parent=11 // pred_check
        %p118 = pneg %p56
      $region14: #{conv_leaky_relu.1} parent=11 // pred_check_branch
        %120 = sbr.rel (%p118) target = $region16
      $region15: #{conv_leaky_relu.1} parent=11 // pred_region
        _
      $region16: #{conv_leaky_relu.1} parent=11 // pred_fallthru
        _
      // Predicated region
      $region17: #{conv_leaky_relu.1} parent=11 // pred_check
        %p121 = pneg %p77
      $region18: #{conv_leaky_relu.1} parent=11 // pred_check_branch
        %123 = sbr.rel (%p121) target = $region20
      $region19: #{conv_leaky_relu.1} parent=11 // pred_region
        _
      $region20: #{conv_leaky_relu.1} parent=11 // pred_fallthru
        _
    $region12: #{conv_leaky_relu.1} parent=5 // pred_fallthru
      _
    %p124 = scmp.lt.s32.totalorder %s9, 2
    // Predicated region
    $region21: #{conv_leaky_relu.1} parent=5 // pred_check
      %p125 = pneg %p124
    $region22: #{conv_leaky_relu.1} parent=5 // pred_check_branch
      %127 = sbr.rel (%p125) target = $region24
    $region23: #{conv_leaky_relu.1} parent=5 // pred_region
      // Predicated region
      $region25: #{conv_leaky_relu.1} parent=23 // pred_check
        %p128 = pneg %p29
      $region26: #{conv_leaky_relu.1} parent=23 // pred_check_branch
        %130 = sbr.rel (%p128) target = $region28
      $region27: #{conv_leaky_relu.1} parent=23 // pred_region
        %p131 = scmp.lt.s32.totalorder %s9, 1
        %s132 = scalar_select %p131, %s9, 1
        %s133 = smul.addr %s132, 16
        %s134 = smul.addr %s133, 4
        %s135 = scalar_lea.vmem %s0, %s134
      $region28: #{conv_leaky_relu.1} parent=23 // pred_fallthru
        _
    $region24: #{conv_leaky_relu.1} parent=5 // pred_fallthru
      _
    %p136 = scmp.le.s32.totalorder 1, %s9
    %p137 = scmp.lt.s32.totalorder %s9, 3
    %p138 = pnand %p136, %p137
    %p139 = pneg %p138
    // Predicated region
    $region29: #{conv_leaky_relu.1} parent=5 // pred_check
      _
    $region30: #{conv_leaky_relu.1} parent=5 // pred_check_branch
      %141 = sbr.rel (%p138) target = $region32
    $region31: #{conv_leaky_relu.1} parent=5 // pred_region
      %s142 = ssub.s32 %s9, 1
      %p143 = scmp.lt.s32.totalorder %s14, 1
      %s144 = scalar_select %p143, %s14, 1
      %s145 = smul.addr %s144, 16
      %s146 = smul.addr %s145, 4
      %s147 = scalar_lea.vmem %s0, %s146
      %p148 = pneg %p35
      %p149 = pneg %p32
      %p150 = pneg %p56
      %p151 = pneg %p53
      %p152 = pneg %p77
      %p153 = pneg %p74
      %p154 = pneg %p103
      %p155 = pneg %p100
      %p156 = scmp.lt.s32.totalorder %s14, 1
      %s157 = scalar_select %p156, %s14, 1
      %s158 = smul.addr %s157, 24
      %s159 = smul.addr %s158, 8
      %s160 = scalar_lea.vmem %s3, %s159
      %p161 = scmp.lt.s32.totalorder %s14, 1
      %s162 = scalar_select %p161, %s14, 1
      %s163 = smul.addr %s162, 16
      %s164 = smul.addr %s163, 4
      %s165 = scalar_lea.vmem %s0, %s164
      %p166 = scmp.lt.s32.totalorder %s14, 1
      %s167 = scalar_select %p166, %s14, 1
      %s168 = smul.addr %s167, 24
      %s169 = smul.addr %s168, 8
      %s170 = scalar_lea.vmem %s3, %s169
      %172 = vst [vmem:[#allocation2] sm:$0xff] 0
      %173 = vst [vmem:[#allocation2 + $0x8] sm:$0xff] 0
      %174 = vst [vmem:[#allocation2 + $0x10] sm:$0xff] 0
      %175 = vst [vmem:[#allocation2 + $0x18] sm:$0xff] 0
      %176 = vst [vmem:[#allocation2 + $0x20] sm:$0xff] 0
      %177 = vst [vmem:[#allocation2 + $0x28] sm:$0xff] 0
      %178 = vst [vmem:[#allocation2 + $0x30] sm:$0xff] 0
      %179 = vst [vmem:[#allocation2 + $0x38] sm:$0xff] 0
      %v180 = vld [vmem:[%s165] sm:$0xff]
      %v182 = vunpack.c.l.b16 %v180
      %v183 = vunpack.c.h.b16 %v180
      %v184 = vpack.c.b16 %v182, %v182
      %v185 = vpack.c.b16 %v183, %v183
      %188 = vst [vmem:[#allocation2 + $0x40] sm:$0xf] %v184
      %189 = vst [vmem:[#allocation2 + $0x48] sm:$0xf] %v185
      %190 = vst [vmem:[#allocation2 + $0x40] sm:$0xf0] 0
      %191 = vst [vmem:[#allocation2 + $0x48] sm:$0xf0] 0
      %s192 = scalar_lea.vmem %s165, 8
      %v193 = vld [vmem:[%s192] sm:$0xff]
      %v195 = vunpack.c.l.b16 %v193
      %v196 = vunpack.c.h.b16 %v193
      %v197 = vpack.c.b16 %v195, %v195
      %v198 = vpack.c.b16 %v196, %v196
      %201 = vst [vmem:[#allocation2 + $0x50] sm:$0xf] %v197
      %202 = vst [vmem:[#allocation2 + $0x58] sm:$0xf] %v198
      %203 = vst [vmem:[#allocation2 + $0x50] sm:$0xf0] 0
      %204 = vst [vmem:[#allocation2 + $0x58] sm:$0xf0] 0
      %s205 = scalar_lea.vmem %s165, 16
      %v206 = vld [vmem:[%s205] sm:$0xff]
      %v208 = vunpack.c.l.b16 %v206
      %v209 = vunpack.c.h.b16 %v206
      %v210 = vpack.c.b16 %v208, %v208
      %v211 = vpack.c.b16 %v209, %v209
      %214 = vst [vmem:[#allocation2 + $0x60] sm:$0xf] %v210
      %215 = vst [vmem:[#allocation2 + $0x68] sm:$0xf] %v211
      %216 = vst [vmem:[#allocation2 + $0x60] sm:$0xf0] 0
      %217 = vst [vmem:[#allocation2 + $0x68] sm:$0xf0] 0
      %s218 = scalar_lea.vmem %s165, 24
      %v219 = vld [vmem:[%s218] sm:$0xff]
      %v221 = vunpack.c.l.b16 %v219
      %v222 = vunpack.c.h.b16 %v219
      %v223 = vpack.c.b16 %v221, %v221
      %v224 = vpack.c.b16 %v222, %v222
      %227 = vst [vmem:[#allocation2 + $0x70] sm:$0xf] %v223
      %228 = vst [vmem:[#allocation2 + $0x78] sm:$0xf] %v224
      %229 = vst [vmem:[#allocation2 + $0x70] sm:$0xf0] 0
      %230 = vst [vmem:[#allocation2 + $0x78] sm:$0xf0] 0
      %s231 = scalar_lea.vmem %s165, 32
      %v232 = vld [vmem:[%s231] sm:$0xff]
      %v234 = vunpack.c.l.b16 %v232
      %v235 = vunpack.c.h.b16 %v232
      %v236 = vpack.c.b16 %v234, %v234
      %v237 = vpack.c.b16 %v235, %v235
      %240 = vst [vmem:[#allocation2 + $0x80] sm:$0xf] %v236
      %241 = vst [vmem:[#allocation2 + $0x88] sm:$0xf] %v237
      %242 = vst [vmem:[#allocation2 + $0x80] sm:$0xf0] 0
      %243 = vst [vmem:[#allocation2 + $0x88] sm:$0xf0] 0
      %s244 = scalar_lea.vmem %s165, 40
      %v245 = vld [vmem:[%s244] sm:$0xff]
      %v247 = vunpack.c.l.b16 %v245
      %v248 = vunpack.c.h.b16 %v245
      %v249 = vpack.c.b16 %v247, %v247
      %v250 = vpack.c.b16 %v248, %v248
      %253 = vst [vmem:[#allocation2 + $0x90] sm:$0xf] %v249
      %254 = vst [vmem:[#allocation2 + $0x98] sm:$0xf] %v250
      %255 = vst [vmem:[#allocation2 + $0x90] sm:$0xf0] 0
      %256 = vst [vmem:[#allocation2 + $0x98] sm:$0xf0] 0
      %s257 = scalar_lea.vmem %s165, 48
      %v258 = vld [vmem:[%s257] sm:$0xff]
      %v260 = vunpack.c.l.b16 %v258
      %v261 = vunpack.c.h.b16 %v258
      %v262 = vpack.c.b16 %v260, %v260
      %v263 = vpack.c.b16 %v261, %v261
      %266 = vst [vmem:[#allocation2 + $0xa0] sm:$0xf] %v262
      %267 = vst [vmem:[#allocation2 + $0xa8] sm:$0xf] %v263
      %268 = vst [vmem:[#allocation2 + $0xa0] sm:$0xf0] 0
      %269 = vst [vmem:[#allocation2 + $0xa8] sm:$0xf0] 0
      %s270 = scalar_lea.vmem %s165, 56
      %v271 = vld [vmem:[%s270] sm:$0xff]
      %v273 = vunpack.c.l.b16 %v271
      %v274 = vunpack.c.h.b16 %v271
      %v275 = vpack.c.b16 %v273, %v273
      %v276 = vpack.c.b16 %v274, %v274
      %279 = vst [vmem:[#allocation2 + $0xb0] sm:$0xf] %v275
      %280 = vst [vmem:[#allocation2 + $0xb8] sm:$0xf] %v276
      %281 = vst [vmem:[#allocation2 + $0xb0] sm:$0xf0] 0
      %282 = vst [vmem:[#allocation2 + $0xb8] sm:$0xf0] 0
      %283 = vst [vmem:[#allocation2 + $0xc0] sm:$0xff] 0
      %284 = vst [vmem:[#allocation2 + $0xc8] sm:$0xff] 0
      %285 = vst [vmem:[#allocation2 + $0xd0] sm:$0xff] 0
      %286 = vst [vmem:[#allocation2 + $0xd8] sm:$0xff] 0
      %287 = vst [vmem:[#allocation2 + $0xe0] sm:$0xff] 0
      %288 = vst [vmem:[#allocation2 + $0xe8] sm:$0xff] 0
      %v289 = vld [vmem:[%s2] sm:$0x1]
      %v291 = vlaneseq
      %v292 = vshrl.u32 %v291, 7
      %v293 = vsub.s32 0, %v292
      %v294 = vrot.slane %v289, %v293
      %v296 = vld [vmem:[#allocation2] sm:$0xc0]
      %v297 = vld [vmem:[#allocation2 + $0x8] sm:$0xc0]
      %v298 = vld [vmem:[#allocation2 + $0x10] sm:$0xff]
      %v299 = vld [vmem:[#allocation2 + $0x18] sm:$0xff]
      %v300 = vld [vmem:[#allocation2 + $0x20] sm:$0xff]
      %v301 = vld [vmem:[#allocation2 + $0x28] sm:$0xff]
      %v302 = vld [vmem:[#allocation2 + $0x30] sm:$0xff]
      %v303 = vld [vmem:[#allocation2 + $0x38] sm:$0xff]
      %v304 = vld [vmem:[#allocation2 + $0x40] sm:$0xff]
      %v305 = vld [vmem:[#allocation2 + $0x48] sm:$0xff]
      %v306 = vld [vmem:[#allocation2 + $0x50] sm:$0xff]
      %v307 = vld [vmem:[#allocation2 + $0x58] sm:$0xff]
      %v308 = vld [vmem:[#allocation2 + $0x60] sm:$0xff]
      %v309 = vld [vmem:[#allocation2 + $0x68] sm:$0xff]
      %v310 = vld [vmem:[#allocation2 + $0x70] sm:$0xff]
      %v311 = vld [vmem:[#allocation2 + $0x78] sm:$0xff]
      %v312 = vld [vmem:[#allocation2 + $0x80] sm:$0xff]
      %v313 = vld [vmem:[#allocation2 + $0x88] sm:$0xff]
      %v314 = vld [vmem:[#allocation2 + $0x90] sm:$0xff]
      %v315 = vld [vmem:[#allocation2 + $0x98] sm:$0xff]
      %v316 = vld [vmem:[#allocation2 + $0xa0] sm:$0xff]
      %v317 = vld [vmem:[#allocation2 + $0xa8] sm:$0xff]
      %v318 = vld [vmem:[#allocation2 + $0xb0] sm:$0xff]
      %v319 = vld [vmem:[#allocation2 + $0xb8] sm:$0xff]
      %v320 = vld [vmem:[#allocation2 + $0xc0] sm:$0x7f]
      %v321 = vld [vmem:[#allocation2 + $0xc8] sm:$0x7f]
      %v322 = vld [vmem:[%s1] sm:$0xf]
      %v323 = vld [vmem:[%s1 + $0x4] sm:$0xf]
      %v324 = vld [vmem:[%s1 + $0x8] sm:$0xf]
      %v325 = vld [vmem:[%s1 + $0xc] sm:$0xf]
      %v326 = vld [vmem:[%s1 + $0x10] sm:$0xf]
      %v327 = vld [vmem:[%s1 + $0x14] sm:$0xf]
      %v328 = vld [vmem:[%s1 + $0x18] sm:$0xf]
      %v329 = vld [vmem:[%s1 + $0x1c] sm:$0xf]
      %v330 = vld [vmem:[%s1 + $0x20] sm:$0xf]
      %v331 = vld [vmem:[%s1 + $0x24] sm:$0xf]
      %v332 = vld [vmem:[%s1 + $0x28] sm:$0xf]
      %v333 = vld [vmem:[%s1 + $0x2c] sm:$0xf]
      %v334 = vld [vmem:[%s1 + $0x30] sm:$0xf]
      %v335 = vld [vmem:[%s1 + $0x34] sm:$0xf]
      %v336 = vld [vmem:[%s1 + $0x38] sm:$0xf]
      %v337 = vld [vmem:[%s1 + $0x3c] sm:$0xf]
      %v338 = vld [vmem:[%s1 + $0x40] sm:$0xf]
      %v339 = vld [vmem:[%s1 + $0x44] sm:$0xf]
      %v340 = vld [vmem:[%s1 + $0x48] sm:$0xf]
      %v341 = vld [vmem:[%s1 + $0x4c] sm:$0xf]
      %v342 = vld [vmem:[%s1 + $0x50] sm:$0xf]
      %v343 = vld [vmem:[%s1 + $0x54] sm:$0xf]
      %v344 = vld [vmem:[%s1 + $0x58] sm:$0xf]
      %v345 = vld [vmem:[%s1 + $0x5c] sm:$0xf]
      %v346 = vld [vmem:[%s1 + $0x60] sm:$0xf]
      %v347 = vld [vmem:[%s1 + $0x64] sm:$0xf]
      %v348 = vld [vmem:[%s1 + $0x68] sm:$0xf]
      %v349 = vld [vmem:[%s1 + $0x6c] sm:$0xf]
      %v350 = vld [vmem:[%s1 + $0x70] sm:$0xf]
      %v351 = vld [vmem:[%s1 + $0x74] sm:$0xf]
      %v352 = vld [vmem:[%s1 + $0x78] sm:$0xf]
      %v353 = vld [vmem:[%s1 + $0x7c] sm:$0xf]
      %vm354 = vsmask.f32 1280
      %v356 = vshrl.u32 %v296, 16
      %v358 = vrot.slane %v356, 6
      %v359 = vshll.u32 %v296, 16
      %v361 = vrot.slane %v359, 7
      %v362 = vor.u32 %v358, %v361
      %v364 = vshrl.u32 %v298, 16
      %v366 = vrot.slane %v364, 6
      %v367 = vshll.u32 %v298, 16
      %v369 = vrot.slane %v367, 7
      %v370 = vor.u32 %v366, %v369
      %v371 = vsel %vm354, %v362, %v370
      %v373 = vshrl.u32 %v297, 16
      %v375 = vrot.slane %v373, 6
      %v376 = vshll.u32 %v297, 16
      %v378 = vrot.slane %v376, 7
      %v379 = vor.u32 %v375, %v378
      %v381 = vshrl.u32 %v299, 16
      %v383 = vrot.slane %v381, 6
      %v384 = vshll.u32 %v299, 16
      %v386 = vrot.slane %v384, 7
      %v387 = vor.u32 %v383, %v386
      %v388 = vsel %vm354, %v379, %v387
      %v390 = vshrl.u32 %v300, 16
      %v392 = vrot.slane %v390, 6
      %v393 = vshll.u32 %v300, 16
      %v395 = vrot.slane %v393, 7
      %v396 = vor.u32 %v392, %v395
      %v397 = vsel %vm354, %v370, %v396
      %v399 = vshrl.u32 %v301, 16
      %v401 = vrot.slane %v399, 6
      %v402 = vshll.u32 %v301, 16
      %v404 = vrot.slane %v402, 7
      %v405 = vor.u32 %v401, %v404
      %v406 = vsel %vm354, %v387, %v405
      %v408 = vshrl.u32 %v302, 16
      %v410 = vrot.slane %v408, 6
      %v411 = vshll.u32 %v302, 16
      %v413 = vrot.slane %v411, 7
      %v414 = vor.u32 %v410, %v413
      %v415 = vsel %vm354, %v396, %v414
      %v417 = vshrl.u32 %v303, 16
      %v419 = vrot.slane %v417, 6
      %v420 = vshll.u32 %v303, 16
      %v422 = vrot.slane %v420, 7
      %v423 = vor.u32 %v419, %v422
      %v424 = vsel %vm354, %v405, %v423
      %v426 = vshrl.u32 %v304, 16
      %v428 = vrot.slane %v426, 6
      %v429 = vshll.u32 %v304, 16
      %v431 = vrot.slane %v429, 7
      %v432 = vor.u32 %v428, %v431
      %v433 = vsel %vm354, %v414, %v432
      %v435 = vshrl.u32 %v305, 16
      %v437 = vrot.slane %v435, 6
      %v438 = vshll.u32 %v305, 16
      %v440 = vrot.slane %v438, 7
      %v441 = vor.u32 %v437, %v440
      %v442 = vsel %vm354, %v423, %v441
      %v444 = vshrl.u32 %v306, 16
      %v446 = vrot.slane %v444, 6
      %v447 = vshll.u32 %v306, 16
      %v449 = vrot.slane %v447, 7
      %v450 = vor.u32 %v446, %v449
      %v451 = vsel %vm354, %v432, %v450
      %v453 = vshrl.u32 %v307, 16
      %v455 = vrot.slane %v453, 6
      %v456 = vshll.u32 %v307, 16
      %v458 = vrot.slane %v456, 7
      %v459 = vor.u32 %v455, %v458
      %v460 = vsel %vm354, %v441, %v459
      %v462 = vshrl.u32 %v308, 16
      %v464 = vrot.slane %v462, 6
      %v465 = vshll.u32 %v308, 16
      %v467 = vrot.slane %v465, 7
      %v468 = vor.u32 %v464, %v467
      %v469 = vsel %vm354, %v450, %v468
      %v471 = vshrl.u32 %v309, 16
      %v473 = vrot.slane %v471, 6
      %v474 = vshll.u32 %v309, 16
      %v476 = vrot.slane %v474, 7
      %v477 = vor.u32 %v473, %v476
      %v478 = vsel %vm354, %v459, %v477
      %v480 = vshrl.u32 %v310, 16
      %v482 = vrot.slane %v480, 6
      %v483 = vshll.u32 %v310, 16
      %v485 = vrot.slane %v483, 7
      %v486 = vor.u32 %v482, %v485
      %v487 = vsel %vm354, %v468, %v486
      %v489 = vshrl.u32 %v311, 16
      %v491 = vrot.slane %v489, 6
      %v492 = vshll.u32 %v311, 16
      %v494 = vrot.slane %v492, 7
      %v495 = vor.u32 %v491, %v494
      %v496 = vsel %vm354, %v477, %v495
      %v498 = vshrl.u32 %v312, 16
      %v500 = vrot.slane %v498, 6
      %v501 = vshll.u32 %v312, 16
      %v503 = vrot.slane %v501, 7
      %v504 = vor.u32 %v500, %v503
      %v505 = vsel %vm354, %v486, %v504
      %v507 = vshrl.u32 %v313, 16
      %v509 = vrot.slane %v507, 6
      %v510 = vshll.u32 %v313, 16
      %v512 = vrot.slane %v510, 7
      %v513 = vor.u32 %v509, %v512
      %v514 = vsel %vm354, %v495, %v513
      %v516 = vshrl.u32 %v314, 16
      %v518 = vrot.slane %v516, 6
      %v519 = vshll.u32 %v314, 16
      %v521 = vrot.slane %v519, 7
      %v522 = vor.u32 %v518, %v521
      %v523 = vsel %vm354, %v504, %v522
      %v525 = vshrl.u32 %v315, 16
      %v527 = vrot.slane %v525, 6
      %v528 = vshll.u32 %v315, 16
      %v530 = vrot.slane %v528, 7
      %v531 = vor.u32 %v527, %v530
      %v532 = vsel %vm354, %v513, %v531
      %v534 = vshrl.u32 %v316, 16
      %v536 = vrot.slane %v534, 6
      %v537 = vshll.u32 %v316, 16
      %v539 = vrot.slane %v537, 7
      %v540 = vor.u32 %v536, %v539
      %v541 = vsel %vm354, %v522, %v540
      %v543 = vshrl.u32 %v317, 16
      %v545 = vrot.slane %v543, 6
      %v546 = vshll.u32 %v317, 16
      %v548 = vrot.slane %v546, 7
      %v549 = vor.u32 %v545, %v548
      %v550 = vsel %vm354, %v531, %v549
      %v552 = vshrl.u32 %v318, 16
      %v554 = vrot.slane %v552, 6
      %v555 = vshll.u32 %v318, 16
      %v557 = vrot.slane %v555, 7
      %v558 = vor.u32 %v554, %v557
      %v559 = vsel %vm354, %v540, %v558
      %v561 = vshrl.u32 %v319, 16
      %v563 = vrot.slane %v561, 6
      %v564 = vshll.u32 %v319, 16
      %v566 = vrot.slane %v564, 7
      %v567 = vor.u32 %v563, %v566
      %v568 = vsel %vm354, %v549, %v567
      %v570 = vshrl.u32 %v320, 16
      %v572 = vrot.slane %v570, 6
      %v573 = vshll.u32 %v320, 16
      %v575 = vrot.slane %v573, 7
      %v576 = vor.u32 %v572, %v575
      %v577 = vsel %vm354, %v558, %v576
      %v579 = vshrl.u32 %v321, 16
      %v581 = vrot.slane %v579, 6
      %v582 = vshll.u32 %v321, 16
      %v584 = vrot.slane %v582, 7
      %v585 = vor.u32 %v581, %v584
      %v586 = vsel %vm354, %v567, %v585
      %v643 = vunpack.c.l.b16 %v322
      %v644 = vunpack.c.l.b16 %v323
      %v645 = vunpack.c.l.b16 %v324
      %v646 = vunpack.c.l.b16 %v325
      %v647 = vunpack.c.l.b16 %v326
      %v648 = vunpack.c.l.b16 %v327
      %v649 = vunpack.c.l.b16 %v328
      %v650 = vunpack.c.l.b16 %v329
      %v651 = vunpack.c.l.b16 %v330
      %v652 = vunpack.c.l.b16 %v331
      %v653 = vunpack.c.l.b16 %v332
      %v654 = vunpack.c.l.b16 %v333
      %v655 = vunpack.c.l.b16 %v334
      %v656 = vunpack.c.l.b16 %v335
      %v657 = vunpack.c.l.b16 %v336
      %v658 = vunpack.c.l.b16 %v337
      %v659 = vunpack.c.l.b16 %v338
      %v660 = vunpack.c.l.b16 %v339
      %v661 = vunpack.c.l.b16 %v340
      %v662 = vunpack.c.l.b16 %v341
      %v663 = vunpack.c.l.b16 %v342
      %v664 = vunpack.c.l.b16 %v343
      %v665 = vunpack.c.l.b16 %v344
      %v666 = vunpack.c.l.b16 %v345
      %v667 = vunpack.c.l.b16 %v346
      %v668 = vunpack.c.l.b16 %v347
      %v669 = vunpack.c.l.b16 %v348
      %v670 = vunpack.c.l.b16 %v349
      %v671 = vunpack.c.l.b16 %v350
      %v672 = vunpack.c.l.b16 %v351
      %v673 = vunpack.c.l.b16 %v352
      %v674 = vunpack.c.l.b16 %v353
      %v675 = vpack.c.b16 %v644, %v643
      %v676 = vpack.c.b16 %v646, %v645
      %v677 = vpack.c.b16 %v648, %v647
      %v678 = vpack.c.b16 %v650, %v649
      %v679 = vpack.c.b16 %v652, %v651
      %v680 = vpack.c.b16 %v654, %v653
      %v681 = vpack.c.b16 %v656, %v655
      %v682 = vpack.c.b16 %v658, %v657
      %v683 = vpack.c.b16 %v660, %v659
      %v684 = vpack.c.b16 %v662, %v661
      %v685 = vpack.c.b16 %v664, %v663
      %v686 = vpack.c.b16 %v666, %v665
      %v687 = vpack.c.b16 %v668, %v667
      %v688 = vpack.c.b16 %v670, %v669
      %v689 = vpack.c.b16 %v672, %v671
      %v690 = vpack.c.b16 %v674, %v673
      %707 = vmatprep.subr.bf16.mxu0 0
      %708 = vmatpush1.bf16.msra.mxu0 %v675
      %709 = vmatprep.subr.bf16.mxu0 0
      %710 = vmatpush1.bf16.msra.mxu0 %v676
      %711 = vmatprep.subr.bf16.mxu0 0
      %712 = vmatpush1.bf16.msra.mxu0 %v677
      %713 = vmatprep.subr.bf16.mxu0 0
      %714 = vmatpush1.bf16.msra.mxu0 %v678
      %715 = vmatprep.subr.bf16.mxu0 0
      %716 = vmatpush1.bf16.msra.mxu0 %v679
      %717 = vmatprep.subr.bf16.mxu0 0
      %718 = vmatpush1.bf16.msra.mxu0 %v680
      %719 = vmatprep.subr.bf16.mxu0 0
      %720 = vmatpush1.bf16.msra.mxu0 %v681
      %721 = vmatprep.subr.bf16.mxu0 0
      %722 = vmatpush1.bf16.msra.mxu0 %v682
      %723 = vmatprep.subr.bf16.mxu0 0
      %724 = vmatpush1.bf16.msra.mxu0 %v683
      %725 = vmatprep.subr.bf16.mxu0 0
      %726 = vmatpush1.bf16.msra.mxu0 %v684
      %727 = vmatprep.subr.bf16.mxu0 0
      %728 = vmatpush1.bf16.msra.mxu0 %v685
      %729 = vmatprep.subr.bf16.mxu0 0
      %730 = vmatpush1.bf16.msra.mxu0 %v686
      %731 = vmatprep.subr.bf16.mxu0 0
      %732 = vmatpush1.bf16.msra.mxu0 %v687
      %733 = vmatprep.subr.bf16.mxu0 0
      %734 = vmatpush1.bf16.msra.mxu0 %v688
      %735 = vmatprep.subr.bf16.mxu0 0
      %736 = vmatpush1.bf16.msra.mxu0 %v689
      %737 = vmatprep.subr.bf16.mxu0 0
      %738 = vmatpush1.bf16.msra.mxu0 %v690
      %739 = vmatprep.mubr.bf16.mxu0 %v388
      %740 = vmatmul.mubr.bf16.gmra.mrb[0].mxu0 %v371
      %v741 = vpop.f32.mrb[0].mxu0
      %v742 = vadd.f32 0.0, %v741
      %v743 = vpop.f32.mrb[0].mxu0
      %v744 = vpop.f32.mrb[0].mxu0
      %v745 = vadd.f32 0.0, %v744
      %v746 = vpop.f32.mrb[0].mxu0
      %747 = vmatprep.mubr.bf16.mxu0 %v406
      %748 = vmatmul.mubr.bf16.gmra.mrb[0].mxu0 %v397
      %v749 = vpop.f32.mrb[0].mxu0
      %v750 = vadd.f32 0.0, %v749
      %v751 = vpop.f32.mrb[0].mxu0
      %v752 = vpop.f32.mrb[0].mxu0
      %v753 = vadd.f32 0.0, %v752
      %v754 = vpop.f32.mrb[0].mxu0
      %755 = vmatprep.mubr.bf16.mxu0 %v424
      %756 = vmatmul.mubr.bf16.gmra.mrb[0].mxu0 %v415
      %v757 = vpop.f32.mrb[0].mxu0
      %v758 = vadd.f32 0.0, %v757
      %v759 = vpop.f32.mrb[0].mxu0
      %v760 = vpop.f32.mrb[0].mxu0
      %v761 = vadd.f32 0.0, %v760
      %v762 = vpop.f32.mrb[0].mxu0
      %763 = vmatprep.mubr.bf16.mxu0 %v442
      %764 = vmatmul.mubr.bf16.gmra.mrb[0].mxu0 %v433
      %v765 = vpop.f32.mrb[0].mxu0
      %v766 = vadd.f32 0.0, %v765
      %v767 = vpop.f32.mrb[0].mxu0
      %v768 = vpop.f32.mrb[0].mxu0
      %v769 = vadd.f32 0.0, %v768
      %v770 = vpop.f32.mrb[0].mxu0
      %771 = vmatprep.mubr.bf16.mxu0 %v460
      %772 = vmatmul.mubr.bf16.gmra.mrb[0].mxu0 %v451
      %v773 = vpop.f32.mrb[0].mxu0
      %v774 = vadd.f32 0.0, %v773
      %v775 = vpop.f32.mrb[0].mxu0
      %v776 = vpop.f32.mrb[0].mxu0
      %v777 = vadd.f32 0.0, %v776
      %v778 = vpop.f32.mrb[0].mxu0
      %779 = vmatprep.mubr.bf16.mxu0 %v478
      %780 = vmatmul.mubr.bf16.gmra.mrb[0].mxu0 %v469
      %v781 = vpop.f32.mrb[0].mxu0
      %v782 = vadd.f32 0.0, %v781
      %v783 = vpop.f32.mrb[0].mxu0
      %v784 = vpop.f32.mrb[0].mxu0
      %v785 = vadd.f32 0.0, %v784
      %v786 = vpop.f32.mrb[0].mxu0
      %787 = vmatprep.mubr.bf16.mxu0 %v496
      %788 = vmatmul.mubr.bf16.gmra.mrb[0].mxu0 %v487
      %v789 = vpop.f32.mrb[0].mxu0
      %v790 = vadd.f32 0.0, %v789
      %v791 = vpop.f32.mrb[0].mxu0
      %v792 = vpop.f32.mrb[0].mxu0
      %v793 = vadd.f32 0.0, %v792
      %v794 = vpop.f32.mrb[0].mxu0
      %795 = vmatprep.mubr.bf16.mxu0 %v514
      %796 = vmatmul.mubr.bf16.gmra.mrb[0].mxu0 %v505
      %v797 = vpop.f32.mrb[0].mxu0
      %v798 = vadd.f32 0.0, %v797
      %v799 = vpop.f32.mrb[0].mxu0
      %v800 = vpop.f32.mrb[0].mxu0
      %v801 = vadd.f32 0.0, %v800
      %v802 = vpop.f32.mrb[0].mxu0
      %803 = vmatprep.mubr.bf16.mxu0 %v532
      %804 = vmatmul.mubr.bf16.gmra.mrb[0].mxu0 %v523
      %v805 = vpop.f32.mrb[0].mxu0
      %v806 = vadd.f32 0.0, %v805
      %v807 = vpop.f32.mrb[0].mxu0
      %v808 = vpop.f32.mrb[0].mxu0
      %v809 = vadd.f32 0.0, %v808
      %v810 = vpop.f32.mrb[0].mxu0
      %811 = vmatprep.mubr.bf16.mxu0 %v550
      %812 = vmatmul.mubr.bf16.gmra.mrb[0].mxu0 %v541
      %v813 = vpop.f32.mrb[0].mxu0
      %v814 = vadd.f32 0.0, %v813
      %v815 = vpop.f32.mrb[0].mxu0
      %v816 = vpop.f32.mrb[0].mxu0
      %v817 = vadd.f32 0.0, %v816
      %v818 = vpop.f32.mrb[0].mxu0
      %819 = vmatprep.mubr.bf16.mxu0 %v568
      %820 = vmatmul.mubr.bf16.gmra.mrb[0].mxu0 %v559
      %v821 = vpop.f32.mrb[0].mxu0
      %v822 = vadd.f32 0.0, %v821
      %v823 = vpop.f32.mrb[0].mxu0
      %v824 = vpop.f32.mrb[0].mxu0
      %v825 = vadd.f32 0.0, %v824
      %v826 = vpop.f32.mrb[0].mxu0
      %827 = vmatprep.mubr.bf16.mxu0 %v586
      %828 = vmatmul.mubr.bf16.gmra.mrb[0].mxu0 %v577
      %v829 = vpop.f32.mrb[0].mxu0
      %v830 = vadd.f32 0.0, %v829
      %v831 = vpop.f32.mrb[0].mxu0
      %v832 = vpop.f32.mrb[0].mxu0
      %v833 = vadd.f32 0.0, %v832
      %v834 = vpop.f32.mrb[0].mxu0
      %835 = vdwg.mxu0
      %v836 = vadd.f32 %v294, %v742
      %v837 = vadd.f32 %v294, %v745
      %v838 = vadd.f32 %v294, %v750
      %v839 = vadd.f32 %v294, %v753
      %v840 = vadd.f32 %v294, %v758
      %v841 = vadd.f32 %v294, %v761
      %v842 = vadd.f32 %v294, %v766
      %v843 = vadd.f32 %v294, %v769
      %v844 = vadd.f32 %v294, %v774
      %v845 = vadd.f32 %v294, %v777
      %v846 = vadd.f32 %v294, %v782
      %v847 = vadd.f32 %v294, %v785
      %v848 = vadd.f32 %v294, %v790
      %v849 = vadd.f32 %v294, %v793
      %v850 = vadd.f32 %v294, %v798
      %v851 = vadd.f32 %v294, %v801
      %v852 = vadd.f32 %v294, %v806
      %v853 = vadd.f32 %v294, %v809
      %v854 = vadd.f32 %v294, %v814
      %v855 = vadd.f32 %v294, %v817
      %v856 = vadd.f32 %v294, %v822
      %v857 = vadd.f32 %v294, %v825
      %v858 = vadd.f32 %v294, %v830
      %v859 = vadd.f32 %v294, %v833
      %v860 = vld [vmem:[#allocation2] sm:$0x80]
      %v861 = vld [vmem:[#allocation2 + $0x8] sm:$0x80]
      %s862 = scalar_lea.vmem %s1, 128
      %v863 = vld [vmem:[%s862] sm:$0xf]
      %v864 = vld [vmem:[%s862 + $0x4] sm:$0xf]
      %v865 = vld [vmem:[%s862 + $0x8] sm:$0xf]
      %v866 = vld [vmem:[%s862 + $0xc] sm:$0xf]
      %v867 = vld [vmem:[%s862 + $0x10] sm:$0xf]
      %v868 = vld [vmem:[%s862 + $0x14] sm:$0xf]
      %v869 = vld [vmem:[%s862 + $0x18] sm:$0xf]
      %v870 = vld [vmem:[%s862 + $0x1c] sm:$0xf]
      %v871 = vld [vmem:[%s862 + $0x20] sm:$0xf]
      %v872 = vld [vmem:[%s862 + $0x24] sm:$0xf]
      %v873 = vld [vmem:[%s862 + $0x28] sm:$0xf]
      %v874 = vld [vmem:[%s862 + $0x2c] sm:$0xf]
      %v875 = vld [vmem:[%s862 + $0x30] sm:$0xf]
      %v876 = vld [vmem:[%s862 + $0x34] sm:$0xf]
      %v877 = vld [vmem:[%s862 + $0x38] sm:$0xf]
      %v878 = vld [vmem:[%s862 + $0x3c] sm:$0xf]
      %v879 = vld [vmem:[%s862 + $0x40] sm:$0xf]
      %v880 = vld [vmem:[%s862 + $0x44] sm:$0xf]
      %v881 = vld [vmem:[%s862 + $0x48] sm:$0xf]
      %v882 = vld [vmem:[%s862 + $0x4c] sm:$0xf]
      %v883 = vld [vmem:[%s862 + $0x50] sm:$0xf]
      %v884 = vld [vmem:[%s862 + $0x54] sm:$0xf]
      %v885 = vld [vmem:[%s862 + $0x58] sm:$0xf]
      %v886 = vld [vmem:[%s862 + $0x5c] sm:$0xf]
      %v887 = vld [vmem:[%s862 + $0x60] sm:$0xf]
      %v888 = vld [vmem:[%s862 + $0x64] sm:$0xf]
      %v889 = vld [vmem:[%s862 + $0x68] sm:$0xf]
      %v890 = vld [vmem:[%s862 + $0x6c] sm:$0xf]
      %v891 = vld [vmem:[%s862 + $0x70] sm:$0xf]
      %v892 = vld [vmem:[%s862 + $0x74] sm:$0xf]
      %v893 = vld [vmem:[%s862 + $0x78] sm:$0xf]
      %v894 = vld [vmem:[%s862 + $0x7c] sm:$0xf]
      %vm921 = vcmask 1040384
      %v922 = vrot.slane %v860, 7
      %v923 = vrot.slane %v298, 7
      %v924 = vsel %vm921, %v922, %v923
      %v925 = vrot.slane %v861, 7
      %v926 = vrot.slane %v299, 7
      %v927 = vsel %vm921, %v925, %v926
      %v928 = vrot.slane %v300, 7
      %v929 = vsel %vm921, %v923, %v928
      %v930 = vrot.slane %v301, 7
      %v931 = vsel %vm921, %v926, %v930
      %v932 = vrot.slane %v302, 7
      %v933 = vsel %vm921, %v928, %v932
      %v934 = vrot.slane %v303, 7
      %v935 = vsel %vm921, %v930, %v934
      %v936 = vrot.slane %v304, 7
      %v937 = vsel %vm921, %v932, %v936
      %v938 = vrot.slane %v305, 7
      %v939 = vsel %vm921, %v934, %v938
      %v940 = vrot.slane %v306, 7
      %v941 = vsel %vm921, %v936, %v940
      %v942 = vrot.slane %v307, 7
      %v943 = vsel %vm921, %v938, %v942
      %v944 = vrot.slane %v308, 7
      %v945 = vsel %vm921, %v940, %v944
      %v946 = vrot.slane %v309, 7
      %v947 = vsel %vm921, %v942, %v946
      %v948 = vrot.slane %v310, 7
      %v949 = vsel %vm921, %v944, %v948
      %v950 = vrot.slane %v311, 7
      %v951 = vsel %vm921, %v946, %v950
      %v952 = vrot.slane %v312, 7
      %v953 = vsel %vm921, %v948, %v952
      %v954 = vrot.slane %v313, 7
      %v955 = vsel %vm921, %v950, %v954
      %v956 = vrot.slane %v314, 7
      %v957 = vsel %vm921, %v952, %v956
      %v958 = vrot.slane %v315, 7
      %v959 = vsel %vm921, %v954, %v958
      %v960 = vrot.slane %v316, 7
      %v961 = vsel %vm921, %v956, %v960
      %v962 = vrot.slane %v317, 7
      %v963 = vsel %vm921, %v958, %v962
      %v964 = vrot.slane %v318, 7
      %v965 = vsel %vm921, %v960, %v964
      %v966 = vrot.slane %v319, 7
      %v967 = vsel %vm921, %v962, %v966
      %v968 = vrot.slane %v320, 7
      %v969 = vsel %vm921, %v964, %v968
      %v970 = vrot.slane %v321, 7
      %v971 = vsel %vm921, %v966, %v970
      %v1028 = vunpack.c.l.b16 %v863
      %v1029 = vunpack.c.l.b16 %v864
      %v1030 = vunpack.c.l.b16 %v865
      %v1031 = vunpack.c.l.b16 %v866
      %v1032 = vunpack.c.l.b16 %v867
      %v1033 = vunpack.c.l.b16 %v868
      %v1034 = vunpack.c.l.b16 %v869
      %v1035 = vunpack.c.l.b16 %v870
      %v1036 = vunpack.c.l.b16 %v871
      %v1037 = vunpack.c.l.b16 %v872
      %v1038 = vunpack.c.l.b16 %v873
      %v1039 = vunpack.c.l.b16 %v874
      %v1040 = vunpack.c.l.b16 %v875
      %v1041 = vunpack.c.l.b16 %v876
      %v1042 = vunpack.c.l.b16 %v877
      %v1043 = vunpack.c.l.b16 %v878
      %v1044 = vunpack.c.l.b16 %v879
      %v1045 = vunpack.c.l.b16 %v880
      %v1046 = vunpack.c.l.b16 %v881
      %v1047 = vunpack.c.l.b16 %v882
      %v1048 = vunpack.c.l.b16 %v883
      %v1049 = vunpack.c.l.b16 %v884
      %v1050 = vunpack.c.l.b16 %v885
      %v1051 = vunpack.c.l.b16 %v886
      %v1052 = vunpack.c.l.b16 %v887
      %v1053 = vunpack.c.l.b16 %v888
      %v1054 = vunpack.c.l.b16 %v889
      %v1055 = vunpack.c.l.b16 %v890
      %v1056 = vunpack.c.l.b16 %v891
      %v1057 = vunpack.c.l.b16 %v892
      %v1058 = vunpack.c.l.b16 %v893
      %v1059 = vunpack.c.l.b16 %v894
      %v1060 = vpack.c.b16 %v1029, %v1028
      %v1061 = vpack.c.b16 %v1031, %v1030
      %v1062 = vpack.c.b16 %v1033, %v1032
      %v1063 = vpack.c.b16 %v1035, %v1034
      %v1064 = vpack.c.b16 %v1037, %v1036
      %v1065 = vpack.c.b16 %v1039, %v1038
      %v1066 = vpack.c.b16 %v1041, %v1040
      %v1067 = vpack.c.b16 %v1043, %v1042
      %v1068 = vpack.c.b16 %v1045, %v1044
      %v1069 = vpack.c.b16 %v1047, %v1046
      %v1070 = vpack.c.b16 %v1049, %v1048
      %v1071 = vpack.c.b16 %v1051, %v1050
      %v1072 = vpack.c.b16 %v1053, %v1052
      %v1073 = vpack.c.b16 %v1055, %v1054
      %v1074 = vpack.c.b16 %v1057, %v1056
      %v1075 = vpack.c.b16 %v1059, %v1058
      %1092 = vmatprep.subr.bf16.mxu0 0
      %1093 = vmatpush1.bf16.msra.mxu0 %v1060
      %1094 = vmatprep.subr.bf16.mxu0 0
      %1095 = vmatpush1.bf16.msra.mxu0 %v1061
      %1096 = vmatprep.subr.bf16.mxu0 0
      %1097 = vmatpush1.bf16.msra.mxu0 %v1062
      %1098 = vmatprep.subr.bf16.mxu0 0
      %1099 = vmatpush1.bf16.msra.mxu0 %v1063
      %1100 = vmatprep.subr.bf16.mxu0 0
      %1101 = vmatpush1.bf16.msra.mxu0 %v1064
      %1102 = vmatprep.subr.bf16.mxu0 0
      %1103 = vmatpush1.bf16.msra.mxu0 %v1065
      %1104 = vmatprep.subr.bf16.mxu0 0
      %1105 = vmatpush1.bf16.msra.mxu0 %v1066
      %1106 = vmatprep.subr.bf16.mxu0 0
      %1107 = vmatpush1.bf16.msra.mxu0 %v1067
      %1108 = vmatprep.subr.bf16.mxu0 0
      %1109 = vmatpush1.bf16.msra.mxu0 %v1068
      %1110 = vmatprep.subr.bf16.mxu0 0
      %1111 = vmatpush1.bf16.msra.mxu0 %v1069
      %1112 = vmatprep.subr.bf16.mxu0 0
      %1113 = vmatpush1.bf16.msra.mxu0 %v1070
      %1114 = vmatprep.subr.bf16.mxu0 0
      %1115 = vmatpush1.bf16.msra.mxu0 %v1071
      %1116 = vmatprep.subr.bf16.mxu0 0
      %1117 = vmatpush1.bf16.msra.mxu0 %v1072
      %1118 = vmatprep.subr.bf16.mxu0 0
      %1119 = vmatpush1.bf16.msra.mxu0 %v1073
      %1120 = vmatprep.subr.bf16.mxu0 0
      %1121 = vmatpush1.bf16.msra.mxu0 %v1074
      %1122 = vmatprep.subr.bf16.mxu0 0
      %1123 = vmatpush1.bf16.msra.mxu0 %v1075
      %1124 = vmatprep.mubr.bf16.mxu0 %v927
      %1125 = vmatmul.mubr.bf16.gmra.mrb[0].mxu0 %v924
      %v1126 = vpop.f32.mrb[0].mxu0
      %v1127 = vadd.f32 0.0, %v1126
      %v1128 = vpop.f32.mrb[0].mxu0
      %v1129 = vpop.f32.mrb[0].mxu0
      %v1130 = vadd.f32 0.0, %v1129
      %v1131 = vpop.f32.mrb[0].mxu0
      %1132 = vmatprep.mubr.bf16.mxu0 %v931
      %1133 = vmatmul.mubr.bf16.gmra.mrb[0].mxu0 %v929
      %v1134 = vpop.f32.mrb[0].mxu0
      %v1135 = vadd.f32 0.0, %v1134
      %v1136 = vpop.f32.mrb[0].mxu0
      %v1137 = vpop.f32.mrb[0].mxu0
      %v1138 = vadd.f32 0.0, %v1137
      %v1139 = vpop.f32.mrb[0].mxu0
      %1140 = vmatprep.mubr.bf16.mxu0 %v935
      %1141 = vmatmul.mubr.bf16.gmra.mrb[0].mxu0 %v933
      %v1142 = vpop.f32.mrb[0].mxu0
      %v1143 = vadd.f32 0.0, %v1142
      %v1144 = vpop.f32.mrb[0].mxu0
      %v1145 = vpop.f32.mrb[0].mxu0
      %v1146 = vadd.f32 0.0, %v1145
      %v1147 = vpop.f32.mrb[0].mxu0
      %1148 = vmatprep.mubr.bf16.mxu0 %v939
      %1149 = vmatmul.mubr.bf16.gmra.mrb[0].mxu0 %v937
      %v1150 = vpop.f32.mrb[0].mxu0
      %v1151 = vadd.f32 0.0, %v1150
      %v1152 = vpop.f32.mrb[0].mxu0
      %v1153 = vpop.f32.mrb[0].mxu0
      %v1154 = vadd.f32 0.0, %v1153
      %v1155 = vpop.f32.mrb[0].mxu0
      %1156 = vmatprep.mubr.bf16.mxu0 %v943
      %1157 = vmatmul.mubr.bf16.gmra.mrb[0].mxu0 %v941
      %v1158 = vpop.f32.mrb[0].mxu0
      %v1159 = vadd.f32 0.0, %v1158
      %v1160 = vpop.f32.mrb[0].mxu0
      %v1161 = vpop.f32.mrb[0].mxu0
      %v1162 = vadd.f32 0.0, %v1161
      %v1163 = vpop.f32.mrb[0].mxu0
      %1164 = vmatprep.mubr.bf16.mxu0 %v947
      %1165 = vmatmul.mubr.bf16.gmra.mrb[0].mxu0 %v945
      %v1166 = vpop.f32.mrb[0].mxu0
      %v1167 = vadd.f32 0.0, %v1166
      %v1168 = vpop.f32.mrb[0].mxu0
      %v1169 = vpop.f32.mrb[0].mxu0
      %v1170 = vadd.f32 0.0, %v1169
      %v1171 = vpop.f32.mrb[0].mxu0
      %1172 = vmatprep.mubr.bf16.mxu0 %v951
      %1173 = vmatmul.mubr.bf16.gmra.mrb[0].mxu0 %v949
      %v1174 = vpop.f32.mrb[0].mxu0
      %v1175 = vadd.f32 0.0, %v1174
      %v1176 = vpop.f32.mrb[0].mxu0
      %v1177 = vpop.f32.mrb[0].mxu0
      %v1178 = vadd.f32 0.0, %v1177
      %v1179 = vpop.f32.mrb[0].mxu0
      %1180 = vmatprep.mubr.bf16.mxu0 %v955
      %1181 = vmatmul.mubr.bf16.gmra.mrb[0].mxu0 %v953
      %v1182 = vpop.f32.mrb[0].mxu0
      %v1183 = vadd.f32 0.0, %v1182
      %v1184 = vpop.f32.mrb[0].mxu0
      %v1185 = vpop.f32.mrb[0].mxu0
      %v1186 = vadd.f32 0.0, %v1185
      %v1187 = vpop.f32.mrb[0].mxu0
      %1188 = vmatprep.mubr.bf16.mxu0 %v959
      %1189 = vmatmul.mubr.bf16.gmra.mrb[0].mxu0 %v957
      %v1190 = vpop.f32.mrb[0].mxu0
      %v1191 = vadd.f32 0.0, %v1190
      %v1192 = vpop.f32.mrb[0].mxu0
      %v1193 = vpop.f32.mrb[0].mxu0
      %v1194 = vadd.f32 0.0, %v1193
      %v1195 = vpop.f32.mrb[0].mxu0
      %1196 = vmatprep.mubr.bf16.mxu0 %v963
      %1197 = vmatmul.mubr.bf16.gmra.mrb[0].mxu0 %v961
      %v1198 = vpop.f32.mrb[0].mxu0
      %v1199 = vadd.f32 0.0, %v1198
      %v1200 = vpop.f32.mrb[0].mxu0
      %v1201 = vpop.f32.mrb[0].mxu0
      %v1202 = vadd.f32 0.0, %v1201
      %v1203 = vpop.f32.mrb[0].mxu0
      %1204 = vmatprep.mubr.bf16.mxu0 %v967
      %1205 = vmatmul.mubr.bf16.gmra.mrb[0].mxu0 %v965
      %v1206 = vpop.f32.mrb[0].mxu0
      %v1207 = vadd.f32 0.0, %v1206
      %v1208 = vpop.f32.mrb[0].mxu0
      %v1209 = vpop.f32.mrb[0].mxu0
      %v1210 = vadd.f32 0.0, %v1209
      %v1211 = vpop.f32.mrb[0].mxu0
      %1212 = vmatprep.mubr.bf16.mxu0 %v971
      %1213 = vmatmul.mubr.bf16.gmra.mrb[0].mxu0 %v969
      %v1214 = vpop.f32.mrb[0].mxu0
      %v1215 = vadd.f32 0.0, %v1214
      %v1216 = vpop.f32.mrb[0].mxu0
      %v1217 = vpop.f32.mrb[0].mxu0
      %v1218 = vadd.f32 0.0, %v1217
      %v1219 = vpop.f32.mrb[0].mxu0
      %1220 = vdwg.mxu0
      %v1221 = vadd.f32 %v836, %v1127
      %v1222 = vadd.f32 %v837, %v1130
      %v1223 = vadd.f32 %v838, %v1135
      %v1224 = vadd.f32 %v839, %v1138
      %v1225 = vadd.f32 %v840, %v1143
      %v1226 = vadd.f32 %v841, %v1146
      %v1227 = vadd.f32 %v842, %v1151
      %v1228 = vadd.f32 %v843, %v1154
      %v1229 = vadd.f32 %v844, %v1159
      %v1230 = vadd.f32 %v845, %v1162
      %v1231 = vadd.f32 %v846, %v1167
      %v1232 = vadd.f32 %v847, %v1170
      %v1233 = vadd.f32 %v848, %v1175
      %v1234 = vadd.f32 %v849, %v1178
      %v1235 = vadd.f32 %v850, %v1183
      %v1236 = vadd.f32 %v851, %v1186
      %v1237 = vadd.f32 %v852, %v1191
      %v1238 = vadd.f32 %v853, %v1194
      %v1239 = vadd.f32 %v854, %v1199
      %v1240 = vadd.f32 %v855, %v1202
      %v1241 = vadd.f32 %v856, %v1207
      %v1242 = vadd.f32 %v857, %v1210
      %v1243 = vadd.f32 %v858, %v1215
      %v1244 = vadd.f32 %v859, %v1218
      %v1245 = vld [vmem:[#allocation2 + $0xc0] sm:$0xff]
      %v1246 = vld [vmem:[#allocation2 + $0xc8] sm:$0xff]
      %s1247 = scalar_lea.vmem %s1, 256
      %v1248 = vld [vmem:[%s1247] sm:$0xf]
      %v1249 = vld [vmem:[%s1247 + $0x4] sm:$0xf]
      %v1250 = vld [vmem:[%s1247 + $0x8] sm:$0xf]
      %v1251 = vld [vmem:[%s1247 + $0xc] sm:$0xf]
      %v1252 = vld [vmem:[%s1247 + $0x10] sm:$0xf]
      %v1253 = vld [vmem:[%s1247 + $0x14] sm:$0xf]
      %v1254 = vld [vmem:[%s1247 + $0x18] sm:$0xf]
      %v1255 = vld [vmem:[%s1247 + $0x1c] sm:$0xf]
      %v1256 = vld [vmem:[%s1247 + $0x20] sm:$0xf]
      %v1257 = vld [vmem:[%s1247 + $0x24] sm:$0xf]
      %v1258 = vld [vmem:[%s1247 + $0x28] sm:$0xf]
      %v1259 = vld [vmem:[%s1247 + $0x2c] sm:$0xf]
      %v1260 = vld [vmem:[%s1247 + $0x30] sm:$0xf]
      %v1261 = vld [vmem:[%s1247 + $0x34] sm:$0xf]
      %v1262 = vld [vmem:[%s1247 + $0x38] sm:$0xf]
      %v1263 = vld [vmem:[%s1247 + $0x3c] sm:$0xf]
      %v1264 = vld [vmem:[%s1247 + $0x40] sm:$0xf]
      %v1265 = vld [vmem:[%s1247 + $0x44] sm:$0xf]
      %v1266 = vld [vmem:[%s1247 + $0x48] sm:$0xf]
      %v1267 = vld [vmem:[%s1247 + $0x4c] sm:$0xf]
      %v1268 = vld [vmem:[%s1247 + $0x50] sm:$0xf]
      %v1269 = vld [vmem:[%s1247 + $0x54] sm:$0xf]
      %v1270 = vld [vmem:[%s1247 + $0x58] sm:$0xf]
      %v1271 = vld [vmem:[%s1247 + $0x5c] sm:$0xf]
      %v1272 = vld [vmem:[%s1247 + $0x60] sm:$0xf]
      %v1273 = vld [vmem:[%s1247 + $0x64] sm:$0xf]
      %v1274 = vld [vmem:[%s1247 + $0x68] sm:$0xf]
      %v1275 = vld [vmem:[%s1247 + $0x6c] sm:$0xf]
      %v1276 = vld [vmem:[%s1247 + $0x70] sm:$0xf]
      %v1277 = vld [vmem:[%s1247 + $0x74] sm:$0xf]
      %v1278 = vld [vmem:[%s1247 + $0x78] sm:$0xf]
      %v1279 = vld [vmem:[%s1247 + $0x7c] sm:$0xf]
      %vm1280 = vsmask.f32 256
      %v1282 = vshrl.u32 %v860, 16
      %v1284 = vrot.slane %v1282, 7
      %v1285 = vrot.slane %v364, 7
      %v1286 = vor.u32 %v1285, %v367
      %v1287 = vsel %vm1280, %v1284, %v1286
      %v1289 = vshrl.u32 %v861, 16
      %v1291 = vrot.slane %v1289, 7
      %v1292 = vrot.slane %v381, 7
      %v1293 = vor.u32 %v1292, %v384
      %v1294 = vsel %vm1280, %v1291, %v1293
      %v1295 = vrot.slane %v390, 7
      %v1296 = vor.u32 %v1295, %v393
      %v1297 = vsel %vm1280, %v1285, %v1296
      %v1298 = vrot.slane %v399, 7
      %v1299 = vor.u32 %v1298, %v402
      %v1300 = vsel %vm1280, %v1292, %v1299
      %v1301 = vrot.slane %v408, 7
      %v1302 = vor.u32 %v1301, %v411
      %v1303 = vsel %vm1280, %v1295, %v1302
      %v1304 = vrot.slane %v417, 7
      %v1305 = vor.u32 %v1304, %v420
      %v1306 = vsel %vm1280, %v1298, %v1305
      %v1307 = vrot.slane %v426, 7
      %v1308 = vor.u32 %v1307, %v429
      %v1309 = vsel %vm1280, %v1301, %v1308
      %v1310 = vrot.slane %v435, 7
      %v1311 = vor.u32 %v1310, %v438
      %v1312 = vsel %vm1280, %v1304, %v1311
      %v1313 = vrot.slane %v444, 7
      %v1314 = vor.u32 %v1313, %v447
      %v1315 = vsel %vm1280, %v1307, %v1314
      %v1316 = vrot.slane %v453, 7
      %v1317 = vor.u32 %v1316, %v456
      %v1318 = vsel %vm1280, %v1310, %v1317
      %v1319 = vrot.slane %v462, 7
      %v1320 = vor.u32 %v1319, %v465
      %v1321 = vsel %vm1280, %v1313, %v1320
      %v1322 = vrot.slane %v471, 7
      %v1323 = vor.u32 %v1322, %v474
      %v1324 = vsel %vm1280, %v1316, %v1323
      %v1325 = vrot.slane %v480, 7
      %v1326 = vor.u32 %v1325, %v483
      %v1327 = vsel %vm1280, %v1319, %v1326
      %v1328 = vrot.slane %v489, 7
      %v1329 = vor.u32 %v1328, %v492
      %v1330 = vsel %vm1280, %v1322, %v1329
      %v1331 = vrot.slane %v498, 7
      %v1332 = vor.u32 %v1331, %v501
      %v1333 = vsel %vm1280, %v1325, %v1332
      %v1334 = vrot.slane %v507, 7
      %v1335 = vor.u32 %v1334, %v510
      %v1336 = vsel %vm1280, %v1328, %v1335
      %v1337 = vrot.slane %v516, 7
      %v1338 = vor.u32 %v1337, %v519
      %v1339 = vsel %vm1280, %v1331, %v1338
      %v1340 = vrot.slane %v525, 7
      %v1341 = vor.u32 %v1340, %v528
      %v1342 = vsel %vm1280, %v1334, %v1341
      %v1343 = vrot.slane %v534, 7
      %v1344 = vor.u32 %v1343, %v537
      %v1345 = vsel %vm1280, %v1337, %v1344
      %v1346 = vrot.slane %v543, 7
      %v1347 = vor.u32 %v1346, %v546
      %v1348 = vsel %vm1280, %v1340, %v1347
      %v1349 = vrot.slane %v552, 7
      %v1350 = vor.u32 %v1349, %v555
      %v1351 = vsel %vm1280, %v1343, %v1350
      %v1352 = vrot.slane %v561, 7
      %v1353 = vor.u32 %v1352, %v564
      %v1354 = vsel %vm1280, %v1346, %v1353
      %v1356 = vshrl.u32 %v1245, 16
      %v1358 = vrot.slane %v1356, 7
      %v1359 = vshll.u32 %v1245, 16
      %v1361 = vor.u32 %v1358, %v1359
      %v1362 = vsel %vm1280, %v1349, %v1361
      %v1364 = vshrl.u32 %v1246, 16
      %v1366 = vrot.slane %v1364, 7
      %v1367 = vshll.u32 %v1246, 16
      %v1369 = vor.u32 %v1366, %v1367
      %v1370 = vsel %vm1280, %v1352, %v1369
      %v1427 = vunpack.c.l.b16 %v1248
      %v1428 = vunpack.c.l.b16 %v1249
      %v1429 = vunpack.c.l.b16 %v1250
      %v1430 = vunpack.c.l.b16 %v1251
      %v1431 = vunpack.c.l.b16 %v1252
      %v1432 = vunpack.c.l.b16 %v1253
      %v1433 = vunpack.c.l.b16 %v1254
      %v1434 = vunpack.c.l.b16 %v1255
      %v1435 = vunpack.c.l.b16 %v1256
      %v1436 = vunpack.c.l.b16 %v1257
      %v1437 = vunpack.c.l.b16 %v1258
      %v1438 = vunpack.c.l.b16 %v1259
      %v1439 = vunpack.c.l.b16 %v1260
      %v1440 = vunpack.c.l.b16 %v1261
      %v1441 = vunpack.c.l.b16 %v1262
      %v1442 = vunpack.c.l.b16 %v1263
      %v1443 = vunpack.c.l.b16 %v1264
      %v1444 = vunpack.c.l.b16 %v1265
      %v1445 = vunpack.c.l.b16 %v1266
      %v1446 = vunpack.c.l.b16 %v1267
      %v1447 = vunpack.c.l.b16 %v1268
      %v1448 = vunpack.c.l.b16 %v1269
      %v1449 = vunpack.c.l.b16 %v1270
      %v1450 = vunpack.c.l.b16 %v1271
      %v1451 = vunpack.c.l.b16 %v1272
      %v1452 = vunpack.c.l.b16 %v1273
      %v1453 = vunpack.c.l.b16 %v1274
      %v1454 = vunpack.c.l.b16 %v1275
      %v1455 = vunpack.c.l.b16 %v1276
      %v1456 = vunpack.c.l.b16 %v1277
      %v1457 = vunpack.c.l.b16 %v1278
      %v1458 = vunpack.c.l.b16 %v1279
      %v1459 = vpack.c.b16 %v1428, %v1427
      %v1460 = vpack.c.b16 %v1430, %v1429
      %v1461 = vpack.c.b16 %v1432, %v1431
      %v1462 = vpack.c.b16 %v1434, %v1433
      %v1463 = vpack.c.b16 %v1436, %v1435
      %v1464 = vpack.c.b16 %v1438, %v1437
      %v1465 = vpack.c.b16 %v1440, %v1439
      %v1466 = vpack.c.b16 %v1442, %v1441
      %v1467 = vpack.c.b16 %v1444, %v1443
      %v1468 = vpack.c.b16 %v1446, %v1445
      %v1469 = vpack.c.b16 %v1448, %v1447
      %v1470 = vpack.c.b16 %v1450, %v1449
      %v1471 = vpack.c.b16 %v1452, %v1451
      %v1472 = vpack.c.b16 %v1454, %v1453
      %v1473 = vpack.c.b16 %v1456, %v1455
      %v1474 = vpack.c.b16 %v1458, %v1457
      %1491 = vmatprep.subr.bf16.mxu0 0
      %1492 = vmatpush1.bf16.msra.mxu0 %v1459
      %1493 = vmatprep.subr.bf16.mxu0 0
      %1494 = vmatpush1.bf16.msra.mxu0 %v1460
      %1495 = vmatprep.subr.bf16.mxu0 0
      %1496 = vmatpush1.bf16.msra.mxu0 %v1461
      %1497 = vmatprep.subr.bf16.mxu0 0
      %1498 = vmatpush1.bf16.msra.mxu0 %v1462
      %1499 = vmatprep.subr.bf16.mxu0 0
      %1500 = vmatpush1.bf16.msra.mxu0 %v1463
      %1501 = vmatprep.subr.bf16.mxu0 0
      %1502 = vmatpush1.bf16.msra.mxu0 %v1464
      %1503 = vmatprep.subr.bf16.mxu0 0
      %1504 = vmatpush1.bf16.msra.mxu0 %v1465
      %1505 = vmatprep.subr.bf16.mxu0 0
      %1506 = vmatpush1.bf16.msra.mxu0 %v1466
      %1507 = vmatprep.subr.bf16.mxu0 0
      %1508 = vmatpush1.bf16.msra.mxu0 %v1467
      %1509 = vmatprep.subr.bf16.mxu0 0
      %1510 = vmatpush1.bf16.msra.mxu0 %v1468
      %1511 = vmatprep.subr.bf16.mxu0 0
      %1512 = vmatpush1.bf16.msra.mxu0 %v1469
      %1513 = vmatprep.subr.bf16.mxu0 0
      %1514 = vmatpush1.bf16.msra.mxu0 %v1470
      %1515 = vmatprep.subr.bf16.mxu0 0
      %1516 = vmatpush1.bf16.msra.mxu0 %v1471
      %1517 = vmatprep.subr.bf16.mxu0 0
      %1518 = vmatpush1.bf16.msra.mxu0 %v1472
      %1519 = vmatprep.subr.bf16.mxu0 0
      %1520 = vmatpush1.bf16.msra.mxu0 %v1473
      %1521 = vmatprep.subr.bf16.mxu0 0
      %1522 = vmatpush1.bf16.msra.mxu0 %v1474
      %1523 = vmatprep.mubr.bf16.mxu0 %v1294
      %1524 = vmatmul.mubr.bf16.gmra.mrb[0].mxu0 %v1287
      %v1525 = vpop.f32.mrb[0].mxu0
      %v1526 = vadd.f32 0.0, %v1525
      %v1527 = vpop.f32.mrb[0].mxu0
      %v1528 = vpop.f32.mrb[0].mxu0
      %v1529 = vadd.f32 0.0, %v1528
      %v1530 = vpop.f32.mrb[0].mxu0
      %1531 = vmatprep.mubr.bf16.mxu0 %v1300
      %1532 = vmatmul.mubr.bf16.gmra.mrb[0].mxu0 %v1297
      %v1533 = vpop.f32.mrb[0].mxu0
      %v1534 = vadd.f32 0.0, %v1533
      %v1535 = vpop.f32.mrb[0].mxu0
      %v1536 = vpop.f32.mrb[0].mxu0
      %v1537 = vadd.f32 0.0, %v1536
      %v1538 = vpop.f32.mrb[0].mxu0
      %1539 = vmatprep.mubr.bf16.mxu0 %v1306
      %1540 = vmatmul.mubr.bf16.gmra.mrb[0].mxu0 %v1303
      %v1541 = vpop.f32.mrb[0].mxu0
      %v1542 = vadd.f32 0.0, %v1541
      %v1543 = vpop.f32.mrb[0].mxu0
      %v1544 = vpop.f32.mrb[0].mxu0
      %v1545 = vadd.f32 0.0, %v1544
      %v1546 = vpop.f32.mrb[0].mxu0
      %1547 = vmatprep.mubr.bf16.mxu0 %v1312
      %1548 = vmatmul.mubr.bf16.gmra.mrb[0].mxu0 %v1309
      %v1549 = vpop.f32.mrb[0].mxu0
      %v1550 = vadd.f32 0.0, %v1549
      %v1551 = vpop.f32.mrb[0].mxu0
      %v1552 = vpop.f32.mrb[0].mxu0
      %v1553 = vadd.f32 0.0, %v1552
      %v1554 = vpop.f32.mrb[0].mxu0
      %1555 = vmatprep.mubr.bf16.mxu0 %v1318
      %1556 = vmatmul.mubr.bf16.gmra.mrb[0].mxu0 %v1315
      %v1557 = vpop.f32.mrb[0].mxu0
      %v1558 = vadd.f32 0.0, %v1557
      %v1559 = vpop.f32.mrb[0].mxu0
      %v1560 = vpop.f32.mrb[0].mxu0
      %v1561 = vadd.f32 0.0, %v1560
      %v1562 = vpop.f32.mrb[0].mxu0
      %1563 = vmatprep.mubr.bf16.mxu0 %v1324
      %1564 = vmatmul.mubr.bf16.gmra.mrb[0].mxu0 %v1321
      %v1565 = vpop.f32.mrb[0].mxu0
      %v1566 = vadd.f32 0.0, %v1565
      %v1567 = vpop.f32.mrb[0].mxu0
      %v1568 = vpop.f32.mrb[0].mxu0
      %v1569 = vadd.f32 0.0, %v1568
      %v1570 = vpop.f32.mrb[0].mxu0
      %1571 = vmatprep.mubr.bf16.mxu0 %v1330
      %1572 = vmatmul.mubr.bf16.gmra.mrb[0].mxu0 %v1327
      %v1573 = vpop.f32.mrb[0].mxu0
      %v1574 = vadd.f32 0.0, %v1573
      %v1575 = vpop.f32.mrb[0].mxu0
      %v1576 = vpop.f32.mrb[0].mxu0
      %v1577 = vadd.f32 0.0, %v1576
      %v1578 = vpop.f32.mrb[0].mxu0
      %1579 = vmatprep.mubr.bf16.mxu0 %v1336
      %1580 = vmatmul.mubr.bf16.gmra.mrb[0].mxu0 %v1333
      %v1581 = vpop.f32.mrb[0].mxu0
      %v1582 = vadd.f32 0.0, %v1581
      %v1583 = vpop.f32.mrb[0].mxu0
      %v1584 = vpop.f32.mrb[0].mxu0
      %v1585 = vadd.f32 0.0, %v1584
      %v1586 = vpop.f32.mrb[0].mxu0
      %1587 = vmatprep.mubr.bf16.mxu0 %v1342
      %1588 = vmatmul.mubr.bf16.gmra.mrb[0].mxu0 %v1339
      %v1589 = vpop.f32.mrb[0].mxu0
      %v1590 = vadd.f32 0.0, %v1589
      %v1591 = vpop.f32.mrb[0].mxu0
      %v1592 = vpop.f32.mrb[0].mxu0
      %v1593 = vadd.f32 0.0, %v1592
      %v1594 = vpop.f32.mrb[0].mxu0
      %1595 = vmatprep.mubr.bf16.mxu0 %v1348
      %1596 = vmatmul.mubr.bf16.gmra.mrb[0].mxu0 %v1345
      %v1597 = vpop.f32.mrb[0].mxu0
      %v1598 = vadd.f32 0.0, %v1597
      %v1599 = vpop.f32.mrb[0].mxu0
      %v1600 = vpop.f32.mrb[0].mxu0
      %v1601 = vadd.f32 0.0, %v1600
      %v1602 = vpop.f32.mrb[0].mxu0
      %1603 = vmatprep.mubr.bf16.mxu0 %v1354
      %1604 = vmatmul.mubr.bf16.gmra.mrb[0].mxu0 %v1351
      %v1605 = vpop.f32.mrb[0].mxu0
      %v1606 = vadd.f32 0.0, %v1605
      %v1607 = vpop.f32.mrb[0].mxu0
      %v1608 = vpop.f32.mrb[0].mxu0
      %v1609 = vadd.f32 0.0, %v1608
      %v1610 = vpop.f32.mrb[0].mxu0
      %1611 = vmatprep.mubr.bf16.mxu0 %v1370
      %1612 = vmatmul.mubr.bf16.gmra.mrb[0].mxu0 %v1362
      %v1613 = vpop.f32.mrb[0].mxu0
      %v1614 = vadd.f32 0.0, %v1613
      %v1615 = vpop.f32.mrb[0].mxu0
      %v1616 = vpop.f32.mrb[0].mxu0
      %v1617 = vadd.f32 0.0, %v1616
      %v1618 = vpop.f32.mrb[0].mxu0
      %1619 = vdwg.mxu0
      %v1620 = vadd.f32 %v1221, %v1526
      %v1621 = vadd.f32 %v1222, %v1529
      %v1622 = vadd.f32 %v1223, %v1534
      %v1623 = vadd.f32 %v1224, %v1537
      %v1624 = vadd.f32 %v1225, %v1542
      %v1625 = vadd.f32 %v1226, %v1545
      %v1626 = vadd.f32 %v1227, %v1550
      %v1627 = vadd.f32 %v1228, %v1553
      %v1628 = vadd.f32 %v1229, %v1558
      %v1629 = vadd.f32 %v1230, %v1561
      %v1630 = vadd.f32 %v1231, %v1566
      %v1631 = vadd.f32 %v1232, %v1569
      %v1632 = vadd.f32 %v1233, %v1574
      %v1633 = vadd.f32 %v1234, %v1577
      %v1634 = vadd.f32 %v1235, %v1582
      %v1635 = vadd.f32 %v1236, %v1585
      %v1636 = vadd.f32 %v1237, %v1590
      %v1637 = vadd.f32 %v1238, %v1593
      %v1638 = vadd.f32 %v1239, %v1598
      %v1639 = vadd.f32 %v1240, %v1601
      %v1640 = vadd.f32 %v1241, %v1606
      %v1641 = vadd.f32 %v1242, %v1609
      %v1642 = vadd.f32 %v1243, %v1614
      %v1643 = vadd.f32 %v1244, %v1617
      %v1644 = vld [vmem:[#allocation2 + $0x10] sm:$0xc0]
      %v1645 = vld [vmem:[#allocation2 + $0x18] sm:$0xc0]
      %v1646 = vld [vmem:[#allocation2 + $0x20] sm:$0xff]
      %v1647 = vld [vmem:[#allocation2 + $0x28] sm:$0xff]
      %v1648 = vld [vmem:[#allocation2 + $0x30] sm:$0xff]
      %v1649 = vld [vmem:[#allocation2 + $0x38] sm:$0xff]
      %v1650 = vld [vmem:[#allocation2 + $0x40] sm:$0xff]
      %v1651 = vld [vmem:[#allocation2 + $0x48] sm:$0xff]
      %v1652 = vld [vmem:[#allocation2 + $0x50] sm:$0xff]
      %v1653 = vld [vmem:[#allocation2 + $0x58] sm:$0xff]
      %v1654 = vld [vmem:[#allocation2 + $0x60] sm:$0xff]
      %v1655 = vld [vmem:[#allocation2 + $0x68] sm:$0xff]
      %v1656 = vld [vmem:[#allocation2 + $0x70] sm:$0xff]
      %v1657 = vld [vmem:[#allocation2 + $0x78] sm:$0xff]
      %v1658 = vld [vmem:[#allocation2 + $0x80] sm:$0xff]
      %v1659 = vld [vmem:[#allocation2 + $0x88] sm:$0xff]
      %v1660 = vld [vmem:[#allocation2 + $0x90] sm:$0xff]
      %v1661 = vld [vmem:[#allocation2 + $0x98] sm:$0xff]
      %v1662 = vld [vmem:[#allocation2 + $0xa0] sm:$0xff]
      %v1663 = vld [vmem:[#allocation2 + $0xa8] sm:$0xff]
      %v1664 = vld [vmem:[#allocation2 + $0xb0] sm:$0xff]
      %v1665 = vld [vmem:[#allocation2 + $0xb8] sm:$0xff]
      %v1666 = vld [vmem:[#allocation2 + $0xc0] sm:$0xff]
      %v1667 = vld [vmem:[#allocation2 + $0xc8] sm:$0xff]
      %v1668 = vld [vmem:[#allocation2 + $0xd0] sm:$0x7f]
      %v1669 = vld [vmem:[#allocation2 + $0xd8] sm:$0x7f]
      %s1670 = scalar_lea.vmem %s1, 384
      %v1671 = vld [vmem:[%s1670] sm:$0xf]
      %v1672 = vld [vmem:[%s1670 + $0x4] sm:$0xf]
      %v1673 = vld [vmem:[%s1670 + $0x8] sm:$0xf]
      %v1674 = vld [vmem:[%s1670 + $0xc] sm:$0xf]
      %v1675 = vld [vmem:[%s1670 + $0x10] sm:$0xf]
      %v1676 = vld [vmem:[%s1670 + $0x14] sm:$0xf]
      %v1677 = vld [vmem:[%s1670 + $0x18] sm:$0xf]
      %v1678 = vld [vmem:[%s1670 + $0x1c] sm:$0xf]
      %v1679 = vld [vmem:[%s1670 + $0x20] sm:$0xf]
      %v1680 = vld [vmem:[%s1670 + $0x24] sm:$0xf]
      %v1681 = vld [vmem:[%s1670 + $0x28] sm:$0xf]
      %v1682 = vld [vmem:[%s1670 + $0x2c] sm:$0xf]
      %v1683 = vld [vmem:[%s1670 + $0x30] sm:$0xf]
      %v1684 = vld [vmem:[%s1670 + $0x34] sm:$0xf]
      %v1685 = vld [vmem:[%s1670 + $0x38] sm:$0xf]
      %v1686 = vld [vmem:[%s1670 + $0x3c] sm:$0xf]
      %v1687 = vld [vmem:[%s1670 + $0x40] sm:$0xf]
      %v1688 = vld [vmem:[%s1670 + $0x44] sm:$0xf]
      %v1689 = vld [vmem:[%s1670 + $0x48] sm:$0xf]
      %v1690 = vld [vmem:[%s1670 + $0x4c] sm:$0xf]
      %v1691 = vld [vmem:[%s1670 + $0x50] sm:$0xf]
      %v1692 = vld [vmem:[%s1670 + $0x54] sm:$0xf]
      %v1693 = vld [vmem:[%s1670 + $0x58] sm:$0xf]
      %v1694 = vld [vmem:[%s1670 + $0x5c] sm:$0xf]
      %v1695 = vld [vmem:[%s1670 + $0x60] sm:$0xf]
      %v1696 = vld [vmem:[%s1670 + $0x64] sm:$0xf]
      %v1697 = vld [vmem:[%s1670 + $0x68] sm:$0xf]
      %v1698 = vld [vmem:[%s1670 + $0x6c] sm:$0xf]
      %v1699 = vld [vmem:[%s1670 + $0x70] sm:$0xf]
      %v1700 = vld [vmem:[%s1670 + $0x74] sm:$0xf]
      %v1701 = vld [vmem:[%s1670 + $0x78] sm:$0xf]
      %v1702 = vld [vmem:[%s1670 + $0x7c] sm:$0xf]
      %v1704 = vshrl.u32 %v1644, 16
      %v1706 = vrot.slane %v1704, 6
      %v1707 = vshll.u32 %v1644, 16
      %v1709 = vrot.slane %v1707, 7
      %v1710 = vor.u32 %v1706, %v1709
      %v1712 = vshrl.u32 %v1646, 16
      %v1714 = vrot.slane %v1712, 6
      %v1715 = vshll.u32 %v1646, 16
      %v1717 = vrot.slane %v1715, 7
      %v1718 = vor.u32 %v1714, %v1717
      %v1719 = vsel %vm354, %v1710, %v1718
      %v1721 = vshrl.u32 %v1645, 16
      %v1723 = vrot.slane %v1721, 6
      %v1724 = vshll.u32 %v1645, 16
      %v1726 = vrot.slane %v1724, 7
      %v1727 = vor.u32 %v1723, %v1726
      %v1729 = vshrl.u32 %v1647, 16
      %v1731 = vrot.slane %v1729, 6
      %v1732 = vshll.u32 %v1647, 16
      %v1734 = vrot.slane %v1732, 7
      %v1735 = vor.u32 %v1731, %v1734
      %v1736 = vsel %vm354, %v1727, %v1735
      %v1738 = vshrl.u32 %v1648, 16
      %v1740 = vrot.slane %v1738, 6
      %v1741 = vshll.u32 %v1648, 16
      %v1743 = vrot.slane %v1741, 7
      %v1744 = vor.u32 %v1740, %v1743
      %v1745 = vsel %vm354, %v1718, %v1744
      %v1747 = vshrl.u32 %v1649, 16
      %v1749 = vrot.slane %v1747, 6
      %v1750 = vshll.u32 %v1649, 16
      %v1752 = vrot.slane %v1750, 7
      %v1753 = vor.u32 %v1749, %v1752
      %v1754 = vsel %vm354, %v1735, %v1753
      %v1756 = vshrl.u32 %v1650, 16
      %v1758 = vrot.slane %v1756, 6
      %v1759 = vshll.u32 %v1650, 16
      %v1761 = vrot.slane %v1759, 7
      %v1762 = vor.u32 %v1758, %v1761
      %v1763 = vsel %vm354, %v1744, %v1762
      %v1765 = vshrl.u32 %v1651, 16
      %v1767 = vrot.slane %v1765, 6
      %v1768 = vshll.u32 %v1651, 16
      %v1770 = vrot.slane %v1768, 7
      %v1771 = vor.u32 %v1767, %v1770
      %v1772 = vsel %vm354, %v1753, %v1771
      %v1774 = vshrl.u32 %v1652, 16
      %v1776 = vrot.slane %v1774, 6
      %v1777 = vshll.u32 %v1652, 16
      %v1779 = vrot.slane %v1777, 7
      %v1780 = vor.u32 %v1776, %v1779
      %v1781 = vsel %vm354, %v1762, %v1780
      %v1783 = vshrl.u32 %v1653, 16
      %v1785 = vrot.slane %v1783, 6
      %v1786 = vshll.u32 %v1653, 16
      %v1788 = vrot.slane %v1786, 7
      %v1789 = vor.u32 %v1785, %v1788
      %v1790 = vsel %vm354, %v1771, %v1789
      %v1792 = vshrl.u32 %v1654, 16
      %v1794 = vrot.slane %v1792, 6
      %v1795 = vshll.u32 %v1654, 16
      %v1797 = vrot.slane %v1795, 7
      %v1798 = vor.u32 %v1794, %v1797
      %v1799 = vsel %vm354, %v1780, %v1798
      %v1801 = vshrl.u32 %v1655, 16
      %v1803 = vrot.slane %v1801, 6
      %v1804 = vshll.u32 %v1655, 16
      %v1806 = vrot.slane %v1804, 7
      %v1807 = vor.u32 %v1803, %v1806
      %v1808 = vsel %vm354, %v1789, %v1807
      %v1810 = vshrl.u32 %v1656, 16
      %v1812 = vrot.slane %v1810, 6
      %v1813 = vshll.u32 %v1656, 16
      %v1815 = vrot.slane %v1813, 7
      %v1816 = vor.u32 %v1812, %v1815
      %v1817 = vsel %vm354, %v1798, %v1816
      %v1819 = vshrl.u32 %v1657, 16
      %v1821 = vrot.slane %v1819, 6
      %v1822 = vshll.u32 %v1657, 16
      %v1824 = vrot.slane %v1822, 7
      %v1825 = vor.u32 %v1821, %v1824
      %v1826 = vsel %vm354, %v1807, %v1825
      %v1828 = vshrl.u32 %v1658, 16
      %v1830 = vrot.slane %v1828, 6
      %v1831 = vshll.u32 %v1658, 16
      %v1833 = vrot.slane %v1831, 7
      %v1834 = vor.u32 %v1830, %v1833
      %v1835 = vsel %vm354, %v1816, %v1834
      %v1837 = vshrl.u32 %v1659, 16
      %v1839 = vrot.slane %v1837, 6
      %v1840 = vshll.u32 %v1659, 16
      %v1842 = vrot.slane %v1840, 7
      %v1843 = vor.u32 %v1839, %v1842
      %v1844 = vsel %vm354, %v1825, %v1843
      %v1846 = vshrl.u32 %v1660, 16
      %v1848 = vrot.slane %v1846, 6
      %v1849 = vshll.u32 %v1660, 16
      %v1851 = vrot.slane %v1849, 7
      %v1852 = vor.u32 %v1848, %v1851
      %v1853 = vsel %vm354, %v1834, %v1852
      %v1855 = vshrl.u32 %v1661, 16
      %v1857 = vrot.slane %v1855, 6
      %v1858 = vshll.u32 %v1661, 16
      %v1860 = vrot.slane %v1858, 7
      %v1861 = vor.u32 %v1857, %v1860
      %v1862 = vsel %vm354, %v1843, %v1861
      %v1864 = vshrl.u32 %v1662, 16
      %v1866 = vrot.slane %v1864, 6
      %v1867 = vshll.u32 %v1662, 16
      %v1869 = vrot.slane %v1867, 7
      %v1870 = vor.u32 %v1866, %v1869
      %v1871 = vsel %vm354, %v1852, %v1870
      %v1873 = vshrl.u32 %v1663, 16
      %v1875 = vrot.slane %v1873, 6
      %v1876 = vshll.u32 %v1663, 16
      %v1878 = vrot.slane %v1876, 7
      %v1879 = vor.u32 %v1875, %v1878
      %v1880 = vsel %vm354, %v1861, %v1879
      %v1882 = vshrl.u32 %v1664, 16
      %v1884 = vrot.slane %v1882, 6
      %v1885 = vshll.u32 %v1664, 16
      %v1887 = vrot.slane %v1885, 7
      %v1888 = vor.u32 %v1884, %v1887
      %v1889 = vsel %vm354, %v1870, %v1888
      %v1891 = vshrl.u32 %v1665, 16
      %v1893 = vrot.slane %v1891, 6
      %v1894 = vshll.u32 %v1665, 16
      %v1896 = vrot.slane %v1894, 7
      %v1897 = vor.u32 %v1893, %v1896
      %v1898 = vsel %vm354, %v1879, %v1897
      %v1900 = vshrl.u32 %v1666, 16
      %v1902 = vrot.slane %v1900, 6
      %v1903 = vshll.u32 %v1666, 16
      %v1905 = vrot.slane %v1903, 7
      %v1906 = vor.u32 %v1902, %v1905
      %v1907 = vsel %vm354, %v1888, %v1906
      %v1909 = vshrl.u32 %v1667, 16
      %v1911 = vrot.slane %v1909, 6
      %v1912 = vshll.u32 %v1667, 16
      %v1914 = vrot.slane %v1912, 7
      %v1915 = vor.u32 %v1911, %v1914
      %v1916 = vsel %vm354, %v1897, %v1915
      %v1918 = vshrl.u32 %v1668, 16
      %v1920 = vrot.slane %v1918, 6
      %v1921 = vshll.u32 %v1668, 16
      %v1923 = vrot.slane %v1921, 7
      %v1924 = vor.u32 %v1920, %v1923
      %v1925 = vsel %vm354, %v1906, %v1924
      %v1927 = vshrl.u32 %v1669, 16
      %v1929 = vrot.slane %v1927, 6
      %v1930 = vshll.u32 %v1669, 16
      %v1932 = vrot.slane %v1930, 7
      %v1933 = vor.u32 %v1929, %v1932
      %v1934 = vsel %vm354, %v1915, %v1933
      %v1991 = vunpack.c.l.b16 %v1671
      %v1992 = vunpack.c.l.b16 %v1672
      %v1993 = vunpack.c.l.b16 %v1673
      %v1994 = vunpack.c.l.b16 %v1674
      %v1995 = vunpack.c.l.b16 %v1675
      %v1996 = vunpack.c.l.b16 %v1676
      %v1997 = vunpack.c.l.b16 %v1677
      %v1998 = vunpack.c.l.b16 %v1678
      %v1999 = vunpack.c.l.b16 %v1679
      %v2000 = vunpack.c.l.b16 %v1680
      %v2001 = vunpack.c.l.b16 %v1681
      %v2002 = vunpack.c.l.b16 %v1682
      %v2003 = vunpack.c.l.b16 %v1683
      %v2004 = vunpack.c.l.b16 %v1684
      %v2005 = vunpack.c.l.b16 %v1685
      %v2006 = vunpack.c.l.b16 %v1686
      %v2007 = vunpack.c.l.b16 %v1687
      %v2008 = vunpack.c.l.b16 %v1688
      %v2009 = vunpack.c.l.b16 %v1689
      %v2010 = vunpack.c.l.b16 %v1690
      %v2011 = vunpack.c.l.b16 %v1691
      %v2012 = vunpack.c.l.b16 %v1692
      %v2013 = vunpack.c.l.b16 %v1693
      %v2014 = vunpack.c.l.b16 %v1694
      %v2015 = vunpack.c.l.b16 %v1695
      %v2016 = vunpack.c.l.b16 %v1696
      %v2017 = vunpack.c.l.b16 %v1697
      %v2018 = vunpack.c.l.b16 %v1698
      %v2019 = vunpack.c.l.b16 %v1699
      %v2020 = vunpack.c.l.b16 %v1700
      %v2021 = vunpack.c.l.b16 %v1701
      %v2022 = vunpack.c.l.b16 %v1702
      %v2023 = vpack.c.b16 %v1992, %v1991
      %v2024 = vpack.c.b16 %v1994, %v1993
      %v2025 = vpack.c.b16 %v1996, %v1995
      %v2026 = vpack.c.b16 %v1998, %v1997
      %v2027 = vpack.c.b16 %v2000, %v1999
      %v2028 = vpack.c.b16 %v2002, %v2001
      %v2029 = vpack.c.b16 %v2004, %v2003
      %v2030 = vpack.c.b16 %v2006, %v2005
      %v2031 = vpack.c.b16 %v2008, %v2007
      %v2032 = vpack.c.b16 %v2010, %v2009
      %v2033 = vpack.c.b16 %v2012, %v2011
      %v2034 = vpack.c.b16 %v2014, %v2013
      %v2035 = vpack.c.b16 %v2016, %v2015
      %v2036 = vpack.c.b16 %v2018, %v2017
      %v2037 = vpack.c.b16 %v2020, %v2019
      %v2038 = vpack.c.b16 %v2022, %v2021
      %2055 = vmatprep.subr.bf16.mxu0 0
      %2056 = vmatpush1.bf16.msra.mxu0 %v2023
      %2057 = vmatprep.subr.bf16.mxu0 0
      %2058 = vmatpush1.bf16.msra.mxu0 %v2024
      %2059 = vmatprep.subr.bf16.mxu0 0
      %2060 = vmatpush1.bf16.msra.mxu0 %v2025
      %2061 = vmatprep.subr.bf16.mxu0 0
      %2062 = vmatpush1.bf16.msra.mxu0 %v2026
      %2063 = vmatprep.subr.bf16.mxu0 0
      %2064 = vmatpush1.bf16.msra.mxu0 %v2027
      %2065 = vmatprep.subr.bf16.mxu0 0
      %2066 = vmatpush1.bf16.msra.mxu0 %v2028
      %2067 = vmatprep.subr.bf16.mxu0 0
      %2068 = vmatpush1.bf16.msra.mxu0 %v2029
      %2069 = vmatprep.subr.bf16.mxu0 0
      %2070 = vmatpush1.bf16.msra.mxu0 %v2030
      %2071 = vmatprep.subr.bf16.mxu0 0
      %2072 = vmatpush1.bf16.msra.mxu0 %v2031
      %2073 = vmatprep.subr.bf16.mxu0 0
      %2074 = vmatpush1.bf16.msra.mxu0 %v2032
      %2075 = vmatprep.subr.bf16.mxu0 0
      %2076 = vmatpush1.bf16.msra.mxu0 %v2033
      %2077 = vmatprep.subr.bf16.mxu0 0
      %2078 = vmatpush1.bf16.msra.mxu0 %v2034
      %2079 = vmatprep.subr.bf16.mxu0 0
      %2080 = vmatpush1.bf16.msra.mxu0 %v2035
      %2081 = vmatprep.subr.bf16.mxu0 0
      %2082 = vmatpush1.bf16.msra.mxu0 %v2036
      %2083 = vmatprep.subr.bf16.mxu0 0
      %2084 = vmatpush1.bf16.msra.mxu0 %v2037
      %2085 = vmatprep.subr.bf16.mxu0 0
      %2086 = vmatpush1.bf16.msra.mxu0 %v2038
      %2087 = vmatprep.mubr.bf16.mxu0 %v1736
      %2088 = vmatmul.mubr.bf16.gmra.mrb[0].mxu0 %v1719
      %v2089 = vpop.f32.mrb[0].mxu0
      %v2090 = vadd.f32 0.0, %v2089
      %v2091 = vpop.f32.mrb[0].mxu0
      %v2092 = vpop.f32.mrb[0].mxu0
      %v2093 = vadd.f32 0.0, %v2092
      %v2094 = vpop.f32.mrb[0].mxu0
      %2095 = vmatprep.mubr.bf16.mxu0 %v1754
      %2096 = vmatmul.mubr.bf16.gmra.mrb[0].mxu0 %v1745
      %v2097 = vpop.f32.mrb[0].mxu0
      %v2098 = vadd.f32 0.0, %v2097
      %v2099 = vpop.f32.mrb[0].mxu0
      %v2100 = vpop.f32.mrb[0].mxu0
      %v2101 = vadd.f32 0.0, %v2100
      %v2102 = vpop.f32.mrb[0].mxu0
      %2103 = vmatprep.mubr.bf16.mxu0 %v1772
      %2104 = vmatmul.mubr.bf16.gmra.mrb[0].mxu0 %v1763
      %v2105 = vpop.f32.mrb[0].mxu0
      %v2106 = vadd.f32 0.0, %v2105
      %v2107 = vpop.f32.mrb[0].mxu0
      %v2108 = vpop.f32.mrb[0].mxu0
      %v2109 = vadd.f32 0.0, %v2108
      %v2110 = vpop.f32.mrb[0].mxu0
      %2111 = vmatprep.mubr.bf16.mxu0 %v1790
      %2112 = vmatmul.mubr.bf16.gmra.mrb[0].mxu0 %v1781
      %v2113 = vpop.f32.mrb[0].mxu0
      %v2114 = vadd.f32 0.0, %v2113
      %v2115 = vpop.f32.mrb[0].mxu0
      %v2116 = vpop.f32.mrb[0].mxu0
      %v2117 = vadd.f32 0.0, %v2116
      %v2118 = vpop.f32.mrb[0].mxu0
      %2119 = vmatprep.mubr.bf16.mxu0 %v1808
      %2120 = vmatmul.mubr.bf16.gmra.mrb[0].mxu0 %v1799
      %v2121 = vpop.f32.mrb[0].mxu0
      %v2122 = vadd.f32 0.0, %v2121
      %v2123 = vpop.f32.mrb[0].mxu0
      %v2124 = vpop.f32.mrb[0].mxu0
      %v2125 = vadd.f32 0.0, %v2124
      %v2126 = vpop.f32.mrb[0].mxu0
      %2127 = vmatprep.mubr.bf16.mxu0 %v1826
      %2128 = vmatmul.mubr.bf16.gmra.mrb[0].mxu0 %v1817
      %v2129 = vpop.f32.mrb[0].mxu0
      %v2130 = vadd.f32 0.0, %v2129
      %v2131 = vpop.f32.mrb[0].mxu0
      %v2132 = vpop.f32.mrb[0].mxu0
      %v2133 = vadd.f32 0.0, %v2132
      %v2134 = vpop.f32.mrb[0].mxu0
      %2135 = vmatprep.mubr.bf16.mxu0 %v1844
      %2136 = vmatmul.mubr.bf16.gmra.mrb[0].mxu0 %v1835
      %v2137 = vpop.f32.mrb[0].mxu0
      %v2138 = vadd.f32 0.0, %v2137
      %v2139 = vpop.f32.mrb[0].mxu0
      %v2140 = vpop.f32.mrb[0].mxu0
      %v2141 = vadd.f32 0.0, %v2140
      %v2142 = vpop.f32.mrb[0].mxu0
      %2143 = vmatprep.mubr.bf16.mxu0 %v1862
      %2144 = vmatmul.mubr.bf16.gmra.mrb[0].mxu0 %v1853
      %v2145 = vpop.f32.mrb[0].mxu0
      %v2146 = vadd.f32 0.0, %v2145
      %v2147 = vpop.f32.mrb[0].mxu0
      %v2148 = vpop.f32.mrb[0].mxu0
      %v2149 = vadd.f32 0.0, %v2148
      %v2150 = vpop.f32.mrb[0].mxu0
      %2151 = vmatprep.mubr.bf16.mxu0 %v1880
      %2152 = vmatmul.mubr.bf16.gmra.mrb[0].mxu0 %v1871
      %v2153 = vpop.f32.mrb[0].mxu0
      %v2154 = vadd.f32 0.0, %v2153
      %v2155 = vpop.f32.mrb[0].mxu0
      %v2156 = vpop.f32.mrb[0].mxu0
      %v2157 = vadd.f32 0.0, %v2156
      %v2158 = vpop.f32.mrb[0].mxu0
      %2159 = vmatprep.mubr.bf16.mxu0 %v1898
      %2160 = vmatmul.mubr.bf16.gmra.mrb[0].mxu0 %v1889
      %v2161 = vpop.f32.mrb[0].mxu0
      %v2162 = vadd.f32 0.0, %v2161
      %v2163 = vpop.f32.mrb[0].mxu0
      %v2164 = vpop.f32.mrb[0].mxu0
      %v2165 = vadd.f32 0.0, %v2164
      %v2166 = vpop.f32.mrb[0].mxu0
      %2167 = vmatprep.mubr.bf16.mxu0 %v1916
      %2168 = vmatmul.mubr.bf16.gmra.mrb[0].mxu0 %v1907
      %v2169 = vpop.f32.mrb[0].mxu0
      %v2170 = vadd.f32 0.0, %v2169
      %v2171 = vpop.f32.mrb[0].mxu0
      %v2172 = vpop.f32.mrb[0].mxu0
      %v2173 = vadd.f32 0.0, %v2172
      %v2174 = vpop.f32.mrb[0].mxu0
      %2175 = vmatprep.mubr.bf16.mxu0 %v1934
      %2176 = vmatmul.mubr.bf16.gmra.mrb[0].mxu0 %v1925
      %v2177 = vpop.f32.mrb[0].mxu0
      %v2178 = vadd.f32 0.0, %v2177
      %v2179 = vpop.f32.mrb[0].mxu0
      %v2180 = vpop.f32.mrb[0].mxu0
      %v2181 = vadd.f32 0.0, %v2180
      %v2182 = vpop.f32.mrb[0].mxu0
      %2183 = vdwg.mxu0
      %v2184 = vadd.f32 %v1620, %v2090
      %v2185 = vadd.f32 %v1621, %v2093
      %v2186 = vadd.f32 %v1622, %v2098
      %v2187 = vadd.f32 %v1623, %v2101
      %v2188 = vadd.f32 %v1624, %v2106
      %v2189 = vadd.f32 %v1625, %v2109
      %v2190 = vadd.f32 %v1626, %v2114
      %v2191 = vadd.f32 %v1627, %v2117
      %v2192 = vadd.f32 %v1628, %v2122
      %v2193 = vadd.f32 %v1629, %v2125
      %v2194 = vadd.f32 %v1630, %v2130
      %v2195 = vadd.f32 %v1631, %v2133
      %v2196 = vadd.f32 %v1632, %v2138
      %v2197 = vadd.f32 %v1633, %v2141
      %v2198 = vadd.f32 %v1634, %v2146
      %v2199 = vadd.f32 %v1635, %v2149
      %v2200 = vadd.f32 %v1636, %v2154
      %v2201 = vadd.f32 %v1637, %v2157
      %v2202 = vadd.f32 %v1638, %v2162
      %v2203 = vadd.f32 %v1639, %v2165
      %v2204 = vadd.f32 %v1640, %v2170
      %v2205 = vadd.f32 %v1641, %v2173
      %v2206 = vadd.f32 %v1642, %v2178
      %v2207 = vadd.f32 %v1643, %v2181
      %v2208 = vld [vmem:[#allocation2 + $0x10] sm:$0x80]
      %v2209 = vld [vmem:[#allocation2 + $0x18] sm:$0x80]
      %s2210 = scalar_lea.vmem %s1, 512
      %v2211 = vld [vmem:[%s2210] sm:$0xf]
      %v2212 = vld [vmem:[%s2210 + $0x4] sm:$0xf]
      %v2213 = vld [vmem:[%s2210 + $0x8] sm:$0xf]
      %v2214 = vld [vmem:[%s2210 + $0xc] sm:$0xf]
      %v2215 = vld [vmem:[%s2210 + $0x10] sm:$0xf]
      %v2216 = vld [vmem:[%s2210 + $0x14] sm:$0xf]
      %v2217 = vld [vmem:[%s2210 + $0x18] sm:$0xf]
      %v2218 = vld [vmem:[%s2210 + $0x1c] sm:$0xf]
      %v2219 = vld [vmem:[%s2210 + $0x20] sm:$0xf]
      %v2220 = vld [vmem:[%s2210 + $0x24] sm:$0xf]
      %v2221 = vld [vmem:[%s2210 + $0x28] sm:$0xf]
      %v2222 = vld [vmem:[%s2210 + $0x2c] sm:$0xf]
      %v2223 = vld [vmem:[%s2210 + $0x30] sm:$0xf]
      %v2224 = vld [vmem:[%s2210 + $0x34] sm:$0xf]
      %v2225 = vld [vmem:[%s2210 + $0x38] sm:$0xf]
      %v2226 = vld [vmem:[%s2210 + $0x3c] sm:$0xf]
      %v2227 = vld [vmem:[%s2210 + $0x40] sm:$0xf]
      %v2228 = vld [vmem:[%s2210 + $0x44] sm:$0xf]
      %v2229 = vld [vmem:[%s2210 + $0x48] sm:$0xf]
      %v2230 = vld [vmem:[%s2210 + $0x4c] sm:$0xf]
      %v2231 = vld [vmem:[%s2210 + $0x50] sm:$0xf]
      %v2232 = vld [vmem:[%s2210 + $0x54] sm:$0xf]
      %v2233 = vld [vmem:[%s2210 + $0x58] sm:$0xf]
      %v2234 = vld [vmem:[%s2210 + $0x5c] sm:$0xf]
      %v2235 = vld [vmem:[%s2210 + $0x60] sm:$0xf]
      %v2236 = vld [vmem:[%s2210 + $0x64] sm:$0xf]
      %v2237 = vld [vmem:[%s2210 + $0x68] sm:$0xf]
      %v2238 = vld [vmem:[%s2210 + $0x6c] sm:$0xf]
      %v2239 = vld [vmem:[%s2210 + $0x70] sm:$0xf]
      %v2240 = vld [vmem:[%s2210 + $0x74] sm:$0xf]
      %v2241 = vld [vmem:[%s2210 + $0x78] sm:$0xf]
      %v2242 = vld [vmem:[%s2210 + $0x7c] sm:$0xf]
      %v2269 = vrot.slane %v2208, 7
      %v2270 = vrot.slane %v1646, 7
      %v2271 = vsel %vm921, %v2269, %v2270
      %v2272 = vrot.slane %v2209, 7
      %v2273 = vrot.slane %v1647, 7
      %v2274 = vsel %vm921, %v2272, %v2273
      %v2275 = vrot.slane %v1648, 7
      %v2276 = vsel %vm921, %v2270, %v2275
      %v2277 = vrot.slane %v1649, 7
      %v2278 = vsel %vm921, %v2273, %v2277
      %v2279 = vrot.slane %v1650, 7
      %v2280 = vsel %vm921, %v2275, %v2279
      %v2281 = vrot.slane %v1651, 7
      %v2282 = vsel %vm921, %v2277, %v2281
      %v2283 = vrot.slane %v1652, 7
      %v2284 = vsel %vm921, %v2279, %v2283
      %v2285 = vrot.slane %v1653, 7
      %v2286 = vsel %vm921, %v2281, %v2285
      %v2287 = vrot.slane %v1654, 7
      %v2288 = vsel %vm921, %v2283, %v2287
      %v2289 = vrot.slane %v1655, 7
      %v2290 = vsel %vm921, %v2285, %v2289
      %v2291 = vrot.slane %v1656, 7
      %v2292 = vsel %vm921, %v2287, %v2291
      %v2293 = vrot.slane %v1657, 7
      %v2294 = vsel %vm921, %v2289, %v2293
      %v2295 = vrot.slane %v1658, 7
      %v2296 = vsel %vm921, %v2291, %v2295
      %v2297 = vrot.slane %v1659, 7
      %v2298 = vsel %vm921, %v2293, %v2297
      %v2299 = vrot.slane %v1660, 7
      %v2300 = vsel %vm921, %v2295, %v2299
      %v2301 = vrot.slane %v1661, 7
      %v2302 = vsel %vm921, %v2297, %v2301
      %v2303 = vrot.slane %v1662, 7
      %v2304 = vsel %vm921, %v2299, %v2303
      %v2305 = vrot.slane %v1663, 7
      %v2306 = vsel %vm921, %v2301, %v2305
      %v2307 = vrot.slane %v1664, 7
      %v2308 = vsel %vm921, %v2303, %v2307
      %v2309 = vrot.slane %v1665, 7
      %v2310 = vsel %vm921, %v2305, %v2309
      %v2311 = vrot.slane %v1666, 7
      %v2312 = vsel %vm921, %v2307, %v2311
      %v2313 = vrot.slane %v1667, 7
      %v2314 = vsel %vm921, %v2309, %v2313
      %v2315 = vrot.slane %v1668, 7
      %v2316 = vsel %vm921, %v2311, %v2315
      %v2317 = vrot.slane %v1669, 7
      %v2318 = vsel %vm921, %v2313, %v2317
      %v2375 = vunpack.c.l.b16 %v2211
      %v2376 = vunpack.c.l.b16 %v2212
      %v2377 = vunpack.c.l.b16 %v2213
      %v2378 = vunpack.c.l.b16 %v2214
      %v2379 = vunpack.c.l.b16 %v2215
      %v2380 = vunpack.c.l.b16 %v2216
      %v2381 = vunpack.c.l.b16 %v2217
      %v2382 = vunpack.c.l.b16 %v2218
      %v2383 = vunpack.c.l.b16 %v2219
      %v2384 = vunpack.c.l.b16 %v2220
      %v2385 = vunpack.c.l.b16 %v2221
      %v2386 = vunpack.c.l.b16 %v2222
      %v2387 = vunpack.c.l.b16 %v2223
      %v2388 = vunpack.c.l.b16 %v2224
      %v2389 = vunpack.c.l.b16 %v2225
      %v2390 = vunpack.c.l.b16 %v2226
      %v2391 = vunpack.c.l.b16 %v2227
      %v2392 = vunpack.c.l.b16 %v2228
      %v2393 = vunpack.c.l.b16 %v2229
      %v2394 = vunpack.c.l.b16 %v2230
      %v2395 = vunpack.c.l.b16 %v2231
      %v2396 = vunpack.c.l.b16 %v2232
      %v2397 = vunpack.c.l.b16 %v2233
      %v2398 = vunpack.c.l.b16 %v2234
      %v2399 = vunpack.c.l.b16 %v2235
      %v2400 = vunpack.c.l.b16 %v2236
      %v2401 = vunpack.c.l.b16 %v2237
      %v2402 = vunpack.c.l.b16 %v2238
      %v2403 = vunpack.c.l.b16 %v2239
      %v2404 = vunpack.c.l.b16 %v2240
      %v2405 = vunpack.c.l.b16 %v2241
      %v2406 = vunpack.c.l.b16 %v2242
      %v2407 = vpack.c.b16 %v2376, %v2375
      %v2408 = vpack.c.b16 %v2378, %v2377
      %v2409 = vpack.c.b16 %v2380, %v2379
      %v2410 = vpack.c.b16 %v2382, %v2381
      %v2411 = vpack.c.b16 %v2384, %v2383
      %v2412 = vpack.c.b16 %v2386, %v2385
      %v2413 = vpack.c.b16 %v2388, %v2387
      %v2414 = vpack.c.b16 %v2390, %v2389
      %v2415 = vpack.c.b16 %v2392, %v2391
      %v2416 = vpack.c.b16 %v2394, %v2393
      %v2417 = vpack.c.b16 %v2396, %v2395
      %v2418 = vpack.c.b16 %v2398, %v2397
      %v2419 = vpack.c.b16 %v2400, %v2399
      %v2420 = vpack.c.b16 %v2402, %v2401
      %v2421 = vpack.c.b16 %v2404, %v2403
      %v2422 = vpack.c.b16 %v2406, %v2405
      %2439 = vmatprep.subr.bf16.mxu0 0
      %2440 = vmatpush1.bf16.msra.mxu0 %v2407
      %2441 = vmatprep.subr.bf16.mxu0 0
      %2442 = vmatpush1.bf16.msra.mxu0 %v2408
      %2443 = vmatprep.subr.bf16.mxu0 0
      %2444 = vmatpush1.bf16.msra.mxu0 %v2409
      %2445 = vmatprep.subr.bf16.mxu0 0
      %2446 = vmatpush1.bf16.msra.mxu0 %v2410
      %2447 = vmatprep.subr.bf16.mxu0 0
      %2448 = vmatpush1.bf16.msra.mxu0 %v2411
      %2449 = vmatprep.subr.bf16.mxu0 0
      %2450 = vmatpush1.bf16.msra.mxu0 %v2412
      %2451 = vmatprep.subr.bf16.mxu0 0
      %2452 = vmatpush1.bf16.msra.mxu0 %v2413
      %2453 = vmatprep.subr.bf16.mxu0 0
      %2454 = vmatpush1.bf16.msra.mxu0 %v2414
      %2455 = vmatprep.subr.bf16.mxu0 0
      %2456 = vmatpush1.bf16.msra.mxu0 %v2415
      %2457 = vmatprep.subr.bf16.mxu0 0
      %2458 = vmatpush1.bf16.msra.mxu0 %v2416
      %2459 = vmatprep.subr.bf16.mxu0 0
      %2460 = vmatpush1.bf16.msra.mxu0 %v2417
      %2461 = vmatprep.subr.bf16.mxu0 0
      %2462 = vmatpush1.bf16.msra.mxu0 %v2418
      %2463 = vmatprep.subr.bf16.mxu0 0
      %2464 = vmatpush1.bf16.msra.mxu0 %v2419
      %2465 = vmatprep.subr.bf16.mxu0 0
      %2466 = vmatpush1.bf16.msra.mxu0 %v2420
      %2467 = vmatprep.subr.bf16.mxu0 0
      %2468 = vmatpush1.bf16.msra.mxu0 %v2421
      %2469 = vmatprep.subr.bf16.mxu0 0
      %2470 = vmatpush1.bf16.msra.mxu0 %v2422
      %2471 = vmatprep.mubr.bf16.mxu0 %v2274
      %2472 = vmatmul.mubr.bf16.gmra.mrb[0].mxu0 %v2271
      %v2473 = vpop.f32.mrb[0].mxu0
      %v2474 = vadd.f32 0.0, %v2473
      %v2475 = vpop.f32.mrb[0].mxu0
      %v2476 = vpop.f32.mrb[0].mxu0
      %v2477 = vadd.f32 0.0, %v2476
      %v2478 = vpop.f32.mrb[0].mxu0
      %2479 = vmatprep.mubr.bf16.mxu0 %v2278
      %2480 = vmatmul.mubr.bf16.gmra.mrb[0].mxu0 %v2276
      %v2481 = vpop.f32.mrb[0].mxu0
      %v2482 = vadd.f32 0.0, %v2481
      %v2483 = vpop.f32.mrb[0].mxu0
      %v2484 = vpop.f32.mrb[0].mxu0
      %v2485 = vadd.f32 0.0, %v2484
      %v2486 = vpop.f32.mrb[0].mxu0
      %2487 = vmatprep.mubr.bf16.mxu0 %v2282
      %2488 = vmatmul.mubr.bf16.gmra.mrb[0].mxu0 %v2280
      %v2489 = vpop.f32.mrb[0].mxu0
      %v2490 = vadd.f32 0.0, %v2489
      %v2491 = vpop.f32.mrb[0].mxu0
      %v2492 = vpop.f32.mrb[0].mxu0
      %v2493 = vadd.f32 0.0, %v2492
      %v2494 = vpop.f32.mrb[0].mxu0
      %2495 = vmatprep.mubr.bf16.mxu0 %v2286
      %2496 = vmatmul.mubr.bf16.gmra.mrb[0].mxu0 %v2284
      %v2497 = vpop.f32.mrb[0].mxu0
      %v2498 = vadd.f32 0.0, %v2497
      %v2499 = vpop.f32.mrb[0].mxu0
      %v2500 = vpop.f32.mrb[0].mxu0
      %v2501 = vadd.f32 0.0, %v2500
      %v2502 = vpop.f32.mrb[0].mxu0
      %2503 = vmatprep.mubr.bf16.mxu0 %v2290
      %2504 = vmatmul.mubr.bf16.gmra.mrb[0].mxu0 %v2288
      %v2505 = vpop.f32.mrb[0].mxu0
      %v2506 = vadd.f32 0.0, %v2505
      %v2507 = vpop.f32.mrb[0].mxu0
      %v2508 = vpop.f32.mrb[0].mxu0
      %v2509 = vadd.f32 0.0, %v2508
      %v2510 = vpop.f32.mrb[0].mxu0
      %2511 = vmatprep.mubr.bf16.mxu0 %v2294
      %2512 = vmatmul.mubr.bf16.gmra.mrb[0].mxu0 %v2292
      %v2513 = vpop.f32.mrb[0].mxu0
      %v2514 = vadd.f32 0.0, %v2513
      %v2515 = vpop.f32.mrb[0].mxu0
      %v2516 = vpop.f32.mrb[0].mxu0
      %v2517 = vadd.f32 0.0, %v2516
      %v2518 = vpop.f32.mrb[0].mxu0
      %2519 = vmatprep.mubr.bf16.mxu0 %v2298
      %2520 = vmatmul.mubr.bf16.gmra.mrb[0].mxu0 %v2296
      %v2521 = vpop.f32.mrb[0].mxu0
      %v2522 = vadd.f32 0.0, %v2521
      %v2523 = vpop.f32.mrb[0].mxu0
      %v2524 = vpop.f32.mrb[0].mxu0
      %v2525 = vadd.f32 0.0, %v2524
      %v2526 = vpop.f32.mrb[0].mxu0
      %2527 = vmatprep.mubr.bf16.mxu0 %v2302
      %2528 = vmatmul.mubr.bf16.gmra.mrb[0].mxu0 %v2300
      %v2529 = vpop.f32.mrb[0].mxu0
      %v2530 = vadd.f32 0.0, %v2529
      %v2531 = vpop.f32.mrb[0].mxu0
      %v2532 = vpop.f32.mrb[0].mxu0
      %v2533 = vadd.f32 0.0, %v2532
      %v2534 = vpop.f32.mrb[0].mxu0
      %2535 = vmatprep.mubr.bf16.mxu0 %v2306
      %2536 = vmatmul.mubr.bf16.gmra.mrb[0].mxu0 %v2304
      %v2537 = vpop.f32.mrb[0].mxu0
      %v2538 = vadd.f32 0.0, %v2537
      %v2539 = vpop.f32.mrb[0].mxu0
      %v2540 = vpop.f32.mrb[0].mxu0
      %v2541 = vadd.f32 0.0, %v2540
      %v2542 = vpop.f32.mrb[0].mxu0
      %2543 = vmatprep.mubr.bf16.mxu0 %v2310
      %2544 = vmatmul.mubr.bf16.gmra.mrb[0].mxu0 %v2308
      %v2545 = vpop.f32.mrb[0].mxu0
      %v2546 = vadd.f32 0.0, %v2545
      %v2547 = vpop.f32.mrb[0].mxu0
      %v2548 = vpop.f32.mrb[0].mxu0
      %v2549 = vadd.f32 0.0, %v2548
      %v2550 = vpop.f32.mrb[0].mxu0
      %2551 = vmatprep.mubr.bf16.mxu0 %v2314
      %2552 = vmatmul.mubr.bf16.gmra.mrb[0].mxu0 %v2312
      %v2553 = vpop.f32.mrb[0].mxu0
      %v2554 = vadd.f32 0.0, %v2553
      %v2555 = vpop.f32.mrb[0].mxu0
      %v2556 = vpop.f32.mrb[0].mxu0
      %v2557 = vadd.f32 0.0, %v2556
      %v2558 = vpop.f32.mrb[0].mxu0
      %2559 = vmatprep.mubr.bf16.mxu0 %v2318
      %2560 = vmatmul.mubr.bf16.gmra.mrb[0].mxu0 %v2316
      %v2561 = vpop.f32.mrb[0].mxu0
      %v2562 = vadd.f32 0.0, %v2561
      %v2563 = vpop.f32.mrb[0].mxu0
      %v2564 = vpop.f32.mrb[0].mxu0
      %v2565 = vadd.f32 0.0, %v2564
      %v2566 = vpop.f32.mrb[0].mxu0
      %2567 = vdwg.mxu0
      %v2568 = vadd.f32 %v2184, %v2474
      %v2569 = vadd.f32 %v2185, %v2477
      %v2570 = vadd.f32 %v2186, %v2482
      %v2571 = vadd.f32 %v2187, %v2485
      %v2572 = vadd.f32 %v2188, %v2490
      %v2573 = vadd.f32 %v2189, %v2493
      %v2574 = vadd.f32 %v2190, %v2498
      %v2575 = vadd.f32 %v2191, %v2501
      %v2576 = vadd.f32 %v2192, %v2506
      %v2577 = vadd.f32 %v2193, %v2509
      %v2578 = vadd.f32 %v2194, %v2514
      %v2579 = vadd.f32 %v2195, %v2517
      %v2580 = vadd.f32 %v2196, %v2522
      %v2581 = vadd.f32 %v2197, %v2525
      %v2582 = vadd.f32 %v2198, %v2530
      %v2583 = vadd.f32 %v2199, %v2533
      %v2584 = vadd.f32 %v2200, %v2538
      %v2585 = vadd.f32 %v2201, %v2541
      %v2586 = vadd.f32 %v2202, %v2546
      %v2587 = vadd.f32 %v2203, %v2549
      %v2588 = vadd.f32 %v2204, %v2554
      %v2589 = vadd.f32 %v2205, %v2557
      %v2590 = vadd.f32 %v2206, %v2562
      %v2591 = vadd.f32 %v2207, %v2565
      %v2592 = vld [vmem:[#allocation2 + $0xd0] sm:$0xff]
      %v2593 = vld [vmem:[#allocation2 + $0xd8] sm:$0xff]
      %s2594 = scalar_lea.vmem %s1, 640
      %v2595 = vld [vmem:[%s2594] sm:$0xf]
      %v2596 = vld [vmem:[%s2594 + $0x4] sm:$0xf]
      %v2597 = vld [vmem:[%s2594 + $0x8] sm:$0xf]
      %v2598 = vld [vmem:[%s2594 + $0xc] sm:$0xf]
      %v2599 = vld [vmem:[%s2594 + $0x10] sm:$0xf]
      %v2600 = vld [vmem:[%s2594 + $0x14] sm:$0xf]
      %v2601 = vld [vmem:[%s2594 + $0x18] sm:$0xf]
      %v2602 = vld [vmem:[%s2594 + $0x1c] sm:$0xf]
      %v2603 = vld [vmem:[%s2594 + $0x20] sm:$0xf]
      %v2604 = vld [vmem:[%s2594 + $0x24] sm:$0xf]
      %v2605 = vld [vmem:[%s2594 + $0x28] sm:$0xf]
      %v2606 = vld [vmem:[%s2594 + $0x2c] sm:$0xf]
      %v2607 = vld [vmem:[%s2594 + $0x30] sm:$0xf]
      %v2608 = vld [vmem:[%s2594 + $0x34] sm:$0xf]
      %v2609 = vld [vmem:[%s2594 + $0x38] sm:$0xf]
      %v2610 = vld [vmem:[%s2594 + $0x3c] sm:$0xf]
      %v2611 = vld [vmem:[%s2594 + $0x40] sm:$0xf]
      %v2612 = vld [vmem:[%s2594 + $0x44] sm:$0xf]
      %v2613 = vld [vmem:[%s2594 + $0x48] sm:$0xf]
      %v2614 = vld [vmem:[%s2594 + $0x4c] sm:$0xf]
      %v2615 = vld [vmem:[%s2594 + $0x50] sm:$0xf]
      %v2616 = vld [vmem:[%s2594 + $0x54] sm:$0xf]
      %v2617 = vld [vmem:[%s2594 + $0x58] sm:$0xf]
      %v2618 = vld [vmem:[%s2594 + $0x5c] sm:$0xf]
      %v2619 = vld [vmem:[%s2594 + $0x60] sm:$0xf]
      %v2620 = vld [vmem:[%s2594 + $0x64] sm:$0xf]
      %v2621 = vld [vmem:[%s2594 + $0x68] sm:$0xf]
      %v2622 = vld [vmem:[%s2594 + $0x6c] sm:$0xf]
      %v2623 = vld [vmem:[%s2594 + $0x70] sm:$0xf]
      %v2624 = vld [vmem:[%s2594 + $0x74] sm:$0xf]
      %v2625 = vld [vmem:[%s2594 + $0x78] sm:$0xf]
      %v2626 = vld [vmem:[%s2594 + $0x7c] sm:$0xf]
      %v2628 = vshrl.u32 %v2208, 16
      %v2630 = vrot.slane %v2628, 7
      %v2631 = vrot.slane %v1712, 7
      %v2632 = vor.u32 %v2631, %v1715
      %v2633 = vsel %vm1280, %v2630, %v2632
      %v2635 = vshrl.u32 %v2209, 16
      %v2637 = vrot.slane %v2635, 7
      %v2638 = vrot.slane %v1729, 7
      %v2639 = vor.u32 %v2638, %v1732
      %v2640 = vsel %vm1280, %v2637, %v2639
      %v2641 = vrot.slane %v1738, 7
      %v2642 = vor.u32 %v2641, %v1741
      %v2643 = vsel %vm1280, %v2631, %v2642
      %v2644 = vrot.slane %v1747, 7
      %v2645 = vor.u32 %v2644, %v1750
      %v2646 = vsel %vm1280, %v2638, %v2645
      %v2647 = vrot.slane %v1756, 7
      %v2648 = vor.u32 %v2647, %v1759
      %v2649 = vsel %vm1280, %v2641, %v2648
      %v2650 = vrot.slane %v1765, 7
      %v2651 = vor.u32 %v2650, %v1768
      %v2652 = vsel %vm1280, %v2644, %v2651
      %v2653 = vrot.slane %v1774, 7
      %v2654 = vor.u32 %v2653, %v1777
      %v2655 = vsel %vm1280, %v2647, %v2654
      %v2656 = vrot.slane %v1783, 7
      %v2657 = vor.u32 %v2656, %v1786
      %v2658 = vsel %vm1280, %v2650, %v2657
      %v2659 = vrot.slane %v1792, 7
      %v2660 = vor.u32 %v2659, %v1795
      %v2661 = vsel %vm1280, %v2653, %v2660
      %v2662 = vrot.slane %v1801, 7
      %v2663 = vor.u32 %v2662, %v1804
      %v2664 = vsel %vm1280, %v2656, %v2663
      %v2665 = vrot.slane %v1810, 7
      %v2666 = vor.u32 %v2665, %v1813
      %v2667 = vsel %vm1280, %v2659, %v2666
      %v2668 = vrot.slane %v1819, 7
      %v2669 = vor.u32 %v2668, %v1822
      %v2670 = vsel %vm1280, %v2662, %v2669
      %v2671 = vrot.slane %v1828, 7
      %v2672 = vor.u32 %v2671, %v1831
      %v2673 = vsel %vm1280, %v2665, %v2672
      %v2674 = vrot.slane %v1837, 7
      %v2675 = vor.u32 %v2674, %v1840
      %v2676 = vsel %vm1280, %v2668, %v2675
      %v2677 = vrot.slane %v1846, 7
      %v2678 = vor.u32 %v2677, %v1849
      %v2679 = vsel %vm1280, %v2671, %v2678
      %v2680 = vrot.slane %v1855, 7
      %v2681 = vor.u32 %v2680, %v1858
      %v2682 = vsel %vm1280, %v2674, %v2681
      %v2683 = vrot.slane %v1864, 7
      %v2684 = vor.u32 %v2683, %v1867
      %v2685 = vsel %vm1280, %v2677, %v2684
      %v2686 = vrot.slane %v1873, 7
      %v2687 = vor.u32 %v2686, %v1876
      %v2688 = vsel %vm1280, %v2680, %v2687
      %v2689 = vrot.slane %v1882, 7
      %v2690 = vor.u32 %v2689, %v1885
      %v2691 = vsel %vm1280, %v2683, %v2690
      %v2692 = vrot.slane %v1891, 7
      %v2693 = vor.u32 %v2692, %v1894
      %v2694 = vsel %vm1280, %v2686, %v2693
      %v2695 = vrot.slane %v1900, 7
      %v2696 = vor.u32 %v2695, %v1903
      %v2697 = vsel %vm1280, %v2689, %v2696
      %v2698 = vrot.slane %v1909, 7
      %v2699 = vor.u32 %v2698, %v1912
      %v2700 = vsel %vm1280, %v2692, %v2699
      %v2702 = vshrl.u32 %v2592, 16
      %v2704 = vrot.slane %v2702, 7
      %v2705 = vshll.u32 %v2592, 16
      %v2707 = vor.u32 %v2704, %v2705
      %v2708 = vsel %vm1280, %v2695, %v2707
      %v2710 = vshrl.u32 %v2593, 16
      %v2712 = vrot.slane %v2710, 7
      %v2713 = vshll.u32 %v2593, 16
      %v2715 = vor.u32 %v2712, %v2713
      %v2716 = vsel %vm1280, %v2698, %v2715
      %v2773 = vunpack.c.l.b16 %v2595
      %v2774 = vunpack.c.l.b16 %v2596
      %v2775 = vunpack.c.l.b16 %v2597
      %v2776 = vunpack.c.l.b16 %v2598
      %v2777 = vunpack.c.l.b16 %v2599
      %v2778 = vunpack.c.l.b16 %v2600
      %v2779 = vunpack.c.l.b16 %v2601
      %v2780 = vunpack.c.l.b16 %v2602
      %v2781 = vunpack.c.l.b16 %v2603
      %v2782 = vunpack.c.l.b16 %v2604
      %v2783 = vunpack.c.l.b16 %v2605
      %v2784 = vunpack.c.l.b16 %v2606
      %v2785 = vunpack.c.l.b16 %v2607
      %v2786 = vunpack.c.l.b16 %v2608
      %v2787 = vunpack.c.l.b16 %v2609
      %v2788 = vunpack.c.l.b16 %v2610
      %v2789 = vunpack.c.l.b16 %v2611
      %v2790 = vunpack.c.l.b16 %v2612
      %v2791 = vunpack.c.l.b16 %v2613
      %v2792 = vunpack.c.l.b16 %v2614
      %v2793 = vunpack.c.l.b16 %v2615
      %v2794 = vunpack.c.l.b16 %v2616
      %v2795 = vunpack.c.l.b16 %v2617
      %v2796 = vunpack.c.l.b16 %v2618
      %v2797 = vunpack.c.l.b16 %v2619
      %v2798 = vunpack.c.l.b16 %v2620
      %v2799 = vunpack.c.l.b16 %v2621
      %v2800 = vunpack.c.l.b16 %v2622
      %v2801 = vunpack.c.l.b16 %v2623
      %v2802 = vunpack.c.l.b16 %v2624
      %v2803 = vunpack.c.l.b16 %v2625
      %v2804 = vunpack.c.l.b16 %v2626
      %v2805 = vpack.c.b16 %v2774, %v2773
      %v2806 = vpack.c.b16 %v2776, %v2775
      %v2807 = vpack.c.b16 %v2778, %v2777
      %v2808 = vpack.c.b16 %v2780, %v2779
      %v2809 = vpack.c.b16 %v2782, %v2781
      %v2810 = vpack.c.b16 %v2784, %v2783
      %v2811 = vpack.c.b16 %v2786, %v2785
      %v2812 = vpack.c.b16 %v2788, %v2787
      %v2813 = vpack.c.b16 %v2790, %v2789
      %v2814 = vpack.c.b16 %v2792, %v2791
      %v2815 = vpack.c.b16 %v2794, %v2793
      %v2816 = vpack.c.b16 %v2796, %v2795
      %v2817 = vpack.c.b16 %v2798, %v2797
      %v2818 = vpack.c.b16 %v2800, %v2799
      %v2819 = vpack.c.b16 %v2802, %v2801
      %v2820 = vpack.c.b16 %v2804, %v2803
      %2837 = vmatprep.subr.bf16.mxu0 0
      %2838 = vmatpush1.bf16.msra.mxu0 %v2805
      %2839 = vmatprep.subr.bf16.mxu0 0
      %2840 = vmatpush1.bf16.msra.mxu0 %v2806
      %2841 = vmatprep.subr.bf16.mxu0 0
      %2842 = vmatpush1.bf16.msra.mxu0 %v2807
      %2843 = vmatprep.subr.bf16.mxu0 0
      %2844 = vmatpush1.bf16.msra.mxu0 %v2808
      %2845 = vmatprep.subr.bf16.mxu0 0
      %2846 = vmatpush1.bf16.msra.mxu0 %v2809
      %2847 = vmatprep.subr.bf16.mxu0 0
      %2848 = vmatpush1.bf16.msra.mxu0 %v2810
      %2849 = vmatprep.subr.bf16.mxu0 0
      %2850 = vmatpush1.bf16.msra.mxu0 %v2811
      %2851 = vmatprep.subr.bf16.mxu0 0
      %2852 = vmatpush1.bf16.msra.mxu0 %v2812
      %2853 = vmatprep.subr.bf16.mxu0 0
      %2854 = vmatpush1.bf16.msra.mxu0 %v2813
      %2855 = vmatprep.subr.bf16.mxu0 0
      %2856 = vmatpush1.bf16.msra.mxu0 %v2814
      %2857 = vmatprep.subr.bf16.mxu0 0
      %2858 = vmatpush1.bf16.msra.mxu0 %v2815
      %2859 = vmatprep.subr.bf16.mxu0 0
      %2860 = vmatpush1.bf16.msra.mxu0 %v2816
      %2861 = vmatprep.subr.bf16.mxu0 0
      %2862 = vmatpush1.bf16.msra.mxu0 %v2817
      %2863 = vmatprep.subr.bf16.mxu0 0
      %2864 = vmatpush1.bf16.msra.mxu0 %v2818
      %2865 = vmatprep.subr.bf16.mxu0 0
      %2866 = vmatpush1.bf16.msra.mxu0 %v2819
      %2867 = vmatprep.subr.bf16.mxu0 0
      %2868 = vmatpush1.bf16.msra.mxu0 %v2820
      %2869 = vmatprep.mubr.bf16.mxu0 %v2640
      %2870 = vmatmul.mubr.bf16.gmra.mrb[0].mxu0 %v2633
      %v2871 = vpop.f32.mrb[0].mxu0
      %v2872 = vadd.f32 0.0, %v2871
      %v2873 = vpop.f32.mrb[0].mxu0
      %v2874 = vpop.f32.mrb[0].mxu0
      %v2875 = vadd.f32 0.0, %v2874
      %v2876 = vpop.f32.mrb[0].mxu0
      %2877 = vmatprep.mubr.bf16.mxu0 %v2646
      %2878 = vmatmul.mubr.bf16.gmra.mrb[0].mxu0 %v2643
      %v2879 = vpop.f32.mrb[0].mxu0
      %v2880 = vadd.f32 0.0, %v2879
      %v2881 = vpop.f32.mrb[0].mxu0
      %v2882 = vpop.f32.mrb[0].mxu0
      %v2883 = vadd.f32 0.0, %v2882
      %v2884 = vpop.f32.mrb[0].mxu0
      %2885 = vmatprep.mubr.bf16.mxu0 %v2652
      %2886 = vmatmul.mubr.bf16.gmra.mrb[0].mxu0 %v2649
      %v2887 = vpop.f32.mrb[0].mxu0
      %v2888 = vadd.f32 0.0, %v2887
      %v2889 = vpop.f32.mrb[0].mxu0
      %v2890 = vpop.f32.mrb[0].mxu0
      %v2891 = vadd.f32 0.0, %v2890
      %v2892 = vpop.f32.mrb[0].mxu0
      %2893 = vmatprep.mubr.bf16.mxu0 %v2658
      %2894 = vmatmul.mubr.bf16.gmra.mrb[0].mxu0 %v2655
      %v2895 = vpop.f32.mrb[0].mxu0
      %v2896 = vadd.f32 0.0, %v2895
      %v2897 = vpop.f32.mrb[0].mxu0
      %v2898 = vpop.f32.mrb[0].mxu0
      %v2899 = vadd.f32 0.0, %v2898
      %v2900 = vpop.f32.mrb[0].mxu0
      %2901 = vmatprep.mubr.bf16.mxu0 %v2664
      %2902 = vmatmul.mubr.bf16.gmra.mrb[0].mxu0 %v2661
      %v2903 = vpop.f32.mrb[0].mxu0
      %v2904 = vadd.f32 0.0, %v2903
      %v2905 = vpop.f32.mrb[0].mxu0
      %v2906 = vpop.f32.mrb[0].mxu0
      %v2907 = vadd.f32 0.0, %v2906
      %v2908 = vpop.f32.mrb[0].mxu0
      %2909 = vmatprep.mubr.bf16.mxu0 %v2670
      %2910 = vmatmul.mubr.bf16.gmra.mrb[0].mxu0 %v2667
      %v2911 = vpop.f32.mrb[0].mxu0
      %v2912 = vadd.f32 0.0, %v2911
      %v2913 = vpop.f32.mrb[0].mxu0
      %v2914 = vpop.f32.mrb[0].mxu0
      %v2915 = vadd.f32 0.0, %v2914
      %v2916 = vpop.f32.mrb[0].mxu0
      %2917 = vmatprep.mubr.bf16.mxu0 %v2676
      %2918 = vmatmul.mubr.bf16.gmra.mrb[0].mxu0 %v2673
      %v2919 = vpop.f32.mrb[0].mxu0
      %v2920 = vadd.f32 0.0, %v2919
      %v2921 = vpop.f32.mrb[0].mxu0
      %v2922 = vpop.f32.mrb[0].mxu0
      %v2923 = vadd.f32 0.0, %v2922
      %v2924 = vpop.f32.mrb[0].mxu0
      %2925 = vmatprep.mubr.bf16.mxu0 %v2682
      %2926 = vmatmul.mubr.bf16.gmra.mrb[0].mxu0 %v2679
      %v2927 = vpop.f32.mrb[0].mxu0
      %v2928 = vadd.f32 0.0, %v2927
      %v2929 = vpop.f32.mrb[0].mxu0
      %v2930 = vpop.f32.mrb[0].mxu0
      %v2931 = vadd.f32 0.0, %v2930
      %v2932 = vpop.f32.mrb[0].mxu0
      %2933 = vmatprep.mubr.bf16.mxu0 %v2688
      %2934 = vmatmul.mubr.bf16.gmra.mrb[0].mxu0 %v2685
      %v2935 = vpop.f32.mrb[0].mxu0
      %v2936 = vadd.f32 0.0, %v2935
      %v2937 = vpop.f32.mrb[0].mxu0
      %v2938 = vpop.f32.mrb[0].mxu0
      %v2939 = vadd.f32 0.0, %v2938
      %v2940 = vpop.f32.mrb[0].mxu0
      %2941 = vmatprep.mubr.bf16.mxu0 %v2694
      %2942 = vmatmul.mubr.bf16.gmra.mrb[0].mxu0 %v2691
      %v2943 = vpop.f32.mrb[0].mxu0
      %v2944 = vadd.f32 0.0, %v2943
      %v2945 = vpop.f32.mrb[0].mxu0
      %v2946 = vpop.f32.mrb[0].mxu0
      %v2947 = vadd.f32 0.0, %v2946
      %v2948 = vpop.f32.mrb[0].mxu0
      %2949 = vmatprep.mubr.bf16.mxu0 %v2700
      %2950 = vmatmul.mubr.bf16.gmra.mrb[0].mxu0 %v2697
      %v2951 = vpop.f32.mrb[0].mxu0
      %v2952 = vadd.f32 0.0, %v2951
      %v2953 = vpop.f32.mrb[0].mxu0
      %v2954 = vpop.f32.mrb[0].mxu0
      %v2955 = vadd.f32 0.0, %v2954
      %v2956 = vpop.f32.mrb[0].mxu0
      %2957 = vmatprep.mubr.bf16.mxu0 %v2716
      %2958 = vmatmul.mubr.bf16.gmra.mrb[0].mxu0 %v2708
      %v2959 = vpop.f32.mrb[0].mxu0
      %v2960 = vadd.f32 0.0, %v2959
      %v2961 = vpop.f32.mrb[0].mxu0
      %v2962 = vpop.f32.mrb[0].mxu0
      %v2963 = vadd.f32 0.0, %v2962
      %v2964 = vpop.f32.mrb[0].mxu0
      %2965 = vdwg.mxu0
      %v2966 = vadd.f32 %v2568, %v2872
      %v2967 = vadd.f32 %v2569, %v2875
      %v2968 = vadd.f32 %v2570, %v2880
      %v2969 = vadd.f32 %v2571, %v2883
      %v2970 = vadd.f32 %v2572, %v2888
      %v2971 = vadd.f32 %v2573, %v2891
      %v2972 = vadd.f32 %v2574, %v2896
      %v2973 = vadd.f32 %v2575, %v2899
      %v2974 = vadd.f32 %v2576, %v2904
      %v2975 = vadd.f32 %v2577, %v2907
      %v2976 = vadd.f32 %v2578, %v2912
      %v2977 = vadd.f32 %v2579, %v2915
      %v2978 = vadd.f32 %v2580, %v2920
      %v2979 = vadd.f32 %v2581, %v2923
      %v2980 = vadd.f32 %v2582, %v2928
      %v2981 = vadd.f32 %v2583, %v2931
      %v2982 = vadd.f32 %v2584, %v2936
      %v2983 = vadd.f32 %v2585, %v2939
      %v2984 = vadd.f32 %v2586, %v2944
      %v2985 = vadd.f32 %v2587, %v2947
      %v2986 = vadd.f32 %v2588, %v2952
      %v2987 = vadd.f32 %v2589, %v2955
      %v2988 = vadd.f32 %v2590, %v2960
      %v2989 = vadd.f32 %v2591, %v2963
      %v2990 = vld [vmem:[#allocation2 + $0x20] sm:$0xc0]
      %v2991 = vld [vmem:[#allocation2 + $0x28] sm:$0xc0]
      %v2992 = vld [vmem:[#allocation2 + $0x30] sm:$0xff]
      %v2993 = vld [vmem:[#allocation2 + $0x38] sm:$0xff]
      %v2994 = vld [vmem:[#allocation2 + $0x40] sm:$0xff]
      %v2995 = vld [vmem:[#allocation2 + $0x48] sm:$0xff]
      %v2996 = vld [vmem:[#allocation2 + $0x50] sm:$0xff]
      %v2997 = vld [vmem:[#allocation2 + $0x58] sm:$0xff]
      %v2998 = vld [vmem:[#allocation2 + $0x60] sm:$0xff]
      %v2999 = vld [vmem:[#allocation2 + $0x68] sm:$0xff]
      %v3000 = vld [vmem:[#allocation2 + $0x70] sm:$0xff]
      %v3001 = vld [vmem:[#allocation2 + $0x78] sm:$0xff]
      %v3002 = vld [vmem:[#allocation2 + $0x80] sm:$0xff]
      %v3003 = vld [vmem:[#allocation2 + $0x88] sm:$0xff]
      %v3004 = vld [vmem:[#allocation2 + $0x90] sm:$0xff]
      %v3005 = vld [vmem:[#allocation2 + $0x98] sm:$0xff]
      %v3006 = vld [vmem:[#allocation2 + $0xa0] sm:$0xff]
      %v3007 = vld [vmem:[#allocation2 + $0xa8] sm:$0xff]
      %v3008 = vld [vmem:[#allocation2 + $0xb0] sm:$0xff]
      %v3009 = vld [vmem:[#allocation2 + $0xb8] sm:$0xff]
      %v3010 = vld [vmem:[#allocation2 + $0xc0] sm:$0xff]
      %v3011 = vld [vmem:[#allocation2 + $0xc8] sm:$0xff]
      %v3012 = vld [vmem:[#allocation2 + $0xd0] sm:$0xff]
      %v3013 = vld [vmem:[#allocation2 + $0xd8] sm:$0xff]
      %v3014 = vld [vmem:[#allocation2 + $0xe0] sm:$0x7f]
      %v3015 = vld [vmem:[#allocation2 + $0xe8] sm:$0x7f]
      %s3016 = scalar_lea.vmem %s1, 768
      %v3017 = vld [vmem:[%s3016] sm:$0xf]
      %v3018 = vld [vmem:[%s3016 + $0x4] sm:$0xf]
      %v3019 = vld [vmem:[%s3016 + $0x8] sm:$0xf]
      %v3020 = vld [vmem:[%s3016 + $0xc] sm:$0xf]
      %v3021 = vld [vmem:[%s3016 + $0x10] sm:$0xf]
      %v3022 = vld [vmem:[%s3016 + $0x14] sm:$0xf]
      %v3023 = vld [vmem:[%s3016 + $0x18] sm:$0xf]
      %v3024 = vld [vmem:[%s3016 + $0x1c] sm:$0xf]
      %v3025 = vld [vmem:[%s3016 + $0x20] sm:$0xf]
      %v3026 = vld [vmem:[%s3016 + $0x24] sm:$0xf]
      %v3027 = vld [vmem:[%s3016 + $0x28] sm:$0xf]
      %v3028 = vld [vmem:[%s3016 + $0x2c] sm:$0xf]
      %v3029 = vld [vmem:[%s3016 + $0x30] sm:$0xf]
      %v3030 = vld [vmem:[%s3016 + $0x34] sm:$0xf]
      %v3031 = vld [vmem:[%s3016 + $0x38] sm:$0xf]
      %v3032 = vld [vmem:[%s3016 + $0x3c] sm:$0xf]
      %v3033 = vld [vmem:[%s3016 + $0x40] sm:$0xf]
      %v3034 = vld [vmem:[%s3016 + $0x44] sm:$0xf]
      %v3035 = vld [vmem:[%s3016 + $0x48] sm:$0xf]
      %v3036 = vld [vmem:[%s3016 + $0x4c] sm:$0xf]
      %v3037 = vld [vmem:[%s3016 + $0x50] sm:$0xf]
      %v3038 = vld [vmem:[%s3016 + $0x54] sm:$0xf]
      %v3039 = vld [vmem:[%s3016 + $0x58] sm:$0xf]
      %v3040 = vld [vmem:[%s3016 + $0x5c] sm:$0xf]
      %v3041 = vld [vmem:[%s3016 + $0x60] sm:$0xf]
      %v3042 = vld [vmem:[%s3016 + $0x64] sm:$0xf]
      %v3043 = vld [vmem:[%s3016 + $0x68] sm:$0xf]
      %v3044 = vld [vmem:[%s3016 + $0x6c] sm:$0xf]
      %v3045 = vld [vmem:[%s3016 + $0x70] sm:$0xf]
      %v3046 = vld [vmem:[%s3016 + $0x74] sm:$0xf]
      %v3047 = vld [vmem:[%s3016 + $0x78] sm:$0xf]
      %v3048 = vld [vmem:[%s3016 + $0x7c] sm:$0xf]
      %v3050 = vshrl.u32 %v2990, 16
      %v3052 = vrot.slane %v3050, 6
      %v3053 = vshll.u32 %v2990, 16
      %v3055 = vrot.slane %v3053, 7
      %v3056 = vor.u32 %v3052, %v3055
      %v3058 = vshrl.u32 %v2992, 16
      %v3060 = vrot.slane %v3058, 6
      %v3061 = vshll.u32 %v2992, 16
      %v3063 = vrot.slane %v3061, 7
      %v3064 = vor.u32 %v3060, %v3063
      %v3065 = vsel %vm354, %v3056, %v3064
      %v3067 = vshrl.u32 %v2991, 16
      %v3069 = vrot.slane %v3067, 6
      %v3070 = vshll.u32 %v2991, 16
      %v3072 = vrot.slane %v3070, 7
      %v3073 = vor.u32 %v3069, %v3072
      %v3075 = vshrl.u32 %v2993, 16
      %v3077 = vrot.slane %v3075, 6
      %v3078 = vshll.u32 %v2993, 16
      %v3080 = vrot.slane %v3078, 7
      %v3081 = vor.u32 %v3077, %v3080
      %v3082 = vsel %vm354, %v3073, %v3081
      %v3084 = vshrl.u32 %v2994, 16
      %v3086 = vrot.slane %v3084, 6
      %v3087 = vshll.u32 %v2994, 16
      %v3089 = vrot.slane %v3087, 7
      %v3090 = vor.u32 %v3086, %v3089
      %v3091 = vsel %vm354, %v3064, %v3090
      %v3093 = vshrl.u32 %v2995, 16
      %v3095 = vrot.slane %v3093, 6
      %v3096 = vshll.u32 %v2995, 16
      %v3098 = vrot.slane %v3096, 7
      %v3099 = vor.u32 %v3095, %v3098
      %v3100 = vsel %vm354, %v3081, %v3099
      %v3102 = vshrl.u32 %v2996, 16
      %v3104 = vrot.slane %v3102, 6
      %v3105 = vshll.u32 %v2996, 16
      %v3107 = vrot.slane %v3105, 7
      %v3108 = vor.u32 %v3104, %v3107
      %v3109 = vsel %vm354, %v3090, %v3108
      %v3111 = vshrl.u32 %v2997, 16
      %v3113 = vrot.slane %v3111, 6
      %v3114 = vshll.u32 %v2997, 16
      %v3116 = vrot.slane %v3114, 7
      %v3117 = vor.u32 %v3113, %v3116
      %v3118 = vsel %vm354, %v3099, %v3117
      %v3120 = vshrl.u32 %v2998, 16
      %v3122 = vrot.slane %v3120, 6
      %v3123 = vshll.u32 %v2998, 16
      %v3125 = vrot.slane %v3123, 7
      %v3126 = vor.u32 %v3122, %v3125
      %v3127 = vsel %vm354, %v3108, %v3126
      %v3129 = vshrl.u32 %v2999, 16
      %v3131 = vrot.slane %v3129, 6
      %v3132 = vshll.u32 %v2999, 16
      %v3134 = vrot.slane %v3132, 7
      %v3135 = vor.u32 %v3131, %v3134
      %v3136 = vsel %vm354, %v3117, %v3135
      %v3138 = vshrl.u32 %v3000, 16
      %v3140 = vrot.slane %v3138, 6
      %v3141 = vshll.u32 %v3000, 16
      %v3143 = vrot.slane %v3141, 7
      %v3144 = vor.u32 %v3140, %v3143
      %v3145 = vsel %vm354, %v3126, %v3144
      %v3147 = vshrl.u32 %v3001, 16
      %v3149 = vrot.slane %v3147, 6
      %v3150 = vshll.u32 %v3001, 16
      %v3152 = vrot.slane %v3150, 7
      %v3153 = vor.u32 %v3149, %v3152
      %v3154 = vsel %vm354, %v3135, %v3153
      %v3156 = vshrl.u32 %v3002, 16
      %v3158 = vrot.slane %v3156, 6
      %v3159 = vshll.u32 %v3002, 16
      %v3161 = vrot.slane %v3159, 7
      %v3162 = vor.u32 %v3158, %v3161
      %v3163 = vsel %vm354, %v3144, %v3162
      %v3165 = vshrl.u32 %v3003, 16
      %v3167 = vrot.slane %v3165, 6
      %v3168 = vshll.u32 %v3003, 16
      %v3170 = vrot.slane %v3168, 7
      %v3171 = vor.u32 %v3167, %v3170
      %v3172 = vsel %vm354, %v3153, %v3171
      %v3174 = vshrl.u32 %v3004, 16
      %v3176 = vrot.slane %v3174, 6
      %v3177 = vshll.u32 %v3004, 16
      %v3179 = vrot.slane %v3177, 7
      %v3180 = vor.u32 %v3176, %v3179
      %v3181 = vsel %vm354, %v3162, %v3180
      %v3183 = vshrl.u32 %v3005, 16
      %v3185 = vrot.slane %v3183, 6
      %v3186 = vshll.u32 %v3005, 16
      %v3188 = vrot.slane %v3186, 7
      %v3189 = vor.u32 %v3185, %v3188
      %v3190 = vsel %vm354, %v3171, %v3189
      %v3192 = vshrl.u32 %v3006, 16
      %v3194 = vrot.slane %v3192, 6
      %v3195 = vshll.u32 %v3006, 16
      %v3197 = vrot.slane %v3195, 7
      %v3198 = vor.u32 %v3194, %v3197
      %v3199 = vsel %vm354, %v3180, %v3198
      %v3201 = vshrl.u32 %v3007, 16
      %v3203 = vrot.slane %v3201, 6
      %v3204 = vshll.u32 %v3007, 16
      %v3206 = vrot.slane %v3204, 7
      %v3207 = vor.u32 %v3203, %v3206
      %v3208 = vsel %vm354, %v3189, %v3207
      %v3210 = vshrl.u32 %v3008, 16
      %v3212 = vrot.slane %v3210, 6
      %v3213 = vshll.u32 %v3008, 16
      %v3215 = vrot.slane %v3213, 7
      %v3216 = vor.u32 %v3212, %v3215
      %v3217 = vsel %vm354, %v3198, %v3216
      %v3219 = vshrl.u32 %v3009, 16
      %v3221 = vrot.slane %v3219, 6
      %v3222 = vshll.u32 %v3009, 16
      %v3224 = vrot.slane %v3222, 7
      %v3225 = vor.u32 %v3221, %v3224
      %v3226 = vsel %vm354, %v3207, %v3225
      %v3228 = vshrl.u32 %v3010, 16
      %v3230 = vrot.slane %v3228, 6
      %v3231 = vshll.u32 %v3010, 16
      %v3233 = vrot.slane %v3231, 7
      %v3234 = vor.u32 %v3230, %v3233
      %v3235 = vsel %vm354, %v3216, %v3234
      %v3237 = vshrl.u32 %v3011, 16
      %v3239 = vrot.slane %v3237, 6
      %v3240 = vshll.u32 %v3011, 16
      %v3242 = vrot.slane %v3240, 7
      %v3243 = vor.u32 %v3239, %v3242
      %v3244 = vsel %vm354, %v3225, %v3243
      %v3246 = vshrl.u32 %v3012, 16
      %v3248 = vrot.slane %v3246, 6
      %v3249 = vshll.u32 %v3012, 16
      %v3251 = vrot.slane %v3249, 7
      %v3252 = vor.u32 %v3248, %v3251
      %v3253 = vsel %vm354, %v3234, %v3252
      %v3255 = vshrl.u32 %v3013, 16
      %v3257 = vrot.slane %v3255, 6
      %v3258 = vshll.u32 %v3013, 16
      %v3260 = vrot.slane %v3258, 7
      %v3261 = vor.u32 %v3257, %v3260
      %v3262 = vsel %vm354, %v3243, %v3261
      %v3264 = vshrl.u32 %v3014, 16
      %v3266 = vrot.slane %v3264, 6
      %v3267 = vshll.u32 %v3014, 16
      %v3269 = vrot.slane %v3267, 7
      %v3270 = vor.u32 %v3266, %v3269
      %v3271 = vsel %vm354, %v3252, %v3270
      %v3273 = vshrl.u32 %v3015, 16
      %v3275 = vrot.slane %v3273, 6
      %v3276 = vshll.u32 %v3015, 16
      %v3278 = vrot.slane %v3276, 7
      %v3279 = vor.u32 %v3275, %v3278
      %v3280 = vsel %vm354, %v3261, %v3279
      %v3337 = vunpack.c.l.b16 %v3017
      %v3338 = vunpack.c.l.b16 %v3018
      %v3339 = vunpack.c.l.b16 %v3019
      %v3340 = vunpack.c.l.b16 %v3020
      %v3341 = vunpack.c.l.b16 %v3021
      %v3342 = vunpack.c.l.b16 %v3022
      %v3343 = vunpack.c.l.b16 %v3023
      %v3344 = vunpack.c.l.b16 %v3024
      %v3345 = vunpack.c.l.b16 %v3025
      %v3346 = vunpack.c.l.b16 %v3026
      %v3347 = vunpack.c.l.b16 %v3027
      %v3348 = vunpack.c.l.b16 %v3028
      %v3349 = vunpack.c.l.b16 %v3029
      %v3350 = vunpack.c.l.b16 %v3030
      %v3351 = vunpack.c.l.b16 %v3031
      %v3352 = vunpack.c.l.b16 %v3032
      %v3353 = vunpack.c.l.b16 %v3033
      %v3354 = vunpack.c.l.b16 %v3034
      %v3355 = vunpack.c.l.b16 %v3035
      %v3356 = vunpack.c.l.b16 %v3036
      %v3357 = vunpack.c.l.b16 %v3037
      %v3358 = vunpack.c.l.b16 %v3038
      %v3359 = vunpack.c.l.b16 %v3039
      %v3360 = vunpack.c.l.b16 %v3040
      %v3361 = vunpack.c.l.b16 %v3041
      %v3362 = vunpack.c.l.b16 %v3042
      %v3363 = vunpack.c.l.b16 %v3043
      %v3364 = vunpack.c.l.b16 %v3044
      %v3365 = vunpack.c.l.b16 %v3045
      %v3366 = vunpack.c.l.b16 %v3046
      %v3367 = vunpack.c.l.b16 %v3047
      %v3368 = vunpack.c.l.b16 %v3048
      %v3369 = vpack.c.b16 %v3338, %v3337
      %v3370 = vpack.c.b16 %v3340, %v3339
      %v3371 = vpack.c.b16 %v3342, %v3341
      %v3372 = vpack.c.b16 %v3344, %v3343
      %v3373 = vpack.c.b16 %v3346, %v3345
      %v3374 = vpack.c.b16 %v3348, %v3347
      %v3375 = vpack.c.b16 %v3350, %v3349
      %v3376 = vpack.c.b16 %v3352, %v3351
      %v3377 = vpack.c.b16 %v3354, %v3353
      %v3378 = vpack.c.b16 %v3356, %v3355
      %v3379 = vpack.c.b16 %v3358, %v3357
      %v3380 = vpack.c.b16 %v3360, %v3359
      %v3381 = vpack.c.b16 %v3362, %v3361
      %v3382 = vpack.c.b16 %v3364, %v3363
      %v3383 = vpack.c.b16 %v3366, %v3365
      %v3384 = vpack.c.b16 %v3368, %v3367
      %3401 = vmatprep.subr.bf16.mxu0 0
      %3402 = vmatpush1.bf16.msra.mxu0 %v3369
      %3403 = vmatprep.subr.bf16.mxu0 0
      %3404 = vmatpush1.bf16.msra.mxu0 %v3370
      %3405 = vmatprep.subr.bf16.mxu0 0
      %3406 = vmatpush1.bf16.msra.mxu0 %v3371
      %3407 = vmatprep.subr.bf16.mxu0 0
      %3408 = vmatpush1.bf16.msra.mxu0 %v3372
      %3409 = vmatprep.subr.bf16.mxu0 0
      %3410 = vmatpush1.bf16.msra.mxu0 %v3373
      %3411 = vmatprep.subr.bf16.mxu0 0
      %3412 = vmatpush1.bf16.msra.mxu0 %v3374
      %3413 = vmatprep.subr.bf16.mxu0 0
      %3414 = vmatpush1.bf16.msra.mxu0 %v3375
      %3415 = vmatprep.subr.bf16.mxu0 0
      %3416 = vmatpush1.bf16.msra.mxu0 %v3376
      %3417 = vmatprep.subr.bf16.mxu0 0
      %3418 = vmatpush1.bf16.msra.mxu0 %v3377
      %3419 = vmatprep.subr.bf16.mxu0 0
      %3420 = vmatpush1.bf16.msra.mxu0 %v3378
      %3421 = vmatprep.subr.bf16.mxu0 0
      %3422 = vmatpush1.bf16.msra.mxu0 %v3379
      %3423 = vmatprep.subr.bf16.mxu0 0
      %3424 = vmatpush1.bf16.msra.mxu0 %v3380
      %3425 = vmatprep.subr.bf16.mxu0 0
      %3426 = vmatpush1.bf16.msra.mxu0 %v3381
      %3427 = vmatprep.subr.bf16.mxu0 0
      %3428 = vmatpush1.bf16.msra.mxu0 %v3382
      %3429 = vmatprep.subr.bf16.mxu0 0
      %3430 = vmatpush1.bf16.msra.mxu0 %v3383
      %3431 = vmatprep.subr.bf16.mxu0 0
      %3432 = vmatpush1.bf16.msra.mxu0 %v3384
      %3433 = vmatprep.mubr.bf16.mxu0 %v3082
      %3434 = vmatmul.mubr.bf16.gmra.mrb[0].mxu0 %v3065
      %v3435 = vpop.f32.mrb[0].mxu0
      %v3436 = vadd.f32 0.0, %v3435
      %v3437 = vpop.f32.mrb[0].mxu0
      %v3438 = vpop.f32.mrb[0].mxu0
      %v3439 = vadd.f32 0.0, %v3438
      %v3440 = vpop.f32.mrb[0].mxu0
      %3441 = vmatprep.mubr.bf16.mxu0 %v3100
      %3442 = vmatmul.mubr.bf16.gmra.mrb[0].mxu0 %v3091
      %v3443 = vpop.f32.mrb[0].mxu0
      %v3444 = vadd.f32 0.0, %v3443
      %v3445 = vpop.f32.mrb[0].mxu0
      %v3446 = vpop.f32.mrb[0].mxu0
      %v3447 = vadd.f32 0.0, %v3446
      %v3448 = vpop.f32.mrb[0].mxu0
      %3449 = vmatprep.mubr.bf16.mxu0 %v3118
      %3450 = vmatmul.mubr.bf16.gmra.mrb[0].mxu0 %v3109
      %v3451 = vpop.f32.mrb[0].mxu0
      %v3452 = vadd.f32 0.0, %v3451
      %v3453 = vpop.f32.mrb[0].mxu0
      %v3454 = vpop.f32.mrb[0].mxu0
      %v3455 = vadd.f32 0.0, %v3454
      %v3456 = vpop.f32.mrb[0].mxu0
      %3457 = vmatprep.mubr.bf16.mxu0 %v3136
      %3458 = vmatmul.mubr.bf16.gmra.mrb[0].mxu0 %v3127
      %v3459 = vpop.f32.mrb[0].mxu0
      %v3460 = vadd.f32 0.0, %v3459
      %v3461 = vpop.f32.mrb[0].mxu0
      %v3462 = vpop.f32.mrb[0].mxu0
      %v3463 = vadd.f32 0.0, %v3462
      %v3464 = vpop.f32.mrb[0].mxu0
      %3465 = vmatprep.mubr.bf16.mxu0 %v3154
      %3466 = vmatmul.mubr.bf16.gmra.mrb[0].mxu0 %v3145
      %v3467 = vpop.f32.mrb[0].mxu0
      %v3468 = vadd.f32 0.0, %v3467
      %v3469 = vpop.f32.mrb[0].mxu0
      %v3470 = vpop.f32.mrb[0].mxu0
      %v3471 = vadd.f32 0.0, %v3470
      %v3472 = vpop.f32.mrb[0].mxu0
      %3473 = vmatprep.mubr.bf16.mxu0 %v3172
      %3474 = vmatmul.mubr.bf16.gmra.mrb[0].mxu0 %v3163
      %v3475 = vpop.f32.mrb[0].mxu0
      %v3476 = vadd.f32 0.0, %v3475
      %v3477 = vpop.f32.mrb[0].mxu0
      %v3478 = vpop.f32.mrb[0].mxu0
      %v3479 = vadd.f32 0.0, %v3478
      %v3480 = vpop.f32.mrb[0].mxu0
      %3481 = vmatprep.mubr.bf16.mxu0 %v3190
      %3482 = vmatmul.mubr.bf16.gmra.mrb[0].mxu0 %v3181
      %v3483 = vpop.f32.mrb[0].mxu0
      %v3484 = vadd.f32 0.0, %v3483
      %v3485 = vpop.f32.mrb[0].mxu0
      %v3486 = vpop.f32.mrb[0].mxu0
      %v3487 = vadd.f32 0.0, %v3486
      %v3488 = vpop.f32.mrb[0].mxu0
      %3489 = vmatprep.mubr.bf16.mxu0 %v3208
      %3490 = vmatmul.mubr.bf16.gmra.mrb[0].mxu0 %v3199
      %v3491 = vpop.f32.mrb[0].mxu0
      %v3492 = vadd.f32 0.0, %v3491
      %v3493 = vpop.f32.mrb[0].mxu0
      %v3494 = vpop.f32.mrb[0].mxu0
      %v3495 = vadd.f32 0.0, %v3494
      %v3496 = vpop.f32.mrb[0].mxu0
      %3497 = vmatprep.mubr.bf16.mxu0 %v3226
      %3498 = vmatmul.mubr.bf16.gmra.mrb[0].mxu0 %v3217
      %v3499 = vpop.f32.mrb[0].mxu0
      %v3500 = vadd.f32 0.0, %v3499
      %v3501 = vpop.f32.mrb[0].mxu0
      %v3502 = vpop.f32.mrb[0].mxu0
      %v3503 = vadd.f32 0.0, %v3502
      %v3504 = vpop.f32.mrb[0].mxu0
      %3505 = vmatprep.mubr.bf16.mxu0 %v3244
      %3506 = vmatmul.mubr.bf16.gmra.mrb[0].mxu0 %v3235
      %v3507 = vpop.f32.mrb[0].mxu0
      %v3508 = vadd.f32 0.0, %v3507
      %v3509 = vpop.f32.mrb[0].mxu0
      %v3510 = vpop.f32.mrb[0].mxu0
      %v3511 = vadd.f32 0.0, %v3510
      %v3512 = vpop.f32.mrb[0].mxu0
      %3513 = vmatprep.mubr.bf16.mxu0 %v3262
      %3514 = vmatmul.mubr.bf16.gmra.mrb[0].mxu0 %v3253
      %v3515 = vpop.f32.mrb[0].mxu0
      %v3516 = vadd.f32 0.0, %v3515
      %v3517 = vpop.f32.mrb[0].mxu0
      %v3518 = vpop.f32.mrb[0].mxu0
      %v3519 = vadd.f32 0.0, %v3518
      %v3520 = vpop.f32.mrb[0].mxu0
      %3521 = vmatprep.mubr.bf16.mxu0 %v3280
      %3522 = vmatmul.mubr.bf16.gmra.mrb[0].mxu0 %v3271
      %v3523 = vpop.f32.mrb[0].mxu0
      %v3524 = vadd.f32 0.0, %v3523
      %v3525 = vpop.f32.mrb[0].mxu0
      %v3526 = vpop.f32.mrb[0].mxu0
      %v3527 = vadd.f32 0.0, %v3526
      %v3528 = vpop.f32.mrb[0].mxu0
      %3529 = vdwg.mxu0
      %v3530 = vadd.f32 %v2966, %v3436
      %v3531 = vadd.f32 %v2967, %v3439
      %v3532 = vadd.f32 %v2968, %v3444
      %v3533 = vadd.f32 %v2969, %v3447
      %v3534 = vadd.f32 %v2970, %v3452
      %v3535 = vadd.f32 %v2971, %v3455
      %v3536 = vadd.f32 %v2972, %v3460
      %v3537 = vadd.f32 %v2973, %v3463
      %v3538 = vadd.f32 %v2974, %v3468
      %v3539 = vadd.f32 %v2975, %v3471
      %v3540 = vadd.f32 %v2976, %v3476
      %v3541 = vadd.f32 %v2977, %v3479
      %v3542 = vadd.f32 %v2978, %v3484
      %v3543 = vadd.f32 %v2979, %v3487
      %v3544 = vadd.f32 %v2980, %v3492
      %v3545 = vadd.f32 %v2981, %v3495
      %v3546 = vadd.f32 %v2982, %v3500
      %v3547 = vadd.f32 %v2983, %v3503
      %v3548 = vadd.f32 %v2984, %v3508
      %v3549 = vadd.f32 %v2985, %v3511
      %v3550 = vadd.f32 %v2986, %v3516
      %v3551 = vadd.f32 %v2987, %v3519
      %v3552 = vadd.f32 %v2988, %v3524
      %v3553 = vadd.f32 %v2989, %v3527
      %v3554 = vld [vmem:[#allocation2 + $0x20] sm:$0x80]
      %v3555 = vld [vmem:[#allocation2 + $0x28] sm:$0x80]
      %s3556 = scalar_lea.vmem %s1, 896
      %v3557 = vld [vmem:[%s3556] sm:$0xf]
      %v3558 = vld [vmem:[%s3556 + $0x4] sm:$0xf]
      %v3559 = vld [vmem:[%s3556 + $0x8] sm:$0xf]
      %v3560 = vld [vmem:[%s3556 + $0xc] sm:$0xf]
      %v3561 = vld [vmem:[%s3556 + $0x10] sm:$0xf]
      %v3562 = vld [vmem:[%s3556 + $0x14] sm:$0xf]
      %v3563 = vld [vmem:[%s3556 + $0x18] sm:$0xf]
      %v3564 = vld [vmem:[%s3556 + $0x1c] sm:$0xf]
      %v3565 = vld [vmem:[%s3556 + $0x20] sm:$0xf]
      %v3566 = vld [vmem:[%s3556 + $0x24] sm:$0xf]
      %v3567 = vld [vmem:[%s3556 + $0x28] sm:$0xf]
      %v3568 = vld [vmem:[%s3556 + $0x2c] sm:$0xf]
      %v3569 = vld [vmem:[%s3556 + $0x30] sm:$0xf]
      %v3570 = vld [vmem:[%s3556 + $0x34] sm:$0xf]
      %v3571 = vld [vmem:[%s3556 + $0x38] sm:$0xf]
      %v3572 = vld [vmem:[%s3556 + $0x3c] sm:$0xf]
      %v3573 = vld [vmem:[%s3556 + $0x40] sm:$0xf]
      %v3574 = vld [vmem:[%s3556 + $0x44] sm:$0xf]
      %v3575 = vld [vmem:[%s3556 + $0x48] sm:$0xf]
      %v3576 = vld [vmem:[%s3556 + $0x4c] sm:$0xf]
      %v3577 = vld [vmem:[%s3556 + $0x50] sm:$0xf]
      %v3578 = vld [vmem:[%s3556 + $0x54] sm:$0xf]
      %v3579 = vld [vmem:[%s3556 + $0x58] sm:$0xf]
      %v3580 = vld [vmem:[%s3556 + $0x5c] sm:$0xf]
      %v3581 = vld [vmem:[%s3556 + $0x60] sm:$0xf]
      %v3582 = vld [vmem:[%s3556 + $0x64] sm:$0xf]
      %v3583 = vld [vmem:[%s3556 + $0x68] sm:$0xf]
      %v3584 = vld [vmem:[%s3556 + $0x6c] sm:$0xf]
      %v3585 = vld [vmem:[%s3556 + $0x70] sm:$0xf]
      %v3586 = vld [vmem:[%s3556 + $0x74] sm:$0xf]
      %v3587 = vld [vmem:[%s3556 + $0x78] sm:$0xf]
      %v3588 = vld [vmem:[%s3556 + $0x7c] sm:$0xf]
      %v3615 = vrot.slane %v3554, 7
      %v3616 = vrot.slane %v2992, 7
      %v3617 = vsel %vm921, %v3615, %v3616
      %v3618 = vrot.slane %v3555, 7
      %v3619 = vrot.slane %v2993, 7
      %v3620 = vsel %vm921, %v3618, %v3619
      %v3621 = vrot.slane %v2994, 7
      %v3622 = vsel %vm921, %v3616, %v3621
      %v3623 = vrot.slane %v2995, 7
      %v3624 = vsel %vm921, %v3619, %v3623
      %v3625 = vrot.slane %v2996, 7
      %v3626 = vsel %vm921, %v3621, %v3625
      %v3627 = vrot.slane %v2997, 7
      %v3628 = vsel %vm921, %v3623, %v3627
      %v3629 = vrot.slane %v2998, 7
      %v3630 = vsel %vm921, %v3625, %v3629
      %v3631 = vrot.slane %v2999, 7
      %v3632 = vsel %vm921, %v3627, %v3631
      %v3633 = vrot.slane %v3000, 7
      %v3634 = vsel %vm921, %v3629, %v3633
      %v3635 = vrot.slane %v3001, 7
      %v3636 = vsel %vm921, %v3631, %v3635
      %v3637 = vrot.slane %v3002, 7
      %v3638 = vsel %vm921, %v3633, %v3637
      %v3639 = vrot.slane %v3003, 7
      %v3640 = vsel %vm921, %v3635, %v3639
      %v3641 = vrot.slane %v3004, 7
      %v3642 = vsel %vm921, %v3637, %v3641
      %v3643 = vrot.slane %v3005, 7
      %v3644 = vsel %vm921, %v3639, %v3643
      %v3645 = vrot.slane %v3006, 7
      %v3646 = vsel %vm921, %v3641, %v3645
      %v3647 = vrot.slane %v3007, 7
      %v3648 = vsel %vm921, %v3643, %v3647
      %v3649 = vrot.slane %v3008, 7
      %v3650 = vsel %vm921, %v3645, %v3649
      %v3651 = vrot.slane %v3009, 7
      %v3652 = vsel %vm921, %v3647, %v3651
      %v3653 = vrot.slane %v3010, 7
      %v3654 = vsel %vm921, %v3649, %v3653
      %v3655 = vrot.slane %v3011, 7
      %v3656 = vsel %vm921, %v3651, %v3655
      %v3657 = vrot.slane %v3012, 7
      %v3658 = vsel %vm921, %v3653, %v3657
      %v3659 = vrot.slane %v3013, 7
      %v3660 = vsel %vm921, %v3655, %v3659
      %v3661 = vrot.slane %v3014, 7
      %v3662 = vsel %vm921, %v3657, %v3661
      %v3663 = vrot.slane %v3015, 7
      %v3664 = vsel %vm921, %v3659, %v3663
      %v3721 = vunpack.c.l.b16 %v3557
      %v3722 = vunpack.c.l.b16 %v3558
      %v3723 = vunpack.c.l.b16 %v3559
      %v3724 = vunpack.c.l.b16 %v3560
      %v3725 = vunpack.c.l.b16 %v3561
      %v3726 = vunpack.c.l.b16 %v3562
      %v3727 = vunpack.c.l.b16 %v3563
      %v3728 = vunpack.c.l.b16 %v3564
      %v3729 = vunpack.c.l.b16 %v3565
      %v3730 = vunpack.c.l.b16 %v3566
      %v3731 = vunpack.c.l.b16 %v3567
      %v3732 = vunpack.c.l.b16 %v3568
      %v3733 = vunpack.c.l.b16 %v3569
      %v3734 = vunpack.c.l.b16 %v3570
      %v3735 = vunpack.c.l.b16 %v3571
      %v3736 = vunpack.c.l.b16 %v3572
      %v3737 = vunpack.c.l.b16 %v3573
      %v3738 = vunpack.c.l.b16 %v3574
      %v3739 = vunpack.c.l.b16 %v3575
      %v3740 = vunpack.c.l.b16 %v3576
      %v3741 = vunpack.c.l.b16 %v3577
      %v3742 = vunpack.c.l.b16 %v3578
      %v3743 = vunpack.c.l.b16 %v3579
      %v3744 = vunpack.c.l.b16 %v3580
      %v3745 = vunpack.c.l.b16 %v3581
      %v3746 = vunpack.c.l.b16 %v3582
      %v3747 = vunpack.c.l.b16 %v3583
      %v3748 = vunpack.c.l.b16 %v3584
      %v3749 = vunpack.c.l.b16 %v3585
      %v3750 = vunpack.c.l.b16 %v3586
      %v3751 = vunpack.c.l.b16 %v3587
      %v3752 = vunpack.c.l.b16 %v3588
      %v3753 = vpack.c.b16 %v3722, %v3721
      %v3754 = vpack.c.b16 %v3724, %v3723
      %v3755 = vpack.c.b16 %v3726, %v3725
      %v3756 = vpack.c.b16 %v3728, %v3727
      %v3757 = vpack.c.b16 %v3730, %v3729
      %v3758 = vpack.c.b16 %v3732, %v3731
      %v3759 = vpack.c.b16 %v3734, %v3733
      %v3760 = vpack.c.b16 %v3736, %v3735
      %v3761 = vpack.c.b16 %v3738, %v3737
      %v3762 = vpack.c.b16 %v3740, %v3739
      %v3763 = vpack.c.b16 %v3742, %v3741
      %v3764 = vpack.c.b16 %v3744, %v3743
      %v3765 = vpack.c.b16 %v3746, %v3745
      %v3766 = vpack.c.b16 %v3748, %v3747
      %v3767 = vpack.c.b16 %v3750, %v3749
      %v3768 = vpack.c.b16 %v3752, %v3751
      %3785 = vmatprep.subr.bf16.mxu0 0
      %3786 = vmatpush1.bf16.msra.mxu0 %v3753
      %3787 = vmatprep.subr.bf16.mxu0 0
      %3788 = vmatpush1.bf16.msra.mxu0 %v3754
      %3789 = vmatprep.subr.bf16.mxu0 0
      %3790 = vmatpush1.bf16.msra.mxu0 %v3755
      %3791 = vmatprep.subr.bf16.mxu0 0
      %3792 = vmatpush1.bf16.msra.mxu0 %v3756
      %3793 = vmatprep.subr.bf16.mxu0 0
      %3794 = vmatpush1.bf16.msra.mxu0 %v3757
      %3795 = vmatprep.subr.bf16.mxu0 0
      %3796 = vmatpush1.bf16.msra.mxu0 %v3758
      %3797 = vmatprep.subr.bf16.mxu0 0
      %3798 = vmatpush1.bf16.msra.mxu0 %v3759
      %3799 = vmatprep.subr.bf16.mxu0 0
      %3800 = vmatpush1.bf16.msra.mxu0 %v3760
      %3801 = vmatprep.subr.bf16.mxu0 0
      %3802 = vmatpush1.bf16.msra.mxu0 %v3761
      %3803 = vmatprep.subr.bf16.mxu0 0
      %3804 = vmatpush1.bf16.msra.mxu0 %v3762
      %3805 = vmatprep.subr.bf16.mxu0 0
      %3806 = vmatpush1.bf16.msra.mxu0 %v3763
      %3807 = vmatprep.subr.bf16.mxu0 0
      %3808 = vmatpush1.bf16.msra.mxu0 %v3764
      %3809 = vmatprep.subr.bf16.mxu0 0
      %3810 = vmatpush1.bf16.msra.mxu0 %v3765
      %3811 = vmatprep.subr.bf16.mxu0 0
      %3812 = vmatpush1.bf16.msra.mxu0 %v3766
      %3813 = vmatprep.subr.bf16.mxu0 0
      %3814 = vmatpush1.bf16.msra.mxu0 %v3767
      %3815 = vmatprep.subr.bf16.mxu0 0
      %3816 = vmatpush1.bf16.msra.mxu0 %v3768
      %3817 = vmatprep.mubr.bf16.mxu0 %v3620
      %3818 = vmatmul.mubr.bf16.gmra.mrb[0].mxu0 %v3617
      %v3819 = vpop.f32.mrb[0].mxu0
      %v3820 = vadd.f32 0.0, %v3819
      %v3821 = vpop.f32.mrb[0].mxu0
      %v3822 = vpop.f32.mrb[0].mxu0
      %v3823 = vadd.f32 0.0, %v3822
      %v3824 = vpop.f32.mrb[0].mxu0
      %3825 = vmatprep.mubr.bf16.mxu0 %v3624
      %3826 = vmatmul.mubr.bf16.gmra.mrb[0].mxu0 %v3622
      %v3827 = vpop.f32.mrb[0].mxu0
      %v3828 = vadd.f32 0.0, %v3827
      %v3829 = vpop.f32.mrb[0].mxu0
      %v3830 = vpop.f32.mrb[0].mxu0
      %v3831 = vadd.f32 0.0, %v3830
      %v3832 = vpop.f32.mrb[0].mxu0
      %3833 = vmatprep.mubr.bf16.mxu0 %v3628
      %3834 = vmatmul.mubr.bf16.gmra.mrb[0].mxu0 %v3626
      %v3835 = vpop.f32.mrb[0].mxu0
      %v3836 = vadd.f32 0.0, %v3835
      %v3837 = vpop.f32.mrb[0].mxu0
      %v3838 = vpop.f32.mrb[0].mxu0
      %v3839 = vadd.f32 0.0, %v3838
      %v3840 = vpop.f32.mrb[0].mxu0
      %3841 = vmatprep.mubr.bf16.mxu0 %v3632
      %3842 = vmatmul.mubr.bf16.gmra.mrb[0].mxu0 %v3630
      %v3843 = vpop.f32.mrb[0].mxu0
      %v3844 = vadd.f32 0.0, %v3843
      %v3845 = vpop.f32.mrb[0].mxu0
      %v3846 = vpop.f32.mrb[0].mxu0
      %v3847 = vadd.f32 0.0, %v3846
      %v3848 = vpop.f32.mrb[0].mxu0
      %3849 = vmatprep.mubr.bf16.mxu0 %v3636
      %3850 = vmatmul.mubr.bf16.gmra.mrb[0].mxu0 %v3634
      %v3851 = vpop.f32.mrb[0].mxu0
      %v3852 = vadd.f32 0.0, %v3851
      %v3853 = vpop.f32.mrb[0].mxu0
      %v3854 = vpop.f32.mrb[0].mxu0
      %v3855 = vadd.f32 0.0, %v3854
      %v3856 = vpop.f32.mrb[0].mxu0
      %3857 = vmatprep.mubr.bf16.mxu0 %v3640
      %3858 = vmatmul.mubr.bf16.gmra.mrb[0].mxu0 %v3638
      %v3859 = vpop.f32.mrb[0].mxu0
      %v3860 = vadd.f32 0.0, %v3859
      %v3861 = vpop.f32.mrb[0].mxu0
      %v3862 = vpop.f32.mrb[0].mxu0
      %v3863 = vadd.f32 0.0, %v3862
      %v3864 = vpop.f32.mrb[0].mxu0
      %3865 = vmatprep.mubr.bf16.mxu0 %v3644
      %3866 = vmatmul.mubr.bf16.gmra.mrb[0].mxu0 %v3642
      %v3867 = vpop.f32.mrb[0].mxu0
      %v3868 = vadd.f32 0.0, %v3867
      %v3869 = vpop.f32.mrb[0].mxu0
      %v3870 = vpop.f32.mrb[0].mxu0
      %v3871 = vadd.f32 0.0, %v3870
      %v3872 = vpop.f32.mrb[0].mxu0
      %3873 = vmatprep.mubr.bf16.mxu0 %v3648
      %3874 = vmatmul.mubr.bf16.gmra.mrb[0].mxu0 %v3646
      %v3875 = vpop.f32.mrb[0].mxu0
      %v3876 = vadd.f32 0.0, %v3875
      %v3877 = vpop.f32.mrb[0].mxu0
      %v3878 = vpop.f32.mrb[0].mxu0
      %v3879 = vadd.f32 0.0, %v3878
      %v3880 = vpop.f32.mrb[0].mxu0
      %3881 = vmatprep.mubr.bf16.mxu0 %v3652
      %3882 = vmatmul.mubr.bf16.gmra.mrb[0].mxu0 %v3650
      %v3883 = vpop.f32.mrb[0].mxu0
      %v3884 = vadd.f32 0.0, %v3883
      %v3885 = vpop.f32.mrb[0].mxu0
      %v3886 = vpop.f32.mrb[0].mxu0
      %v3887 = vadd.f32 0.0, %v3886
      %v3888 = vpop.f32.mrb[0].mxu0
      %3889 = vmatprep.mubr.bf16.mxu0 %v3656
      %3890 = vmatmul.mubr.bf16.gmra.mrb[0].mxu0 %v3654
      %v3891 = vpop.f32.mrb[0].mxu0
      %v3892 = vadd.f32 0.0, %v3891
      %v3893 = vpop.f32.mrb[0].mxu0
      %v3894 = vpop.f32.mrb[0].mxu0
      %v3895 = vadd.f32 0.0, %v3894
      %v3896 = vpop.f32.mrb[0].mxu0
      %3897 = vmatprep.mubr.bf16.mxu0 %v3660
      %3898 = vmatmul.mubr.bf16.gmra.mrb[0].mxu0 %v3658
      %v3899 = vpop.f32.mrb[0].mxu0
      %v3900 = vadd.f32 0.0, %v3899
      %v3901 = vpop.f32.mrb[0].mxu0
      %v3902 = vpop.f32.mrb[0].mxu0
      %v3903 = vadd.f32 0.0, %v3902
      %v3904 = vpop.f32.mrb[0].mxu0
      %3905 = vmatprep.mubr.bf16.mxu0 %v3664
      %3906 = vmatmul.mubr.bf16.gmra.mrb[0].mxu0 %v3662
      %v3907 = vpop.f32.mrb[0].mxu0
      %v3908 = vadd.f32 0.0, %v3907
      %v3909 = vpop.f32.mrb[0].mxu0
      %v3910 = vpop.f32.mrb[0].mxu0
      %v3911 = vadd.f32 0.0, %v3910
      %v3912 = vpop.f32.mrb[0].mxu0
      %3913 = vdwg.mxu0
      %v3914 = vadd.f32 %v3530, %v3820
      %v3915 = vadd.f32 %v3531, %v3823
      %v3916 = vadd.f32 %v3532, %v3828
      %v3917 = vadd.f32 %v3533, %v3831
      %v3918 = vadd.f32 %v3534, %v3836
      %v3919 = vadd.f32 %v3535, %v3839
      %v3920 = vadd.f32 %v3536, %v3844
      %v3921 = vadd.f32 %v3537, %v3847
      %v3922 = vadd.f32 %v3538, %v3852
      %v3923 = vadd.f32 %v3539, %v3855
      %v3924 = vadd.f32 %v3540, %v3860
      %v3925 = vadd.f32 %v3541, %v3863
      %v3926 = vadd.f32 %v3542, %v3868
      %v3927 = vadd.f32 %v3543, %v3871
      %v3928 = vadd.f32 %v3544, %v3876
      %v3929 = vadd.f32 %v3545, %v3879
      %v3930 = vadd.f32 %v3546, %v3884
      %v3931 = vadd.f32 %v3547, %v3887
      %v3932 = vadd.f32 %v3548, %v3892
      %v3933 = vadd.f32 %v3549, %v3895
      %v3934 = vadd.f32 %v3550, %v3900
      %v3935 = vadd.f32 %v3551, %v3903
      %v3936 = vadd.f32 %v3552, %v3908
      %v3937 = vadd.f32 %v3553, %v3911
      %v3938 = vld [vmem:[#allocation2 + $0xe0] sm:$0xff]
      %v3939 = vld [vmem:[#allocation2 + $0xe8] sm:$0xff]
      %s3940 = scalar_lea.vmem %s1, 1024
      %v3941 = vld [vmem:[%s3940] sm:$0xf]
      %v3942 = vld [vmem:[%s3940 + $0x4] sm:$0xf]
      %v3943 = vld [vmem:[%s3940 + $0x8] sm:$0xf]
      %v3944 = vld [vmem:[%s3940 + $0xc] sm:$0xf]
      %v3945 = vld [vmem:[%s3940 + $0x10] sm:$0xf]
      %v3946 = vld [vmem:[%s3940 + $0x14] sm:$0xf]
      %v3947 = vld [vmem:[%s3940 + $0x18] sm:$0xf]
      %v3948 = vld [vmem:[%s3940 + $0x1c] sm:$0xf]
      %v3949 = vld [vmem:[%s3940 + $0x20] sm:$0xf]
      %v3950 = vld [vmem:[%s3940 + $0x24] sm:$0xf]
      %v3951 = vld [vmem:[%s3940 + $0x28] sm:$0xf]
      %v3952 = vld [vmem:[%s3940 + $0x2c] sm:$0xf]
      %v3953 = vld [vmem:[%s3940 + $0x30] sm:$0xf]
      %v3954 = vld [vmem:[%s3940 + $0x34] sm:$0xf]
      %v3955 = vld [vmem:[%s3940 + $0x38] sm:$0xf]
      %v3956 = vld [vmem:[%s3940 + $0x3c] sm:$0xf]
      %v3957 = vld [vmem:[%s3940 + $0x40] sm:$0xf]
      %v3958 = vld [vmem:[%s3940 + $0x44] sm:$0xf]
      %v3959 = vld [vmem:[%s3940 + $0x48] sm:$0xf]
      %v3960 = vld [vmem:[%s3940 + $0x4c] sm:$0xf]
      %v3961 = vld [vmem:[%s3940 + $0x50] sm:$0xf]
      %v3962 = vld [vmem:[%s3940 + $0x54] sm:$0xf]
      %v3963 = vld [vmem:[%s3940 + $0x58] sm:$0xf]
      %v3964 = vld [vmem:[%s3940 + $0x5c] sm:$0xf]
      %v3965 = vld [vmem:[%s3940 + $0x60] sm:$0xf]
      %v3966 = vld [vmem:[%s3940 + $0x64] sm:$0xf]
      %v3967 = vld [vmem:[%s3940 + $0x68] sm:$0xf]
      %v3968 = vld [vmem:[%s3940 + $0x6c] sm:$0xf]
      %v3969 = vld [vmem:[%s3940 + $0x70] sm:$0xf]
      %v3970 = vld [vmem:[%s3940 + $0x74] sm:$0xf]
      %v3971 = vld [vmem:[%s3940 + $0x78] sm:$0xf]
      %v3972 = vld [vmem:[%s3940 + $0x7c] sm:$0xf]
      %v3974 = vshrl.u32 %v3554, 16
      %v3976 = vrot.slane %v3974, 7
      %v3977 = vrot.slane %v3058, 7
      %v3978 = vor.u32 %v3977, %v3061
      %v3979 = vsel %vm1280, %v3976, %v3978
      %v3981 = vshrl.u32 %v3555, 16
      %v3983 = vrot.slane %v3981, 7
      %v3984 = vrot.slane %v3075, 7
      %v3985 = vor.u32 %v3984, %v3078
      %v3986 = vsel %vm1280, %v3983, %v3985
      %v3987 = vrot.slane %v3084, 7
      %v3988 = vor.u32 %v3987, %v3087
      %v3989 = vsel %vm1280, %v3977, %v3988
      %v3990 = vrot.slane %v3093, 7
      %v3991 = vor.u32 %v3990, %v3096
      %v3992 = vsel %vm1280, %v3984, %v3991
      %v3993 = vrot.slane %v3102, 7
      %v3994 = vor.u32 %v3993, %v3105
      %v3995 = vsel %vm1280, %v3987, %v3994
      %v3996 = vrot.slane %v3111, 7
      %v3997 = vor.u32 %v3996, %v3114
      %v3998 = vsel %vm1280, %v3990, %v3997
      %v3999 = vrot.slane %v3120, 7
      %v4000 = vor.u32 %v3999, %v3123
      %v4001 = vsel %vm1280, %v3993, %v4000
      %v4002 = vrot.slane %v3129, 7
      %v4003 = vor.u32 %v4002, %v3132
      %v4004 = vsel %vm1280, %v3996, %v4003
      %v4005 = vrot.slane %v3138, 7
      %v4006 = vor.u32 %v4005, %v3141
      %v4007 = vsel %vm1280, %v3999, %v4006
      %v4008 = vrot.slane %v3147, 7
      %v4009 = vor.u32 %v4008, %v3150
      %v4010 = vsel %vm1280, %v4002, %v4009
      %v4011 = vrot.slane %v3156, 7
      %v4012 = vor.u32 %v4011, %v3159
      %v4013 = vsel %vm1280, %v4005, %v4012
      %v4014 = vrot.slane %v3165, 7
      %v4015 = vor.u32 %v4014, %v3168
      %v4016 = vsel %vm1280, %v4008, %v4015
      %v4017 = vrot.slane %v3174, 7
      %v4018 = vor.u32 %v4017, %v3177
      %v4019 = vsel %vm1280, %v4011, %v4018
      %v4020 = vrot.slane %v3183, 7
      %v4021 = vor.u32 %v4020, %v3186
      %v4022 = vsel %vm1280, %v4014, %v4021
      %v4023 = vrot.slane %v3192, 7
      %v4024 = vor.u32 %v4023, %v3195
      %v4025 = vsel %vm1280, %v4017, %v4024
      %v4026 = vrot.slane %v3201, 7
      %v4027 = vor.u32 %v4026, %v3204
      %v4028 = vsel %vm1280, %v4020, %v4027
      %v4029 = vrot.slane %v3210, 7
      %v4030 = vor.u32 %v4029, %v3213
      %v4031 = vsel %vm1280, %v4023, %v4030
      %v4032 = vrot.slane %v3219, 7
      %v4033 = vor.u32 %v4032, %v3222
      %v4034 = vsel %vm1280, %v4026, %v4033
      %v4035 = vrot.slane %v3228, 7
      %v4036 = vor.u32 %v4035, %v3231
      %v4037 = vsel %vm1280, %v4029, %v4036
      %v4038 = vrot.slane %v3237, 7
      %v4039 = vor.u32 %v4038, %v3240
      %v4040 = vsel %vm1280, %v4032, %v4039
      %v4041 = vrot.slane %v3246, 7
      %v4042 = vor.u32 %v4041, %v3249
      %v4043 = vsel %vm1280, %v4035, %v4042
      %v4044 = vrot.slane %v3255, 7
      %v4045 = vor.u32 %v4044, %v3258
      %v4046 = vsel %vm1280, %v4038, %v4045
      %v4048 = vshrl.u32 %v3938, 16
      %v4050 = vrot.slane %v4048, 7
      %v4051 = vshll.u32 %v3938, 16
      %v4053 = vor.u32 %v4050, %v4051
      %v4054 = vsel %vm1280, %v4041, %v4053
      %v4056 = vshrl.u32 %v3939, 16
      %v4058 = vrot.slane %v4056, 7
      %v4059 = vshll.u32 %v3939, 16
      %v4061 = vor.u32 %v4058, %v4059
      %v4062 = vsel %vm1280, %v4044, %v4061
      %v4119 = vunpack.c.l.b16 %v3941
      %v4120 = vunpack.c.l.b16 %v3942
      %v4121 = vunpack.c.l.b16 %v3943
      %v4122 = vunpack.c.l.b16 %v3944
      %v4123 = vunpack.c.l.b16 %v3945
      %v4124 = vunpack.c.l.b16 %v3946
      %v4125 = vunpack.c.l.b16 %v3947
      %v4126 = vunpack.c.l.b16 %v3948
      %v4127 = vunpack.c.l.b16 %v3949
      %v4128 = vunpack.c.l.b16 %v3950
      %v4129 = vunpack.c.l.b16 %v3951
      %v4130 = vunpack.c.l.b16 %v3952
      %v4131 = vunpack.c.l.b16 %v3953
      %v4132 = vunpack.c.l.b16 %v3954
      %v4133 = vunpack.c.l.b16 %v3955
      %v4134 = vunpack.c.l.b16 %v3956
      %v4135 = vunpack.c.l.b16 %v3957
      %v4136 = vunpack.c.l.b16 %v3958
      %v4137 = vunpack.c.l.b16 %v3959
      %v4138 = vunpack.c.l.b16 %v3960
      %v4139 = vunpack.c.l.b16 %v3961
      %v4140 = vunpack.c.l.b16 %v3962
      %v4141 = vunpack.c.l.b16 %v3963
      %v4142 = vunpack.c.l.b16 %v3964
      %v4143 = vunpack.c.l.b16 %v3965
      %v4144 = vunpack.c.l.b16 %v3966
      %v4145 = vunpack.c.l.b16 %v3967
      %v4146 = vunpack.c.l.b16 %v3968
      %v4147 = vunpack.c.l.b16 %v3969
      %v4148 = vunpack.c.l.b16 %v3970
      %v4149 = vunpack.c.l.b16 %v3971
      %v4150 = vunpack.c.l.b16 %v3972
      %v4151 = vpack.c.b16 %v4120, %v4119
      %v4152 = vpack.c.b16 %v4122, %v4121
      %v4153 = vpack.c.b16 %v4124, %v4123
      %v4154 = vpack.c.b16 %v4126, %v4125
      %v4155 = vpack.c.b16 %v4128, %v4127
      %v4156 = vpack.c.b16 %v4130, %v4129
      %v4157 = vpack.c.b16 %v4132, %v4131
      %v4158 = vpack.c.b16 %v4134, %v4133
      %v4159 = vpack.c.b16 %v4136, %v4135
      %v4160 = vpack.c.b16 %v4138, %v4137
      %v4161 = vpack.c.b16 %v4140, %v4139
      %v4162 = vpack.c.b16 %v4142, %v4141
      %v4163 = vpack.c.b16 %v4144, %v4143
      %v4164 = vpack.c.b16 %v4146, %v4145
      %v4165 = vpack.c.b16 %v4148, %v4147
      %v4166 = vpack.c.b16 %v4150, %v4149
      %4183 = vmatprep.subr.bf16.mxu0 0
      %4184 = vmatpush1.bf16.msra.mxu0 %v4151
      %4185 = vmatprep.subr.bf16.mxu0 0
      %4186 = vmatpush1.bf16.msra.mxu0 %v4152
      %4187 = vmatprep.subr.bf16.mxu0 0
      %4188 = vmatpush1.bf16.msra.mxu0 %v4153
      %4189 = vmatprep.subr.bf16.mxu0 0
      %4190 = vmatpush1.bf16.msra.mxu0 %v4154
      %4191 = vmatprep.subr.bf16.mxu0 0
      %4192 = vmatpush1.bf16.msra.mxu0 %v4155
      %4193 = vmatprep.subr.bf16.mxu0 0
      %4194 = vmatpush1.bf16.msra.mxu0 %v4156
      %4195 = vmatprep.subr.bf16.mxu0 0
      %4196 = vmatpush1.bf16.msra.mxu0 %v4157
      %4197 = vmatprep.subr.bf16.mxu0 0
      %4198 = vmatpush1.bf16.msra.mxu0 %v4158
      %4199 = vmatprep.subr.bf16.mxu0 0
      %4200 = vmatpush1.bf16.msra.mxu0 %v4159
      %4201 = vmatprep.subr.bf16.mxu0 0
      %4202 = vmatpush1.bf16.msra.mxu0 %v4160
      %4203 = vmatprep.subr.bf16.mxu0 0
      %4204 = vmatpush1.bf16.msra.mxu0 %v4161
      %4205 = vmatprep.subr.bf16.mxu0 0
      %4206 = vmatpush1.bf16.msra.mxu0 %v4162
      %4207 = vmatprep.subr.bf16.mxu0 0
      %4208 = vmatpush1.bf16.msra.mxu0 %v4163
      %4209 = vmatprep.subr.bf16.mxu0 0
      %4210 = vmatpush1.bf16.msra.mxu0 %v4164
      %4211 = vmatprep.subr.bf16.mxu0 0
      %4212 = vmatpush1.bf16.msra.mxu0 %v4165
      %4213 = vmatprep.subr.bf16.mxu0 0
      %4214 = vmatpush1.bf16.msra.mxu0 %v4166
      %4215 = vmatprep.mubr.bf16.mxu0 %v3986
      %4216 = vmatmul.mubr.bf16.gmra.mrb[0].mxu0 %v3979
      %v4217 = vpop.f32.mrb[0].mxu0
      %v4218 = vadd.f32 0.0, %v4217
      %v4219 = vpop.f32.mrb[0].mxu0
      %v4220 = vpop.f32.mrb[0].mxu0
      %v4221 = vadd.f32 0.0, %v4220
      %v4222 = vpop.f32.mrb[0].mxu0
      %4223 = vmatprep.mubr.bf16.mxu0 %v3992
      %4224 = vmatmul.mubr.bf16.gmra.mrb[0].mxu0 %v3989
      %v4225 = vpop.f32.mrb[0].mxu0
      %v4226 = vadd.f32 0.0, %v4225
      %v4227 = vpop.f32.mrb[0].mxu0
      %v4228 = vpop.f32.mrb[0].mxu0
      %v4229 = vadd.f32 0.0, %v4228
      %v4230 = vpop.f32.mrb[0].mxu0
      %4231 = vmatprep.mubr.bf16.mxu0 %v3998
      %4232 = vmatmul.mubr.bf16.gmra.mrb[0].mxu0 %v3995
      %v4233 = vpop.f32.mrb[0].mxu0
      %v4234 = vadd.f32 0.0, %v4233
      %v4235 = vpop.f32.mrb[0].mxu0
      %v4236 = vpop.f32.mrb[0].mxu0
      %v4237 = vadd.f32 0.0, %v4236
      %v4238 = vpop.f32.mrb[0].mxu0
      %4239 = vmatprep.mubr.bf16.mxu0 %v4004
      %4240 = vmatmul.mubr.bf16.gmra.mrb[0].mxu0 %v4001
      %v4241 = vpop.f32.mrb[0].mxu0
      %v4242 = vadd.f32 0.0, %v4241
      %v4243 = vpop.f32.mrb[0].mxu0
      %v4244 = vpop.f32.mrb[0].mxu0
      %v4245 = vadd.f32 0.0, %v4244
      %v4246 = vpop.f32.mrb[0].mxu0
      %4247 = vmatprep.mubr.bf16.mxu0 %v4010
      %4248 = vmatmul.mubr.bf16.gmra.mrb[0].mxu0 %v4007
      %v4249 = vpop.f32.mrb[0].mxu0
      %v4250 = vadd.f32 0.0, %v4249
      %v4251 = vpop.f32.mrb[0].mxu0
      %v4252 = vpop.f32.mrb[0].mxu0
      %v4253 = vadd.f32 0.0, %v4252
      %v4254 = vpop.f32.mrb[0].mxu0
      %4255 = vmatprep.mubr.bf16.mxu0 %v4016
      %4256 = vmatmul.mubr.bf16.gmra.mrb[0].mxu0 %v4013
      %v4257 = vpop.f32.mrb[0].mxu0
      %v4258 = vadd.f32 0.0, %v4257
      %v4259 = vpop.f32.mrb[0].mxu0
      %v4260 = vpop.f32.mrb[0].mxu0
      %v4261 = vadd.f32 0.0, %v4260
      %v4262 = vpop.f32.mrb[0].mxu0
      %4263 = vmatprep.mubr.bf16.mxu0 %v4022
      %4264 = vmatmul.mubr.bf16.gmra.mrb[0].mxu0 %v4019
      %v4265 = vpop.f32.mrb[0].mxu0
      %v4266 = vadd.f32 0.0, %v4265
      %v4267 = vpop.f32.mrb[0].mxu0
      %v4268 = vpop.f32.mrb[0].mxu0
      %v4269 = vadd.f32 0.0, %v4268
      %v4270 = vpop.f32.mrb[0].mxu0
      %4271 = vmatprep.mubr.bf16.mxu0 %v4028
      %4272 = vmatmul.mubr.bf16.gmra.mrb[0].mxu0 %v4025
      %v4273 = vpop.f32.mrb[0].mxu0
      %v4274 = vadd.f32 0.0, %v4273
      %v4275 = vpop.f32.mrb[0].mxu0
      %v4276 = vpop.f32.mrb[0].mxu0
      %v4277 = vadd.f32 0.0, %v4276
      %v4278 = vpop.f32.mrb[0].mxu0
      %4279 = vmatprep.mubr.bf16.mxu0 %v4034
      %4280 = vmatmul.mubr.bf16.gmra.mrb[0].mxu0 %v4031
      %v4281 = vpop.f32.mrb[0].mxu0
      %v4282 = vadd.f32 0.0, %v4281
      %v4283 = vpop.f32.mrb[0].mxu0
      %v4284 = vpop.f32.mrb[0].mxu0
      %v4285 = vadd.f32 0.0, %v4284
      %v4286 = vpop.f32.mrb[0].mxu0
      %4287 = vmatprep.mubr.bf16.mxu0 %v4040
      %4288 = vmatmul.mubr.bf16.gmra.mrb[0].mxu0 %v4037
      %v4289 = vpop.f32.mrb[0].mxu0
      %v4290 = vadd.f32 0.0, %v4289
      %v4291 = vpop.f32.mrb[0].mxu0
      %v4292 = vpop.f32.mrb[0].mxu0
      %v4293 = vadd.f32 0.0, %v4292
      %v4294 = vpop.f32.mrb[0].mxu0
      %4295 = vmatprep.mubr.bf16.mxu0 %v4046
      %4296 = vmatmul.mubr.bf16.gmra.mrb[0].mxu0 %v4043
      %v4297 = vpop.f32.mrb[0].mxu0
      %v4298 = vadd.f32 0.0, %v4297
      %v4299 = vpop.f32.mrb[0].mxu0
      %v4300 = vpop.f32.mrb[0].mxu0
      %v4301 = vadd.f32 0.0, %v4300
      %v4302 = vpop.f32.mrb[0].mxu0
      %4303 = vmatprep.mubr.bf16.mxu0 %v4062
      %4304 = vmatmul.mubr.bf16.gmra.mrb[0].mxu0 %v4054
      %v4305 = vpop.f32.mrb[0].mxu0
      %v4306 = vadd.f32 0.0, %v4305
      %v4307 = vpop.f32.mrb[0].mxu0
      %v4308 = vpop.f32.mrb[0].mxu0
      %v4309 = vadd.f32 0.0, %v4308
      %v4310 = vpop.f32.mrb[0].mxu0
      %4311 = vdwg.mxu0
      %v4312 = vadd.f32 %v3914, %v4218
      %v4313 = vadd.f32 %v3915, %v4221
      %v4314 = vadd.f32 %v3916, %v4226
      %v4315 = vadd.f32 %v3917, %v4229
      %v4316 = vadd.f32 %v3918, %v4234
      %v4317 = vadd.f32 %v3919, %v4237
      %v4318 = vadd.f32 %v3920, %v4242
      %v4319 = vadd.f32 %v3921, %v4245
      %v4320 = vadd.f32 %v3922, %v4250
      %v4321 = vadd.f32 %v3923, %v4253
      %v4322 = vadd.f32 %v3924, %v4258
      %v4323 = vadd.f32 %v3925, %v4261
      %v4324 = vadd.f32 %v3926, %v4266
      %v4325 = vadd.f32 %v3927, %v4269
      %v4326 = vadd.f32 %v3928, %v4274
      %v4327 = vadd.f32 %v3929, %v4277
      %v4328 = vadd.f32 %v3930, %v4282
      %v4329 = vadd.f32 %v3931, %v4285
      %v4330 = vadd.f32 %v3932, %v4290
      %v4331 = vadd.f32 %v3933, %v4293
      %v4332 = vadd.f32 %v3934, %v4298
      %v4333 = vadd.f32 %v3935, %v4301
      %v4334 = vadd.f32 %v3936, %v4306
      %v4335 = vadd.f32 %v3937, %v4309
      %v4336 = vmul.f32 %v4312, 0.01
      %v4337 = vmul.f32 %v4313, 0.01
      %v4338 = vmul.f32 %v4314, 0.01
      %v4339 = vmul.f32 %v4315, 0.01
      %v4340 = vmul.f32 %v4316, 0.01
      %v4341 = vmul.f32 %v4317, 0.01
      %v4342 = vmul.f32 %v4318, 0.01
      %v4343 = vmul.f32 %v4319, 0.01
      %v4344 = vmul.f32 %v4320, 0.01
      %v4345 = vmul.f32 %v4321, 0.01
      %v4346 = vmul.f32 %v4322, 0.01
      %v4347 = vmul.f32 %v4323, 0.01
      %v4348 = vmul.f32 %v4324, 0.01
      %v4349 = vmul.f32 %v4325, 0.01
      %v4350 = vmul.f32 %v4326, 0.01
      %v4351 = vmul.f32 %v4327, 0.01
      %v4352 = vmul.f32 %v4328, 0.01
      %v4353 = vmul.f32 %v4329, 0.01
      %v4354 = vmul.f32 %v4330, 0.01
      %v4355 = vmul.f32 %v4331, 0.01
      %v4356 = vmul.f32 %v4332, 0.01
      %v4357 = vmul.f32 %v4333, 0.01
      %v4358 = vmul.f32 %v4334, 0.01
      %v4359 = vmul.f32 %v4335, 0.01
      %v4360 = vmax.f32 %v4312, %v4336
      %v4361 = vmax.f32 %v4313, %v4337
      %v4362 = vmax.f32 %v4314, %v4338
      %v4363 = vmax.f32 %v4315, %v4339
      %v4364 = vmax.f32 %v4316, %v4340
      %v4365 = vmax.f32 %v4317, %v4341
      %v4366 = vmax.f32 %v4318, %v4342
      %v4367 = vmax.f32 %v4319, %v4343
      %v4368 = vmax.f32 %v4320, %v4344
      %v4369 = vmax.f32 %v4321, %v4345
      %v4370 = vmax.f32 %v4322, %v4346
      %v4371 = vmax.f32 %v4323, %v4347
      %v4372 = vmax.f32 %v4324, %v4348
      %v4373 = vmax.f32 %v4325, %v4349
      %v4374 = vmax.f32 %v4326, %v4350
      %v4375 = vmax.f32 %v4327, %v4351
      %v4376 = vmax.f32 %v4328, %v4352
      %v4377 = vmax.f32 %v4329, %v4353
      %v4378 = vmax.f32 %v4330, %v4354
      %v4379 = vmax.f32 %v4331, %v4355
      %v4380 = vmax.f32 %v4332, %v4356
      %v4381 = vmax.f32 %v4333, %v4357
      %v4382 = vmax.f32 %v4334, %v4358
      %v4383 = vmax.f32 %v4335, %v4359
      %4384 = vst [vmem:[%s170] sm:$0xff] %v4360
      %4385 = vst [vmem:[%s170 + $0x8] sm:$0xf] %v4361
      %s4386 = scalar_lea.vmem %s170, 16
      %4387 = vst [vmem:[%s4386] sm:$0xff] %v4362
      %4388 = vst [vmem:[%s4386 + $0x8] sm:$0xf] %v4363
      %s4389 = scalar_lea.vmem %s170, 32
      %4390 = vst [vmem:[%s4389] sm:$0xff] %v4364
      %4391 = vst [vmem:[%s4389 + $0x8] sm:$0xf] %v4365
      %s4392 = scalar_lea.vmem %s170, 48
      %4393 = vst [vmem:[%s4392] sm:$0xff] %v4366
      %4394 = vst [vmem:[%s4392 + $0x8] sm:$0xf] %v4367
      %s4395 = scalar_lea.vmem %s170, 64
      %4396 = vst [vmem:[%s4395] sm:$0xff] %v4368
      %4397 = vst [vmem:[%s4395 + $0x8] sm:$0xf] %v4369
      %s4398 = scalar_lea.vmem %s170, 80
      %4399 = vst [vmem:[%s4398] sm:$0xff] %v4370
      %4400 = vst [vmem:[%s4398 + $0x8] sm:$0xf] %v4371
      %s4401 = scalar_lea.vmem %s170, 96
      %4402 = vst [vmem:[%s4401] sm:$0xff] %v4372
      %4403 = vst [vmem:[%s4401 + $0x8] sm:$0xf] %v4373
      %s4404 = scalar_lea.vmem %s170, 112
      %4405 = vst [vmem:[%s4404] sm:$0xff] %v4374
      %4406 = vst [vmem:[%s4404 + $0x8] sm:$0xf] %v4375
      %s4407 = scalar_lea.vmem %s170, 128
      %4408 = vst [vmem:[%s4407] sm:$0xff] %v4376
      %4409 = vst [vmem:[%s4407 + $0x8] sm:$0xf] %v4377
      %s4410 = scalar_lea.vmem %s170, 144
      %4411 = vst [vmem:[%s4410] sm:$0xff] %v4378
      %4412 = vst [vmem:[%s4410 + $0x8] sm:$0xf] %v4379
      %s4413 = scalar_lea.vmem %s170, 160
      %4414 = vst [vmem:[%s4413] sm:$0xff] %v4380
      %4415 = vst [vmem:[%s4413 + $0x8] sm:$0xf] %v4381
      %s4416 = scalar_lea.vmem %s170, 176
      %4417 = vst [vmem:[%s4416] sm:$0xff] %v4382
      %4418 = vst [vmem:[%s4416 + $0x8] sm:$0xf] %v4383
      %p4419 = scmp.lt.s32.totalorder %s14, 1
      %s4420 = scalar_select %p4419, %s14, 1
      %s4421 = smul.addr %s4420, 24
      %s4422 = smul.addr %s4421, 8
      %s4423 = scalar_lea.vmem %s3, %s4422
      // Predicated region
      $region33: #{conv_leaky_relu.1} parent=31 // pred_check
        %p4424 = pneg %p100
      $region34: #{conv_leaky_relu.1} parent=31 // pred_check_branch
        %4426 = sbr.rel (%p4424) target = $region36
      $region35: #{conv_leaky_relu.1} parent=31 // pred_region
        _
      $region36: #{conv_leaky_relu.1} parent=31 // pred_fallthru
        _
    $region32: #{conv_leaky_relu.1} parent=5 // pred_fallthru
      _
    %p4427 = scmp.le.s32.totalorder 2, %s9
    // Predicated region
    $region37: #{conv_leaky_relu.1} parent=5 // pred_check
      %p4428 = pneg %p4427
    $region38: #{conv_leaky_relu.1} parent=5 // pred_check_branch
      %4430 = sbr.rel (%p4428) target = $region40
    $region39: #{conv_leaky_relu.1} parent=5 // pred_region
      %s4431 = ssub.s32 %s9, 2
      // Predicated region
      $region41: #{conv_leaky_relu.1} parent=39 // pred_check
        %p4432 = pneg %p106
      $region42: #{conv_leaky_relu.1} parent=39 // pred_check_branch
        %4434 = sbr.rel (%p4432) target = $region44
      $region43: #{conv_leaky_relu.1} parent=39 // pred_region
        %p4435 = scmp.lt.s32.totalorder %s15, 1
        %s4436 = scalar_select %p4435, %s15, 1
        %s4437 = smul.addr %s4436, 24
        %s4438 = smul.addr %s4437, 8
        %s4439 = scalar_lea.vmem %s3, %s4438
      $region44: #{conv_leaky_relu.1} parent=39 // pred_fallthru
        _
    $region40: #{conv_leaky_relu.1} parent=5 // pred_fallthru
      _
  $region6: #{conv_leaky_relu.1} parent=0 // loop_footer
    %s13 = sadd.s32 1, %s9
  $region7: #{conv_leaky_relu.1} parent=0 // loop_footer_branch
    %8 = sbr.rel target = $region3
  $region8: #{conv_leaky_relu.1} parent=0 // loop_exit
    _

</llo_original>
